<compile_context>
chip_gen: v6e
topology: v6e:2x2x1
jax: 0.10.0
libtpu: 0.0.40
codegen_flags: <defaults>
</compile_context>

<pallas_src>
import math
import numpy as np

import jax
import jax.numpy as jnp
from jax import lax
from jax.experimental import pallas as pl
from jax.experimental.pallas import tpu as pltpu

_VMEM_LIMIT = 32 * 1024 * 1024  # re-derive per chip for real sizes (<=~half physical)


# ----------------------------------------------------------------------------
# GRU cell math (shared by the Pallas kernel and the pure-JAX reference)
# ----------------------------------------------------------------------------
def _gru_cell(h, gx_r, gx_z, gx_n, wh, bhn):
    """One GRU step.  h: (B,H) f32 carry.  gx_*: (B,H) bf16 (bias-folded input proj).
    wh: (3,H,H) per-gate stack, or (H,3H) fused (used when H % 128 == 0 so the gate
    slices of the matmul result are lane-tile aligned).  bhn: (1,H) f32."""
    H = h.shape[-1]
    hb = h.astype(jnp.bfloat16)
    if wh.ndim == 3:                      # per-gate recurrent matmuls (H < 128 case)
        gh_r = jnp.dot(hb, wh[0], preferred_element_type=jnp.float32)
        gh_z = jnp.dot(hb, wh[1], preferred_element_type=jnp.float32)
        gh_n = jnp.dot(hb, wh[2], preferred_element_type=jnp.float32)
    else:                                 # fused (B,H)@(H,3H) matmul, aligned slices
        gh = jnp.dot(hb, wh, preferred_element_type=jnp.float32)
        gh_r, gh_z, gh_n = gh[:, :H], gh[:, H:2 * H], gh[:, 2 * H:]
    r = jax.nn.sigmoid(gx_r.astype(jnp.float32) + gh_r)   # b_ir + b_hr folded into gx_r
    z = jax.nn.sigmoid(gx_z.astype(jnp.float32) + gh_z)   # b_iz + b_hz folded into gx_z
    n = jnp.tanh(gx_n.astype(jnp.float32) + r * (gh_n + bhn))   # b_in in gx_n; b_hn here
    return n + z * (h - n)                 # == (1-z)*n + z*h, one VALU op fewer


# ----------------------------------------------------------------------------
# Pallas kernel: one bidirectional GRU layer, time-tiled grid
# ----------------------------------------------------------------------------
def _bigru_block_kernel(len_ref, gxf_ref, gxb_ref, whf_ref, whb_ref,
                        bhnf_ref, bhnb_ref, outf_ref, outb_ref, hf_ref, hb_ref):
    i = pl.program_id(0)
    nb = pl.num_programs(0)
    t_blk, B, H = outf_ref.shape

    @pl.when(i == 0)
    def _():
        hf_ref[...] = jnp.zeros(hf_ref.shape, hf_ref.dtype)
        hb_ref[...] = jnp.zeros(hb_ref.shape, hb_ref.dtype)

    lens = len_ref[...]                    # (B,1) int32 — packed-sequence validity
    whf = whf_ref[...]
    whb = whb_ref[...]
    bhnf = bhnf_ref[...]                   # (1,H) f32
    bhnb = bhnb_ref[...]

    base_f = i * t_blk                     # global time offset of the forward block
    base_b = (nb - 1 - i) * t_blk          # global time offset of the backward block

    def step(t, carry):
        hf, hb = carry
        # ---- forward direction, global position base_f + t -------------------
        hf_new = _gru_cell(hf, gxf_ref[0, t], gxf_ref[1, t], gxf_ref[2, t], whf, bhnf)
        mf = lens > (base_f + t)
        hf = jnp.where(mf, hf_new, hf)                       # hold h on padded steps
        outf_ref[t] = jnp.where(mf, hf, 0.0).astype(outf_ref.dtype)
        # ---- backward direction, local index t_blk-1-t (reversed block) ------
        s = t_blk - 1 - t
        hb_new = _gru_cell(hb, gxb_ref[0, s], gxb_ref[1, s], gxb_ref[2, s], whb, bhnb)
        mb = lens > (base_b + s)
        hb = jnp.where(mb, hb_new, hb)
        outb_ref[s] = jnp.where(mb, hb, 0.0).astype(outb_ref.dtype)
        return hf, hb

    carry = (hf_ref[...], hb_ref[...])
    if t_blk <= 8:
        for t in range(t_blk):             # short static block: full unroll
            carry = step(t, carry)
    else:
        carry = lax.fori_loop(0, t_blk, step, carry, unroll=4)
    hf_ref[...] = carry[0]
    hb_ref[...] = carry[1]


def _const_spec(shape):
    zeros = (0,) * len(shape)
    return pl.BlockSpec(tuple(shape), lambda i, _z=zeros: _z)


def _run_bigru_layer(lens_2d, gx_f, gx_b, wh_f, wh_b, bhn_f, bhn_b, t_blk):
    _, T_pad, B, H = gx_f.shape
    nb = T_pad // t_blk
    gate_f = pl.BlockSpec((3, t_blk, B, H), lambda i: (0, i, 0, 0))
    gate_b = pl.BlockSpec((3, t_blk, B, H), lambda i: (0, nb - 1 - i, 0, 0))
    out_f_spec = pl.BlockSpec((t_blk, B, H), lambda i: (i, 0, 0))
    out_b_spec = pl.BlockSpec((t_blk, B, H), lambda i: (nb - 1 - i, 0, 0))
    return pl.pallas_call(
        _bigru_block_kernel,
        grid=(nb,),
        in_specs=[_const_spec((B, 1)), gate_f, gate_b,
                  _const_spec(wh_f.shape), _const_spec(wh_b.shape),
                  _const_spec((1, H)), _const_spec((1, H))],
        out_specs=(out_f_spec, out_b_spec),
        out_shape=(jax.ShapeDtypeStruct((T_pad, B, H), jnp.bfloat16),
                   jax.ShapeDtypeStruct((T_pad, B, H), jnp.bfloat16)),
        scratch_shapes=[pltpu.VMEM((B, H), jnp.float32),
                        pltpu.VMEM((B, H), jnp.float32)],
        compiler_params=pltpu.CompilerParams(
            dimension_semantics=("arbitrary",),      # sequential: hf/hb carry
            vmem_limit_bytes=_VMEM_LIMIT),
    )(lens_2d, gx_f, gx_b, wh_f, wh_b, bhn_f, bhn_b)


# ----------------------------------------------------------------------------
# Pallas kernel: combine epilogue  cap = l2norm((out_fwd + out_bwd) / 2)
# ----------------------------------------------------------------------------
def _make_combine_kernel(no_txtnorm):
    def kernel(outf_ref, outb_ref, cap_ref):
        s = (outf_ref[...].astype(jnp.float32) + outb_ref[...].astype(jnp.float32)) * 0.5
        if not no_txtnorm:
            # keep eps OUTSIDE the sqrt (exact PyTorch l2norm semantics, 0-rows -> 0)
            nrm = jnp.sqrt(jnp.sum(s * s, axis=-1, keepdims=True)) + 1e-8
            s = s / nrm
        cap_ref[...] = s
    return kernel


def _run_combine(out_f, out_b, t_blk, no_txtnorm):
    T_pad, B, H = out_f.shape
    nb = T_pad // t_blk
    spec = pl.BlockSpec((t_blk, B, H), lambda i: (i, 0, 0))
    return pl.pallas_call(
        _make_combine_kernel(no_txtnorm),
        grid=(nb,),
        in_specs=[spec, spec],
        out_specs=spec,
        out_shape=jax.ShapeDtypeStruct((T_pad, B, H), jnp.float32),
        compiler_params=pltpu.CompilerParams(
            dimension_semantics=("parallel",), vmem_limit_bytes=_VMEM_LIMIT),
    )(out_f, out_b)


# ----------------------------------------------------------------------------
# Hoisted input projections (one large bf16 GEMM per layer/direction, in XLA)
# ----------------------------------------------------------------------------
def _input_proj_from_embed(x_tm, wi, bx):
    # x_tm: (T,B,D) f32; wi: (3,D,H) bf16; bx: (3,H) f32  ->  (3,T,B,H) bf16
    gx = jnp.einsum("tbd,gdh->gtbh", x_tm.astype(jnp.bfloat16), wi,
                    preferred_element_type=jnp.float32)
    return (gx + bx[:, None, None, :]).astype(jnp.bfloat16)


def _input_proj_from_bidir(out_f, out_b, wi, bx):
    # avoid concat(out_f, out_b): split the (3,2H,H) weights into fwd/bwd halves
    H = out_f.shape[-1]
    wt, wb = wi[:, :H, :], wi[:, H:, :]
    gx = (jnp.einsum("tbh,ghk->gtbk", out_f, wt, preferred_element_type=jnp.float32)
          + jnp.einsum("tbh,ghk->gtbk", out_b, wb, preferred_element_type=jnp.float32))
    return (gx + bx[:, None, None, :]).astype(jnp.bfloat16)


# ----------------------------------------------------------------------------
# EncoderText forward (Pallas)
# ----------------------------------------------------------------------------
def encoder_text_forward(packed_params, tokens, lengths_np, num_layers,
                         no_txtnorm=False, t_blk=8):
    lengths_np = np.asarray(lengths_np)
    max_len = int(lengths_np.max())                       # pad_packed_sequence max len
    lengths = jnp.asarray(lengths_np, jnp.int32)
    B = tokens.shape[0]

    # embedding lookup (XLA glue); bound all sequential work by max(lengths)
    x = packed_params["embed"][tokens][:, :max_len, :]    # (B, T, D)
    x_tm = jnp.transpose(x, (1, 0, 2)).astype(jnp.float32)  # (T, B, D) time-major
    nb = -(-max_len // t_blk)
    T_pad = nb * t_blk
    if T_pad != max_len:                                   # pad time to a block multiple
        x_tm = jnp.pad(x_tm, ((0, T_pad - max_len), (0, 0), (0, 0)))
    lens_2d = lengths.reshape(B, 1)

    out_f = out_b = None
    for l in range(num_layers):
        p = packed_params["gru"][l]
        if l == 0:
            gx_f = _input_proj_from_embed(x_tm, p["wi_f"], p["bx_f"])
            gx_b = _input_proj_from_embed(x_tm, p["wi_b"], p["bx_b"])
        else:
            gx_f = _input_proj_from_bidir(out_f, out_b, p["wi_f"], p["bx_f"])
            gx_b = _input_proj_from_bidir(out_f, out_b, p["wi_b"], p["bx_b"])
        out_f, out_b = _run_bigru_layer(lens_2d, gx_f, gx_b, p["wh_f"], p["wh_b"],
                                        p["bhn_f"], p["bhn_b"], t_blk)

    cap_tm = _run_combine(out_f, out_b, t_blk, no_txtnorm)   # (T_pad, B, H) f32
    cap_emb = jnp.transpose(cap_tm[:max_len], (1, 0, 2))     # (B, max_len, H)
    return cap_emb, lengths


# ----------------------------------------------------------------------------
# Parameter init (PyTorch-like raw layout) and packing into the kernel layout
# ----------------------------------------------------------------------------
def init_params(key, vocab_size, word_dim, embed_size, num_layers):
    H = embed_size
    k = 1.0 / math.sqrt(H)
    keys = jax.random.split(key, 1 + num_layers * 8)
    embed = jax.random.uniform(keys[0], (vocab_size, word_dim), jnp.float32, -0.1, 0.1)

    gru = []
    idx = 1
    in_dim = word_dim
    for _ in range(num_layers):
        layer = {}
        for d in ("f", "b"):
            wih = jax.random.uniform(keys[idx], (in_dim, 3 * H), jnp.float32, -k, k); idx += 1
            whh = jax.random.uniform(keys[idx], (H, 3 * H), jnp.float32, -k, k); idx += 1
            bih = jax.random.uniform(keys[idx], (3 * H,), jnp.float32, -k, k); idx += 1
            bhh = jax.random.uniform(keys[idx], (3 * H,), jnp.float32, -k, k); idx += 1
            layer["wih_" + d] = wih
            layer["whh_" + d] = whh
            layer["b_" + d] = jnp.stack([bih, bhh])        # (2, 3H)
        gru.append(layer)
        in_dim = 2 * H
    return {"embed": embed, "gru": gru}


def pack_params(raw):
    """Raw (in,3H)/(H,3H) layout -> per-gate / fused, bf16 MXU-friendly layout."""
    packed = {"embed": raw["embed"]}
    layers = []
    for lp in raw["gru"]:
        layer = {}
        for d in ("f", "b"):
            wih = lp["wih_" + d]                           # (in_dim, 3H), gates [r|z|n]
            whh = lp["whh_" + d]                           # (H, 3H)
            bih, bhh = lp["b_" + d][0], lp["b_" + d][1]
            H = whh.shape[0]
            layer["wi_" + d] = jnp.stack(
                [wih[:, :H], wih[:, H:2 * H], wih[:, 2 * H:]]).astype(jnp.bfloat16)
            if H % 128 == 0:       # fused recurrent matmul, lane-aligned gate slices
                layer["wh_" + d] = whh.astype(jnp.bfloat16)                 # (H, 3H)
            else:                  # per-gate stack for small H (demo case)
                layer["wh_" + d] = jnp.stack(
                    [whh[:, :H], whh[:, H:2 * H], whh[:, 2 * H:]]).astype(jnp.bfloat16)
            # r/z biases (b_ih + b_hh) fold into the hoisted projection; n keeps b_in only
            layer["bx_" + d] = jnp.stack(
                [bih[:H] + bhh[:H], bih[H:2 * H] + bhh[H:2 * H], bih[2 * H:]])  # (3,H)
            layer["bhn_" + d] = bhh[2 * H:].reshape(1, H)                        # (1,H)
        layers.append(layer)
    packed["gru"] = layers
    return packed


# ----------------------------------------------------------------------------
# Reference 1: pure-JAX mirror of the kernel numerics (tight check)
# ----------------------------------------------------------------------------
def _ref_dir_packed(gx, wh, bhn, lengths, reverse):
    _, T, B, H = gx.shape
    pos = jnp.arange(T, dtype=jnp.int32)
    gx_t = jnp.moveaxis(gx, 1, 0)                          # (T, 3, B, H)
    if reverse:
        gx_t = gx_t[::-1]
        pos = pos[::-1]

    def step(h, inp):
        g, p = inp
        h_new = _gru_cell(h, g[0], g[1], g[2], wh, bhn)
        m = lengths[:, None] > p
        h = jnp.where(m, h_new, h)
        return h, jnp.where(m, h, 0.0).astype(jnp.bfloat16)

    _, out = lax.scan(step, jnp.zeros((B, H), jnp.float32), (gx_t, pos))
    return out[::-1] if reverse else out                   # (T, B, H) bf16


def ref_forward_packed(packed, tokens, lengths_np, num_layers, no_txtnorm=False, t_blk=8):
    lengths_np = np.asarray(lengths_np)
    max_len = int(lengths_np.max())
    lengths = jnp.asarray(lengths_np, jnp.int32)
    x = packed["embed"][tokens][:, :max_len, :]
    x_tm = jnp.transpose(x, (1, 0, 2)).astype(jnp.float32)
    nb = -(-max_len // t_blk)
    T_pad = nb * t_blk
    if T_pad != max_len:
        x_tm = jnp.pad(x_tm, ((0, T_pad - max_len), (0, 0), (0, 0)))
    out_f = out_b = None
    for l in range(num_layers):
        p = packed["gru"][l]
        if l == 0:
            gx_f = _input_proj_from_embed(x_tm, p["wi_f"], p["bx_f"])
            gx_b = _input_proj_from_embed(x_tm, p["wi_b"], p["bx_b"])
        else:
            gx_f = _input_proj_from_bidir(out_f, out_b, p["wi_f"], p["bx_f"])
            gx_b = _input_proj_from_bidir(out_f, out_b, p["wi_b"], p["bx_b"])
        out_f = _ref_dir_packed(gx_f, p["wh_f"], p["bhn_f"], lengths, reverse=False)
        out_b = _ref_dir_packed(gx_b, p["wh_b"], p["bhn_b"], lengths, reverse=True)
    s = (out_f.astype(jnp.float32) + out_b.astype(jnp.float32)) * 0.5
    if not no_txtnorm:
        s = s / (jnp.sqrt(jnp.sum(s * s, axis=-1, keepdims=True)) + 1e-8)
    return jnp.transpose(s[:max_len], (1, 0, 2)), lengths


# ----------------------------------------------------------------------------
# Reference 2: full-f32 PyTorch-semantics GRU (loose algorithmic check)
# ----------------------------------------------------------------------------
def _ref_gru_dir_f32(x_tm, wih, whh, b, mask):
    B = x_tm.shape[1]
    H = whh.shape[0]
    bih, bhh = b[0], b[1]

    def step(h, inp):
        x_t, m_t = inp
        gx = jnp.dot(x_t, wih) + bih
        gh = jnp.dot(h, whh) + bhh
        r = jax.nn.sigmoid(gx[:, :H] + gh[:, :H])
        z = jax.nn.sigmoid(gx[:, H:2 * H] + gh[:, H:2 * H])
        n = jnp.tanh(gx[:, 2 * H:] + r * gh[:, 2 * H:])
        h_new = (1.0 - z) * n + z * h
        h = jnp.where(m_t, h_new, h)
        return h, jnp.where(m_t, h, 0.0)

    _, out = lax.scan(step, jnp.zeros((B, H), jnp.float32), (x_tm, mask))
    return out


def ref_forward_f32(raw, tokens, lengths_np, num_layers, no_txtnorm=False):
    lengths_np = np.asarray(lengths_np)
    max_len = int(lengths_np.max())
    lengths = jnp.asarray(lengths_np, jnp.int32)
    x = raw["embed"][tokens][:, :max_len, :]
    x_tm = jnp.transpose(x, (1, 0, 2)).astype(jnp.float32)
    T = x_tm.shape[0]
    t_idx = jnp.arange(T, dtype=jnp.int32)[:, None]
    mask_fwd = (t_idx < lengths[None, :])[:, :, None]
    mask_bwd = (t_idx >= (T - lengths)[None, :])[:, :, None]
    layer_in = x_tm
    out_f = out_b = None
    for l in range(num_layers):
        p = raw["gru"][l]
        out_f = _ref_gru_dir_f32(layer_in, p["wih_f"], p["whh_f"], p["b_f"], mask_fwd)
        out_b = _ref_gru_dir_f32(layer_in[::-1], p["wih_b"], p["whh_b"], p["b_b"],
                                 mask_bwd)[::-1]
        layer_in = jnp.concatenate([out_f, out_b], axis=-1)
    s = (out_f + out_b) * 0.5
    if not no_txtnorm:
        s = s / (jnp.sqrt(jnp.sum(s * s, axis=-1, keepdims=True)) + 1e-8)
    return jnp.transpose(s, (1, 0, 2)), lengths


# ----------------------------------------------------------------------------
if __name__ == "__main__":
    def run_case(key, vocab_size, word_dim, embed_size, num_layers, B, T, lengths, t_blk):
        pkey, tkey = jax.random.split(key)
        raw = init_params(pkey, vocab_size, word_dim, embed_size, num_layers)
        packed = pack_params(raw)
        tokens = jax.random.randint(tkey, (B, T), 0, vocab_size, dtype=jnp.int32)

        cap_emb, cap_len = encoder_text_forward(packed, tokens, lengths, num_layers,
                                                t_blk=t_blk)
        cap_emb = jax.block_until_ready(cap_emb)

        # tight check: pure-JAX mirror of the exact kernel numerics
        ref_emb, _ = ref_forward_packed(packed, tokens, lengths, num_layers, t_blk=t_blk)
        np.testing.assert_allclose(np.asarray(cap_emb), np.asarray(ref_emb),
                                   rtol=2e-3, atol=2e-3)
        # loose check: f32 PyTorch-semantics GRU (bf16 weight/activation rounding drift)
        ref32, _ = ref_forward_f32(raw, tokens, lengths, num_layers)
        np.testing.assert_allclose(np.asarray(cap_emb), np.asarray(ref32),
                                   rtol=2.5e-2, atol=2.5e-2)

        assert cap_emb.shape == (B, int(np.max(lengths)), embed_size)
        assert np.array_equal(np.asarray(cap_len), np.asarray(lengths))

    base_key = jax.random.PRNGKey(0)
    # case 1: small-H demo (per-gate recurrent matmuls), multi-block time grid
    run_case(base_key, vocab_size=50, word_dim=32, embed_size=32, num_layers=2,
             B=2, T=16, lengths=np.array([14, 9], dtype=np.int32), t_blk=8)
    # case 2: lane-dense H=128 demo (fused (H,3H) recurrent matmul path)
    run_case(jax.random.fold_in(base_key, 1), vocab_size=50, word_dim=64,
             embed_size=128, num_layers=2, B=2, T=16,
             lengths=np.array([13, 10], dtype=np.int32), t_blk=8)

    print("KERNEL_OK")
</pallas_src>

<mosaic_0001>
module attributes {stable_mosaic.version = 11 : i64} {
  func.func @_bigru_block_kernel(%arg0: i32, %arg1: memref<2x1xi32, #tpu.memory_space<vmem>>, %arg2: memref<3x8x2x32xbf16, #tpu.memory_space<vmem>>, %arg3: memref<3x8x2x32xbf16, #tpu.memory_space<vmem>>, %arg4: memref<3x32x32xbf16, #tpu.memory_space<vmem>>, %arg5: memref<3x32x32xbf16, #tpu.memory_space<vmem>>, %arg6: memref<1x32xf32, #tpu.memory_space<vmem>>, %arg7: memref<1x32xf32, #tpu.memory_space<vmem>>, %arg8: memref<8x2x32xbf16, #tpu.memory_space<vmem>>, %arg9: memref<8x2x32xbf16, #tpu.memory_space<vmem>>, %arg10: memref<2x32xf32, #tpu.memory_space<vmem>>, %arg11: memref<2x32xf32, #tpu.memory_space<vmem>>) attributes {dimension_semantics = [#tpu.dimension_semantics<arbitrary>], iteration_bounds = array<i64: 2>, scalar_prefetch = 0 : i64, scratch_operands = 2 : i64, tpu.core_type = #tpu.core_type<tc>, window_params = [{pipeline_mode = #tpu.pipeline_mode<synchronous>, transform_indices = @transform_0, window_bounds = array<i64: 2, 1>}, {transform_indices = @transform_1, window_bounds = array<i64: 3, 8, 2, 32>}, {transform_indices = @transform_2, window_bounds = array<i64: 3, 8, 2, 32>}, {pipeline_mode = #tpu.pipeline_mode<synchronous>, transform_indices = @transform_3, window_bounds = array<i64: 3, 32, 32>}, {pipeline_mode = #tpu.pipeline_mode<synchronous>, transform_indices = @transform_4, window_bounds = array<i64: 3, 32, 32>}, {pipeline_mode = #tpu.pipeline_mode<synchronous>, transform_indices = @transform_5, window_bounds = array<i64: 1, 32>}, {pipeline_mode = #tpu.pipeline_mode<synchronous>, transform_indices = @transform_6, window_bounds = array<i64: 1, 32>}, {transform_indices = @transform_7, window_bounds = array<i64: 8, 2, 32>}, {transform_indices = @transform_8, window_bounds = array<i64: 8, 2, 32>}]} {
    %c0_i32 = arith.constant 0 : i32
    %0 = arith.cmpi eq, %arg0, %c0_i32 : i32
    %1 = arith.extui %0 : i1 to i32
    %c0_i32_0 = arith.constant 0 : i32
    %2 = arith.cmpi ne, %1, %c0_i32_0 : i32
    scf.if %2 {
      %cst_359 = arith.constant 0.000000e+00 : f32
      %863 = vector.broadcast %cst_359 : f32 to vector<2x32xf32>
      %c0_360 = arith.constant 0 : index
      %c0_361 = arith.constant 0 : index
      %864 = vector.load %arg10[%c0_360, %c0_361] : memref<2x32xf32, #tpu.memory_space<vmem>>, vector<2x32xf32>
      tpu.vector_store %arg10[%c0_360, %c0_361], %863 {strides = array<i32>} : memref<2x32xf32, #tpu.memory_space<vmem>>, vector<2x32xf32>,
      %cst_362 = arith.constant 0.000000e+00 : f32
      %865 = vector.broadcast %cst_362 : f32 to vector<2x32xf32>
      %c0_363 = arith.constant 0 : index
      %c0_364 = arith.constant 0 : index
      %866 = vector.load %arg11[%c0_363, %c0_364] : memref<2x32xf32, #tpu.memory_space<vmem>>, vector<2x32xf32>
      tpu.vector_store %arg11[%c0_363, %c0_364], %865 {strides = array<i32>} : memref<2x32xf32, #tpu.memory_space<vmem>>, vector<2x32xf32>,
    } else {
    }
    %c0 = arith.constant 0 : index
    %c0_1 = arith.constant 0 : index
    %3 = vector.load %arg1[%c0, %c0_1] : memref<2x1xi32, #tpu.memory_space<vmem>>, vector<2x1xi32>
    %c0_2 = arith.constant 0 : index
    %c0_3 = arith.constant 0 : index
    %c0_4 = arith.constant 0 : index
    %4 = vector.load %arg4[%c0_2, %c0_3, %c0_4] : memref<3x32x32xbf16, #tpu.memory_space<vmem>>, vector<3x32x32xbf16>
    %c0_5 = arith.constant 0 : index
    %c0_6 = arith.constant 0 : index
    %c0_7 = arith.constant 0 : index
    %5 = vector.load %arg5[%c0_5, %c0_6, %c0_7] : memref<3x32x32xbf16, #tpu.memory_space<vmem>>, vector<3x32x32xbf16>
    %c0_8 = arith.constant 0 : index
    %c0_9 = arith.constant 0 : index
    %6 = vector.load %arg6[%c0_8, %c0_9] : memref<1x32xf32, #tpu.memory_space<vmem>>, vector<1x32xf32>
    %c0_10 = arith.constant 0 : index
    %c0_11 = arith.constant 0 : index
    %7 = vector.load %arg7[%c0_10, %c0_11] : memref<1x32xf32, #tpu.memory_space<vmem>>, vector<1x32xf32>
    %c8_i32 = arith.constant 8 : i32
    %8 = arith.muli %arg0, %c8_i32 : i32
    %c1_i32 = arith.constant 1 : i32
    %9 = arith.subi %c1_i32, %arg0 : i32
    %c8_i32_12 = arith.constant 8 : i32
    %10 = arith.muli %9, %c8_i32_12 : i32
    %c0_13 = arith.constant 0 : index
    %c0_14 = arith.constant 0 : index
    %11 = vector.load %arg10[%c0_13, %c0_14] : memref<2x32xf32, #tpu.memory_space<vmem>>, vector<2x32xf32>
    %c0_15 = arith.constant 0 : index
    %c0_16 = arith.constant 0 : index
    %12 = vector.load %arg11[%c0_15, %c0_16] : memref<2x32xf32, #tpu.memory_space<vmem>>, vector<2x32xf32>
    %c0_17 = arith.constant 0 : index
    %c0_18 = arith.constant 0 : index
    %c0_19 = arith.constant 0 : index
    %c0_20 = arith.constant 0 : index
    %13 = vector.load %arg2[%c0_17, %c0_18, %c0_19, %c0_20] : memref<3x8x2x32xbf16, #tpu.memory_space<vmem>>, vector<1x1x2x32xbf16>
    %14 = vector.shape_cast %13 : vector<1x1x2x32xbf16> to vector<2x32xbf16>
    %c1 = arith.constant 1 : index
    %c0_21 = arith.constant 0 : index
    %c0_22 = arith.constant 0 : index
    %c0_23 = arith.constant 0 : index
    %15 = vector.load %arg2[%c1, %c0_21, %c0_22, %c0_23] : memref<3x8x2x32xbf16, #tpu.memory_space<vmem>>, vector<1x1x2x32xbf16>
    %16 = vector.shape_cast %15 : vector<1x1x2x32xbf16> to vector<2x32xbf16>
    %c2 = arith.constant 2 : index
    %c0_24 = arith.constant 0 : index
    %c0_25 = arith.constant 0 : index
    %c0_26 = arith.constant 0 : index
    %17 = vector.load %arg2[%c2, %c0_24, %c0_25, %c0_26] : memref<3x8x2x32xbf16, #tpu.memory_space<vmem>>, vector<1x1x2x32xbf16>
    %18 = vector.shape_cast %17 : vector<1x1x2x32xbf16> to vector<2x32xbf16>
    %19 = arith.truncf %11 : vector<2x32xf32> to vector<2x32xbf16>
    %20 = vector.extract_strided_slice %4 {offsets = [0, 0, 0], sizes = [1, 32, 32], strides = [1, 1, 1]} : vector<3x32x32xbf16> to vector<1x32x32xbf16>
    %21 = vector.shape_cast %20 : vector<1x32x32xbf16> to vector<32x32xbf16>
    %cst = arith.constant dense<0.000000e+00> : vector<2x32xf32>
    %22 = tpu.matmul %19, %21, %cst {dimension_numbers = #tpu.dot_dimension_numbers<[1], [0], [0], [1], [0, 0, 1, 1], [], []>} : vector<2x32xbf16>, vector<32x32xbf16>, vector<2x32xf32> -> vector<2x32xf32>
    %23 = vector.extract_strided_slice %4 {offsets = [1, 0, 0], sizes = [1, 32, 32], strides = [1, 1, 1]} : vector<3x32x32xbf16> to vector<1x32x32xbf16>
    %24 = vector.shape_cast %23 : vector<1x32x32xbf16> to vector<32x32xbf16>
    %cst_27 = arith.constant dense<0.000000e+00> : vector<2x32xf32>
    %25 = tpu.matmul %19, %24, %cst_27 {dimension_numbers = #tpu.dot_dimension_numbers<[1], [0], [0], [1], [0, 0, 1, 1], [], []>} : vector<2x32xbf16>, vector<32x32xbf16>, vector<2x32xf32> -> vector<2x32xf32>
    %26 = vector.extract_strided_slice %4 {offsets = [2, 0, 0], sizes = [1, 32, 32], strides = [1, 1, 1]} : vector<3x32x32xbf16> to vector<1x32x32xbf16>
    %27 = vector.shape_cast %26 : vector<1x32x32xbf16> to vector<32x32xbf16>
    %cst_28 = arith.constant dense<0.000000e+00> : vector<2x32xf32>
    %28 = tpu.matmul %19, %27, %cst_28 {dimension_numbers = #tpu.dot_dimension_numbers<[1], [0], [0], [1], [0, 0, 1, 1], [], []>} : vector<2x32xbf16>, vector<32x32xbf16>, vector<2x32xf32> -> vector<2x32xf32>
    %29 = arith.extf %14 : vector<2x32xbf16> to vector<2x32xf32>
    %30 = arith.addf %29, %22 : vector<2x32xf32>
    %31 = arith.negf %30 : vector<2x32xf32>
    %32 = math.exp %31 : vector<2x32xf32>
    %cst_29 = arith.constant 1.000000e+00 : f32
    %33 = vector.broadcast %cst_29 : f32 to vector<2x32xf32>
    %34 = arith.addf %33, %32 : vector<2x32xf32>
    %35 = arith.divf %33, %34 : vector<2x32xf32>
    %36 = arith.extf %16 : vector<2x32xbf16> to vector<2x32xf32>
    %37 = arith.addf %36, %25 : vector<2x32xf32>
    %38 = arith.negf %37 : vector<2x32xf32>
    %39 = math.exp %38 : vector<2x32xf32>
    %cst_30 = arith.constant 1.000000e+00 : f32
    %40 = vector.broadcast %cst_30 : f32 to vector<2x32xf32>
    %41 = arith.addf %40, %39 : vector<2x32xf32>
    %42 = arith.divf %40, %41 : vector<2x32xf32>
    %43 = arith.extf %18 : vector<2x32xbf16> to vector<2x32xf32>
    %44 = vector.broadcast %6 : vector<1x32xf32> to vector<2x32xf32>
    %45 = arith.addf %28, %44 : vector<2x32xf32>
    %46 = arith.mulf %35, %45 : vector<2x32xf32>
    %47 = arith.addf %43, %46 : vector<2x32xf32>
    %48 = math.tanh %47 : vector<2x32xf32>
    %49 = arith.subf %11, %48 : vector<2x32xf32>
    %50 = arith.mulf %42, %49 : vector<2x32xf32>
    %51 = arith.addf %48, %50 : vector<2x32xf32>
    %c0_i32_31 = arith.constant 0 : i32
    %52 = arith.addi %8, %c0_i32_31 : i32
    %53 = vector.broadcast %52 : i32 to vector<2x1xi32>
    %54 = arith.cmpi sgt, %3, %53 : vector<2x1xi32>
    %55 = vector.shape_cast %54 : vector<2x1xi1> to vector<2x1xi1>
    %56 = vector.broadcast %55 : vector<2x1xi1> to vector<2x32xi1>
    %57 = arith.select %56, %51, %11 : vector<2x32xi1>, vector<2x32xf32>
    %cst_32 = arith.constant 0.000000e+00 : f32
    %58 = vector.shape_cast %54 : vector<2x1xi1> to vector<2x1xi1>
    %59 = vector.broadcast %58 : vector<2x1xi1> to vector<2x32xi1>
    %60 = vector.broadcast %cst_32 : f32 to vector<2x32xf32>
    %61 = arith.select %59, %57, %60 : vector<2x32xi1>, vector<2x32xf32>
    %62 = arith.truncf %61 : vector<2x32xf32> to vector<2x32xbf16>
    %c0_33 = arith.constant 0 : index
    %c0_34 = arith.constant 0 : index
    %c0_35 = arith.constant 0 : index
    %63 = vector.load %arg8[%c0_33, %c0_34, %c0_35] : memref<8x2x32xbf16, #tpu.memory_space<vmem>>, vector<1x2x32xbf16>
    %64 = vector.shape_cast %63 : vector<1x2x32xbf16> to vector<2x32xbf16>
    %65 = vector.shape_cast %62 : vector<2x32xbf16> to vector<1x2x32xbf16>
    tpu.vector_store %arg8[%c0_33, %c0_34, %c0_35], %65 {strides = array<i32>} : memref<8x2x32xbf16, #tpu.memory_space<vmem>>, vector<1x2x32xbf16>,
    %c0_36 = arith.constant 0 : index
    %c7 = arith.constant 7 : index
    %c0_37 = arith.constant 0 : index
    %c0_38 = arith.constant 0 : index
    %66 = vector.load %arg3[%c0_36, %c7, %c0_37, %c0_38] : memref<3x8x2x32xbf16, #tpu.memory_space<vmem>>, vector<1x1x2x32xbf16>
    %67 = vector.shape_cast %66 : vector<1x1x2x32xbf16> to vector<2x32xbf16>
    %c1_39 = arith.constant 1 : index
    %c7_40 = arith.constant 7 : index
    %c0_41 = arith.constant 0 : index
    %c0_42 = arith.constant 0 : index
    %68 = vector.load %arg3[%c1_39, %c7_40, %c0_41, %c0_42] : memref<3x8x2x32xbf16, #tpu.memory_space<vmem>>, vector<1x1x2x32xbf16>
    %69 = vector.shape_cast %68 : vector<1x1x2x32xbf16> to vector<2x32xbf16>
    %c2_43 = arith.constant 2 : index
    %c7_44 = arith.constant 7 : index
    %c0_45 = arith.constant 0 : index
    %c0_46 = arith.constant 0 : index
    %70 = vector.load %arg3[%c2_43, %c7_44, %c0_45, %c0_46] : memref<3x8x2x32xbf16, #tpu.memory_space<vmem>>, vector<1x1x2x32xbf16>
    %71 = vector.shape_cast %70 : vector<1x1x2x32xbf16> to vector<2x32xbf16>
    %72 = arith.truncf %12 : vector<2x32xf32> to vector<2x32xbf16>
    %73 = vector.extract_strided_slice %5 {offsets = [0, 0, 0], sizes = [1, 32, 32], strides = [1, 1, 1]} : vector<3x32x32xbf16> to vector<1x32x32xbf16>
    %74 = vector.shape_cast %73 : vector<1x32x32xbf16> to vector<32x32xbf16>
    %cst_47 = arith.constant dense<0.000000e+00> : vector<2x32xf32>
    %75 = tpu.matmul %72, %74, %cst_47 {dimension_numbers = #tpu.dot_dimension_numbers<[1], [0], [0], [1], [0, 0, 1, 1], [], []>} : vector<2x32xbf16>, vector<32x32xbf16>, vector<2x32xf32> -> vector<2x32xf32>
    %76 = vector.extract_strided_slice %5 {offsets = [1, 0, 0], sizes = [1, 32, 32], strides = [1, 1, 1]} : vector<3x32x32xbf16> to vector<1x32x32xbf16>
    %77 = vector.shape_cast %76 : vector<1x32x32xbf16> to vector<32x32xbf16>
    %cst_48 = arith.constant dense<0.000000e+00> : vector<2x32xf32>
    %78 = tpu.matmul %72, %77, %cst_48 {dimension_numbers = #tpu.dot_dimension_numbers<[1], [0], [0], [1], [0, 0, 1, 1], [], []>} : vector<2x32xbf16>, vector<32x32xbf16>, vector<2x32xf32> -> vector<2x32xf32>
    %79 = vector.extract_strided_slice %5 {offsets = [2, 0, 0], sizes = [1, 32, 32], strides = [1, 1, 1]} : vector<3x32x32xbf16> to vector<1x32x32xbf16>
    %80 = vector.shape_cast %79 : vector<1x32x32xbf16> to vector<32x32xbf16>
    %cst_49 = arith.constant dense<0.000000e+00> : vector<2x32xf32>
    %81 = tpu.matmul %72, %80, %cst_49 {dimension_numbers = #tpu.dot_dimension_numbers<[1], [0], [0], [1], [0, 0, 1, 1], [], []>} : vector<2x32xbf16>, vector<32x32xbf16>, vector<2x32xf32> -> vector<2x32xf32>
    %82 = arith.extf %67 : vector<2x32xbf16> to vector<2x32xf32>
    %83 = arith.addf %82, %75 : vector<2x32xf32>
    %84 = arith.negf %83 : vector<2x32xf32>
    %85 = math.exp %84 : vector<2x32xf32>
    %cst_50 = arith.constant 1.000000e+00 : f32
    %86 = vector.broadcast %cst_50 : f32 to vector<2x32xf32>
    %87 = arith.addf %86, %85 : vector<2x32xf32>
    %88 = arith.divf %86, %87 : vector<2x32xf32>
    %89 = arith.extf %69 : vector<2x32xbf16> to vector<2x32xf32>
    %90 = arith.addf %89, %78 : vector<2x32xf32>
    %91 = arith.negf %90 : vector<2x32xf32>
    %92 = math.exp %91 : vector<2x32xf32>
    %cst_51 = arith.constant 1.000000e+00 : f32
    %93 = vector.broadcast %cst_51 : f32 to vector<2x32xf32>
    %94 = arith.addf %93, %92 : vector<2x32xf32>
    %95 = arith.divf %93, %94 : vector<2x32xf32>
    %96 = arith.extf %71 : vector<2x32xbf16> to vector<2x32xf32>
    %97 = vector.broadcast %7 : vector<1x32xf32> to vector<2x32xf32>
    %98 = arith.addf %81, %97 : vector<2x32xf32>
    %99 = arith.mulf %88, %98 : vector<2x32xf32>
    %100 = arith.addf %96, %99 : vector<2x32xf32>
    %101 = math.tanh %100 : vector<2x32xf32>
    %102 = arith.subf %12, %101 : vector<2x32xf32>
    %103 = arith.mulf %95, %102 : vector<2x32xf32>
    %104 = arith.addf %101, %103 : vector<2x32xf32>
    %c7_i32 = arith.constant 7 : i32
    %105 = arith.addi %10, %c7_i32 : i32
    %106 = vector.broadcast %105 : i32 to vector<2x1xi32>
    %107 = arith.cmpi sgt, %3, %106 : vector<2x1xi32>
    %108 = vector.shape_cast %107 : vector<2x1xi1> to vector<2x1xi1>
    %109 = vector.broadcast %108 : vector<2x1xi1> to vector<2x32xi1>
    %110 = arith.select %109, %104, %12 : vector<2x32xi1>, vector<2x32xf32>
    %cst_52 = arith.constant 0.000000e+00 : f32
    %111 = vector.shape_cast %107 : vector<2x1xi1> to vector<2x1xi1>
    %112 = vector.broadcast %111 : vector<2x1xi1> to vector<2x32xi1>
    %113 = vector.broadcast %cst_52 : f32 to vector<2x32xf32>
    %114 = arith.select %112, %110, %113 : vector<2x32xi1>, vector<2x32xf32>
    %115 = arith.truncf %114 : vector<2x32xf32> to vector<2x32xbf16>
    %c7_53 = arith.constant 7 : index
    %c0_54 = arith.constant 0 : index
    %c0_55 = arith.constant 0 : index
    %116 = vector.load %arg9[%c7_53, %c0_54, %c0_55] : memref<8x2x32xbf16, #tpu.memory_space<vmem>>, vector<1x2x32xbf16>
    %117 = vector.shape_cast %116 : vector<1x2x32xbf16> to vector<2x32xbf16>
    %118 = vector.shape_cast %115 : vector<2x32xbf16> to vector<1x2x32xbf16>
    tpu.vector_store %arg9[%c7_53, %c0_54, %c0_55], %118 {strides = array<i32>} : memref<8x2x32xbf16, #tpu.memory_space<vmem>>, vector<1x2x32xbf16>,
    %c0_56 = arith.constant 0 : index
    %c1_57 = arith.constant 1 : index
    %c0_58 = arith.constant 0 : index
    %c0_59 = arith.constant 0 : index
    %119 = vector.load %arg2[%c0_56, %c1_57, %c0_58, %c0_59] : memref<3x8x2x32xbf16, #tpu.memory_space<vmem>>, vector<1x1x2x32xbf16>
    %120 = vector.shape_cast %119 : vector<1x1x2x32xbf16> to vector<2x32xbf16>
    %c1_60 = arith.constant 1 : index
    %c1_61 = arith.constant 1 : index
    %c0_62 = arith.constant 0 : index
    %c0_63 = arith.constant 0 : index
    %121 = vector.load %arg2[%c1_60, %c1_61, %c0_62, %c0_63] : memref<3x8x2x32xbf16, #tpu.memory_space<vmem>>, vector<1x1x2x32xbf16>
    %122 = vector.shape_cast %121 : vector<1x1x2x32xbf16> to vector<2x32xbf16>
    %c2_64 = arith.constant 2 : index
    %c1_65 = arith.constant 1 : index
    %c0_66 = arith.constant 0 : index
    %c0_67 = arith.constant 0 : index
    %123 = vector.load %arg2[%c2_64, %c1_65, %c0_66, %c0_67] : memref<3x8x2x32xbf16, #tpu.memory_space<vmem>>, vector<1x1x2x32xbf16>
    %124 = vector.shape_cast %123 : vector<1x1x2x32xbf16> to vector<2x32xbf16>
    %125 = arith.truncf %57 : vector<2x32xf32> to vector<2x32xbf16>
    %126 = vector.extract_strided_slice %4 {offsets = [0, 0, 0], sizes = [1, 32, 32], strides = [1, 1, 1]} : vector<3x32x32xbf16> to vector<1x32x32xbf16>
    %127 = vector.shape_cast %126 : vector<1x32x32xbf16> to vector<32x32xbf16>
    %cst_68 = arith.constant dense<0.000000e+00> : vector<2x32xf32>
    %128 = tpu.matmul %125, %127, %cst_68 {dimension_numbers = #tpu.dot_dimension_numbers<[1], [0], [0], [1], [0, 0, 1, 1], [], []>} : vector<2x32xbf16>, vector<32x32xbf16>, vector<2x32xf32> -> vector<2x32xf32>
    %129 = vector.extract_strided_slice %4 {offsets = [1, 0, 0], sizes = [1, 32, 32], strides = [1, 1, 1]} : vector<3x32x32xbf16> to vector<1x32x32xbf16>
    %130 = vector.shape_cast %129 : vector<1x32x32xbf16> to vector<32x32xbf16>
    %cst_69 = arith.constant dense<0.000000e+00> : vector<2x32xf32>
    %131 = tpu.matmul %125, %130, %cst_69 {dimension_numbers = #tpu.dot_dimension_numbers<[1], [0], [0], [1], [0, 0, 1, 1], [], []>} : vector<2x32xbf16>, vector<32x32xbf16>, vector<2x32xf32> -> vector<2x32xf32>
    %132 = vector.extract_strided_slice %4 {offsets = [2, 0, 0], sizes = [1, 32, 32], strides = [1, 1, 1]} : vector<3x32x32xbf16> to vector<1x32x32xbf16>
    %133 = vector.shape_cast %132 : vector<1x32x32xbf16> to vector<32x32xbf16>
    %cst_70 = arith.constant dense<0.000000e+00> : vector<2x32xf32>
    %134 = tpu.matmul %125, %133, %cst_70 {dimension_numbers = #tpu.dot_dimension_numbers<[1], [0], [0], [1], [0, 0, 1, 1], [], []>} : vector<2x32xbf16>, vector<32x32xbf16>, vector<2x32xf32> -> vector<2x32xf32>
    %135 = arith.extf %120 : vector<2x32xbf16> to vector<2x32xf32>
    %136 = arith.addf %135, %128 : vector<2x32xf32>
    %137 = arith.negf %136 : vector<2x32xf32>
    %138 = math.exp %137 : vector<2x32xf32>
    %cst_71 = arith.constant 1.000000e+00 : f32
    %139 = vector.broadcast %cst_71 : f32 to vector<2x32xf32>
    %140 = arith.addf %139, %138 : vector<2x32xf32>
    %141 = arith.divf %139, %140 : vector<2x32xf32>
    %142 = arith.extf %122 : vector<2x32xbf16> to vector<2x32xf32>
    %143 = arith.addf %142, %131 : vector<2x32xf32>
    %144 = arith.negf %143 : vector<2x32xf32>
    %145 = math.exp %144 : vector<2x32xf32>
    %cst_72 = arith.constant 1.000000e+00 : f32
    %146 = vector.broadcast %cst_72 : f32 to vector<2x32xf32>
    %147 = arith.addf %146, %145 : vector<2x32xf32>
    %148 = arith.divf %146, %147 : vector<2x32xf32>
    %149 = arith.extf %124 : vector<2x32xbf16> to vector<2x32xf32>
    %150 = vector.broadcast %6 : vector<1x32xf32> to vector<2x32xf32>
    %151 = arith.addf %134, %150 : vector<2x32xf32>
    %152 = arith.mulf %141, %151 : vector<2x32xf32>
    %153 = arith.addf %149, %152 : vector<2x32xf32>
    %154 = math.tanh %153 : vector<2x32xf32>
    %155 = arith.subf %57, %154 : vector<2x32xf32>
    %156 = arith.mulf %148, %155 : vector<2x32xf32>
    %157 = arith.addf %154, %156 : vector<2x32xf32>
    %c1_i32_73 = arith.constant 1 : i32
    %158 = arith.addi %8, %c1_i32_73 : i32
    %159 = vector.broadcast %158 : i32 to vector<2x1xi32>
    %160 = arith.cmpi sgt, %3, %159 : vector<2x1xi32>
    %161 = vector.shape_cast %160 : vector<2x1xi1> to vector<2x1xi1>
    %162 = vector.broadcast %161 : vector<2x1xi1> to vector<2x32xi1>
    %163 = arith.select %162, %157, %57 : vector<2x32xi1>, vector<2x32xf32>
    %cst_74 = arith.constant 0.000000e+00 : f32
    %164 = vector.shape_cast %160 : vector<2x1xi1> to vector<2x1xi1>
    %165 = vector.broadcast %164 : vector<2x1xi1> to vector<2x32xi1>
    %166 = vector.broadcast %cst_74 : f32 to vector<2x32xf32>
    %167 = arith.select %165, %163, %166 : vector<2x32xi1>, vector<2x32xf32>
    %168 = arith.truncf %167 : vector<2x32xf32> to vector<2x32xbf16>
    %c1_75 = arith.constant 1 : index
    %c0_76 = arith.constant 0 : index
    %c0_77 = arith.constant 0 : index
    %169 = vector.load %arg8[%c1_75, %c0_76, %c0_77] : memref<8x2x32xbf16, #tpu.memory_space<vmem>>, vector<1x2x32xbf16>
    %170 = vector.shape_cast %169 : vector<1x2x32xbf16> to vector<2x32xbf16>
    %171 = vector.shape_cast %168 : vector<2x32xbf16> to vector<1x2x32xbf16>
    tpu.vector_store %arg8[%c1_75, %c0_76, %c0_77], %171 {strides = array<i32>} : memref<8x2x32xbf16, #tpu.memory_space<vmem>>, vector<1x2x32xbf16>,
    %c0_78 = arith.constant 0 : index
    %c6 = arith.constant 6 : index
    %c0_79 = arith.constant 0 : index
    %c0_80 = arith.constant 0 : index
    %172 = vector.load %arg3[%c0_78, %c6, %c0_79, %c0_80] : memref<3x8x2x32xbf16, #tpu.memory_space<vmem>>, vector<1x1x2x32xbf16>
    %173 = vector.shape_cast %172 : vector<1x1x2x32xbf16> to vector<2x32xbf16>
    %c1_81 = arith.constant 1 : index
    %c6_82 = arith.constant 6 : index
    %c0_83 = arith.constant 0 : index
    %c0_84 = arith.constant 0 : index
    %174 = vector.load %arg3[%c1_81, %c6_82, %c0_83, %c0_84] : memref<3x8x2x32xbf16, #tpu.memory_space<vmem>>, vector<1x1x2x32xbf16>
    %175 = vector.shape_cast %174 : vector<1x1x2x32xbf16> to vector<2x32xbf16>
    %c2_85 = arith.constant 2 : index
    %c6_86 = arith.constant 6 : index
    %c0_87 = arith.constant 0 : index
    %c0_88 = arith.constant 0 : index
    %176 = vector.load %arg3[%c2_85, %c6_86, %c0_87, %c0_88] : memref<3x8x2x32xbf16, #tpu.memory_space<vmem>>, vector<1x1x2x32xbf16>
    %177 = vector.shape_cast %176 : vector<1x1x2x32xbf16> to vector<2x32xbf16>
    %178 = arith.truncf %110 : vector<2x32xf32> to vector<2x32xbf16>
    %179 = vector.extract_strided_slice %5 {offsets = [0, 0, 0], sizes = [1, 32, 32], strides = [1, 1, 1]} : vector<3x32x32xbf16> to vector<1x32x32xbf16>
    %180 = vector.shape_cast %179 : vector<1x32x32xbf16> to vector<32x32xbf16>
    %cst_89 = arith.constant dense<0.000000e+00> : vector<2x32xf32>
    %181 = tpu.matmul %178, %180, %cst_89 {dimension_numbers = #tpu.dot_dimension_numbers<[1], [0], [0], [1], [0, 0, 1, 1], [], []>} : vector<2x32xbf16>, vector<32x32xbf16>, vector<2x32xf32> -> vector<2x32xf32>
    %182 = vector.extract_strided_slice %5 {offsets = [1, 0, 0], sizes = [1, 32, 32], strides = [1, 1, 1]} : vector<3x32x32xbf16> to vector<1x32x32xbf16>
    %183 = vector.shape_cast %182 : vector<1x32x32xbf16> to vector<32x32xbf16>
    %cst_90 = arith.constant dense<0.000000e+00> : vector<2x32xf32>
    %184 = tpu.matmul %178, %183, %cst_90 {dimension_numbers = #tpu.dot_dimension_numbers<[1], [0], [0], [1], [0, 0, 1, 1], [], []>} : vector<2x32xbf16>, vector<32x32xbf16>, vector<2x32xf32> -> vector<2x32xf32>
    %185 = vector.extract_strided_slice %5 {offsets = [2, 0, 0], sizes = [1, 32, 32], strides = [1, 1, 1]} : vector<3x32x32xbf16> to vector<1x32x32xbf16>
    %186 = vector.shape_cast %185 : vector<1x32x32xbf16> to vector<32x32xbf16>
    %cst_91 = arith.constant dense<0.000000e+00> : vector<2x32xf32>
    %187 = tpu.matmul %178, %186, %cst_91 {dimension_numbers = #tpu.dot_dimension_numbers<[1], [0], [0], [1], [0, 0, 1, 1], [], []>} : vector<2x32xbf16>, vector<32x32xbf16>, vector<2x32xf32> -> vector<2x32xf32>
    %188 = arith.extf %173 : vector<2x32xbf16> to vector<2x32xf32>
    %189 = arith.addf %188, %181 : vector<2x32xf32>
    %190 = arith.negf %189 : vector<2x32xf32>
    %191 = math.exp %190 : vector<2x32xf32>
    %cst_92 = arith.constant 1.000000e+00 : f32
    %192 = vector.broadcast %cst_92 : f32 to vector<2x32xf32>
    %193 = arith.addf %192, %191 : vector<2x32xf32>
    %194 = arith.divf %192, %193 : vector<2x32xf32>
    %195 = arith.extf %175 : vector<2x32xbf16> to vector<2x32xf32>
    %196 = arith.addf %195, %184 : vector<2x32xf32>
    %197 = arith.negf %196 : vector<2x32xf32>
    %198 = math.exp %197 : vector<2x32xf32>
    %cst_93 = arith.constant 1.000000e+00 : f32
    %199 = vector.broadcast %cst_93 : f32 to vector<2x32xf32>
    %200 = arith.addf %199, %198 : vector<2x32xf32>
    %201 = arith.divf %199, %200 : vector<2x32xf32>
    %202 = arith.extf %177 : vector<2x32xbf16> to vector<2x32xf32>
    %203 = vector.broadcast %7 : vector<1x32xf32> to vector<2x32xf32>
    %204 = arith.addf %187, %203 : vector<2x32xf32>
    %205 = arith.mulf %194, %204 : vector<2x32xf32>
    %206 = arith.addf %202, %205 : vector<2x32xf32>
    %207 = math.tanh %206 : vector<2x32xf32>
    %208 = arith.subf %110, %207 : vector<2x32xf32>
    %209 = arith.mulf %201, %208 : vector<2x32xf32>
    %210 = arith.addf %207, %209 : vector<2x32xf32>
    %c6_i32 = arith.constant 6 : i32
    %211 = arith.addi %10, %c6_i32 : i32
    %212 = vector.broadcast %211 : i32 to vector<2x1xi32>
    %213 = arith.cmpi sgt, %3, %212 : vector<2x1xi32>
    %214 = vector.shape_cast %213 : vector<2x1xi1> to vector<2x1xi1>
    %215 = vector.broadcast %214 : vector<2x1xi1> to vector<2x32xi1>
    %216 = arith.select %215, %210, %110 : vector<2x32xi1>, vector<2x32xf32>
    %cst_94 = arith.constant 0.000000e+00 : f32
    %217 = vector.shape_cast %213 : vector<2x1xi1> to vector<2x1xi1>
    %218 = vector.broadcast %217 : vector<2x1xi1> to vector<2x32xi1>
    %219 = vector.broadcast %cst_94 : f32 to vector<2x32xf32>
    %220 = arith.select %218, %216, %219 : vector<2x32xi1>, vector<2x32xf32>
    %221 = arith.truncf %220 : vector<2x32xf32> to vector<2x32xbf16>
    %c6_95 = arith.constant 6 : index
    %c0_96 = arith.constant 0 : index
    %c0_97 = arith.constant 0 : index
    %222 = vector.load %arg9[%c6_95, %c0_96, %c0_97] : memref<8x2x32xbf16, #tpu.memory_space<vmem>>, vector<1x2x32xbf16>
    %223 = vector.shape_cast %222 : vector<1x2x32xbf16> to vector<2x32xbf16>
    %224 = vector.shape_cast %221 : vector<2x32xbf16> to vector<1x2x32xbf16>
    tpu.vector_store %arg9[%c6_95, %c0_96, %c0_97], %224 {strides = array<i32>} : memref<8x2x32xbf16, #tpu.memory_space<vmem>>, vector<1x2x32xbf16>,
    %c0_98 = arith.constant 0 : index
    %c2_99 = arith.constant 2 : index
    %c0_100 = arith.constant 0 : index
    %c0_101 = arith.constant 0 : index
    %225 = vector.load %arg2[%c0_98, %c2_99, %c0_100, %c0_101] : memref<3x8x2x32xbf16, #tpu.memory_space<vmem>>, vector<1x1x2x32xbf16>
    %226 = vector.shape_cast %225 : vector<1x1x2x32xbf16> to vector<2x32xbf16>
    %c1_102 = arith.constant 1 : index
    %c2_103 = arith.constant 2 : index
    %c0_104 = arith.constant 0 : index
    %c0_105 = arith.constant 0 : index
    %227 = vector.load %arg2[%c1_102, %c2_103, %c0_104, %c0_105] : memref<3x8x2x32xbf16, #tpu.memory_space<vmem>>, vector<1x1x2x32xbf16>
    %228 = vector.shape_cast %227 : vector<1x1x2x32xbf16> to vector<2x32xbf16>
    %c2_106 = arith.constant 2 : index
    %c2_107 = arith.constant 2 : index
    %c0_108 = arith.constant 0 : index
    %c0_109 = arith.constant 0 : index
    %229 = vector.load %arg2[%c2_106, %c2_107, %c0_108, %c0_109] : memref<3x8x2x32xbf16, #tpu.memory_space<vmem>>, vector<1x1x2x32xbf16>
    %230 = vector.shape_cast %229 : vector<1x1x2x32xbf16> to vector<2x32xbf16>
    %231 = arith.truncf %163 : vector<2x32xf32> to vector<2x32xbf16>
    %232 = vector.extract_strided_slice %4 {offsets = [0, 0, 0], sizes = [1, 32, 32], strides = [1, 1, 1]} : vector<3x32x32xbf16> to vector<1x32x32xbf16>
    %233 = vector.shape_cast %232 : vector<1x32x32xbf16> to vector<32x32xbf16>
    %cst_110 = arith.constant dense<0.000000e+00> : vector<2x32xf32>
    %234 = tpu.matmul %231, %233, %cst_110 {dimension_numbers = #tpu.dot_dimension_numbers<[1], [0], [0], [1], [0, 0, 1, 1], [], []>} : vector<2x32xbf16>, vector<32x32xbf16>, vector<2x32xf32> -> vector<2x32xf32>
    %235 = vector.extract_strided_slice %4 {offsets = [1, 0, 0], sizes = [1, 32, 32], strides = [1, 1, 1]} : vector<3x32x32xbf16> to vector<1x32x32xbf16>
    %236 = vector.shape_cast %235 : vector<1x32x32xbf16> to vector<32x32xbf16>
    %cst_111 = arith.constant dense<0.000000e+00> : vector<2x32xf32>
    %237 = tpu.matmul %231, %236, %cst_111 {dimension_numbers = #tpu.dot_dimension_numbers<[1], [0], [0], [1], [0, 0, 1, 1], [], []>} : vector<2x32xbf16>, vector<32x32xbf16>, vector<2x32xf32> -> vector<2x32xf32>
    %238 = vector.extract_strided_slice %4 {offsets = [2, 0, 0], sizes = [1, 32, 32], strides = [1, 1, 1]} : vector<3x32x32xbf16> to vector<1x32x32xbf16>
    %239 = vector.shape_cast %238 : vector<1x32x32xbf16> to vector<32x32xbf16>
    %cst_112 = arith.constant dense<0.000000e+00> : vector<2x32xf32>
    %240 = tpu.matmul %231, %239, %cst_112 {dimension_numbers = #tpu.dot_dimension_numbers<[1], [0], [0], [1], [0, 0, 1, 1], [], []>} : vector<2x32xbf16>, vector<32x32xbf16>, vector<2x32xf32> -> vector<2x32xf32>
    %241 = arith.extf %226 : vector<2x32xbf16> to vector<2x32xf32>
    %242 = arith.addf %241, %234 : vector<2x32xf32>
    %243 = arith.negf %242 : vector<2x32xf32>
    %244 = math.exp %243 : vector<2x32xf32>
    %cst_113 = arith.constant 1.000000e+00 : f32
    %245 = vector.broadcast %cst_113 : f32 to vector<2x32xf32>
    %246 = arith.addf %245, %244 : vector<2x32xf32>
    %247 = arith.divf %245, %246 : vector<2x32xf32>
    %248 = arith.extf %228 : vector<2x32xbf16> to vector<2x32xf32>
    %249 = arith.addf %248, %237 : vector<2x32xf32>
    %250 = arith.negf %249 : vector<2x32xf32>
    %251 = math.exp %250 : vector<2x32xf32>
    %cst_114 = arith.constant 1.000000e+00 : f32
    %252 = vector.broadcast %cst_114 : f32 to vector<2x32xf32>
    %253 = arith.addf %252, %251 : vector<2x32xf32>
    %254 = arith.divf %252, %253 : vector<2x32xf32>
    %255 = arith.extf %230 : vector<2x32xbf16> to vector<2x32xf32>
    %256 = vector.broadcast %6 : vector<1x32xf32> to vector<2x32xf32>
    %257 = arith.addf %240, %256 : vector<2x32xf32>
    %258 = arith.mulf %247, %257 : vector<2x32xf32>
    %259 = arith.addf %255, %258 : vector<2x32xf32>
    %260 = math.tanh %259 : vector<2x32xf32>
    %261 = arith.subf %163, %260 : vector<2x32xf32>
    %262 = arith.mulf %254, %261 : vector<2x32xf32>
    %263 = arith.addf %260, %262 : vector<2x32xf32>
    %c2_i32 = arith.constant 2 : i32
    %264 = arith.addi %8, %c2_i32 : i32
    %265 = vector.broadcast %264 : i32 to vector<2x1xi32>
    %266 = arith.cmpi sgt, %3, %265 : vector<2x1xi32>
    %267 = vector.shape_cast %266 : vector<2x1xi1> to vector<2x1xi1>
    %268 = vector.broadcast %267 : vector<2x1xi1> to vector<2x32xi1>
    %269 = arith.select %268, %263, %163 : vector<2x32xi1>, vector<2x32xf32>
    %cst_115 = arith.constant 0.000000e+00 : f32
    %270 = vector.shape_cast %266 : vector<2x1xi1> to vector<2x1xi1>
    %271 = vector.broadcast %270 : vector<2x1xi1> to vector<2x32xi1>
    %272 = vector.broadcast %cst_115 : f32 to vector<2x32xf32>
    %273 = arith.select %271, %269, %272 : vector<2x32xi1>, vector<2x32xf32>
    %274 = arith.truncf %273 : vector<2x32xf32> to vector<2x32xbf16>
    %c2_116 = arith.constant 2 : index
    %c0_117 = arith.constant 0 : index
    %c0_118 = arith.constant 0 : index
    %275 = vector.load %arg8[%c2_116, %c0_117, %c0_118] : memref<8x2x32xbf16, #tpu.memory_space<vmem>>, vector<1x2x32xbf16>
    %276 = vector.shape_cast %275 : vector<1x2x32xbf16> to vector<2x32xbf16>
    %277 = vector.shape_cast %274 : vector<2x32xbf16> to vector<1x2x32xbf16>
    tpu.vector_store %arg8[%c2_116, %c0_117, %c0_118], %277 {strides = array<i32>} : memref<8x2x32xbf16, #tpu.memory_space<vmem>>, vector<1x2x32xbf16>,
    %c0_119 = arith.constant 0 : index
    %c5 = arith.constant 5 : index
    %c0_120 = arith.constant 0 : index
    %c0_121 = arith.constant 0 : index
    %278 = vector.load %arg3[%c0_119, %c5, %c0_120, %c0_121] : memref<3x8x2x32xbf16, #tpu.memory_space<vmem>>, vector<1x1x2x32xbf16>
    %279 = vector.shape_cast %278 : vector<1x1x2x32xbf16> to vector<2x32xbf16>
    %c1_122 = arith.constant 1 : index
    %c5_123 = arith.constant 5 : index
    %c0_124 = arith.constant 0 : index
    %c0_125 = arith.constant 0 : index
    %280 = vector.load %arg3[%c1_122, %c5_123, %c0_124, %c0_125] : memref<3x8x2x32xbf16, #tpu.memory_space<vmem>>, vector<1x1x2x32xbf16>
    %281 = vector.shape_cast %280 : vector<1x1x2x32xbf16> to vector<2x32xbf16>
    %c2_126 = arith.constant 2 : index
    %c5_127 = arith.constant 5 : index
    %c0_128 = arith.constant 0 : index
    %c0_129 = arith.constant 0 : index
    %282 = vector.load %arg3[%c2_126, %c5_127, %c0_128, %c0_129] : memref<3x8x2x32xbf16, #tpu.memory_space<vmem>>, vector<1x1x2x32xbf16>
    %283 = vector.shape_cast %282 : vector<1x1x2x32xbf16> to vector<2x32xbf16>
    %284 = arith.truncf %216 : vector<2x32xf32> to vector<2x32xbf16>
    %285 = vector.extract_strided_slice %5 {offsets = [0, 0, 0], sizes = [1, 32, 32], strides = [1, 1, 1]} : vector<3x32x32xbf16> to vector<1x32x32xbf16>
    %286 = vector.shape_cast %285 : vector<1x32x32xbf16> to vector<32x32xbf16>
    %cst_130 = arith.constant dense<0.000000e+00> : vector<2x32xf32>
    %287 = tpu.matmul %284, %286, %cst_130 {dimension_numbers = #tpu.dot_dimension_numbers<[1], [0], [0], [1], [0, 0, 1, 1], [], []>} : vector<2x32xbf16>, vector<32x32xbf16>, vector<2x32xf32> -> vector<2x32xf32>
    %288 = vector.extract_strided_slice %5 {offsets = [1, 0, 0], sizes = [1, 32, 32], strides = [1, 1, 1]} : vector<3x32x32xbf16> to vector<1x32x32xbf16>
    %289 = vector.shape_cast %288 : vector<1x32x32xbf16> to vector<32x32xbf16>
    %cst_131 = arith.constant dense<0.000000e+00> : vector<2x32xf32>
    %290 = tpu.matmul %284, %289, %cst_131 {dimension_numbers = #tpu.dot_dimension_numbers<[1], [0], [0], [1], [0, 0, 1, 1], [], []>} : vector<2x32xbf16>, vector<32x32xbf16>, vector<2x32xf32> -> vector<2x32xf32>
    %291 = vector.extract_strided_slice %5 {offsets = [2, 0, 0], sizes = [1, 32, 32], strides = [1, 1, 1]} : vector<3x32x32xbf16> to vector<1x32x32xbf16>
    %292 = vector.shape_cast %291 : vector<1x32x32xbf16> to vector<32x32xbf16>
    %cst_132 = arith.constant dense<0.000000e+00> : vector<2x32xf32>
    %293 = tpu.matmul %284, %292, %cst_132 {dimension_numbers = #tpu.dot_dimension_numbers<[1], [0], [0], [1], [0, 0, 1, 1], [], []>} : vector<2x32xbf16>, vector<32x32xbf16>, vector<2x32xf32> -> vector<2x32xf32>
    %294 = arith.extf %279 : vector<2x32xbf16> to vector<2x32xf32>
    %295 = arith.addf %294, %287 : vector<2x32xf32>
    %296 = arith.negf %295 : vector<2x32xf32>
    %297 = math.exp %296 : vector<2x32xf32>
    %cst_133 = arith.constant 1.000000e+00 : f32
    %298 = vector.broadcast %cst_133 : f32 to vector<2x32xf32>
    %299 = arith.addf %298, %297 : vector<2x32xf32>
    %300 = arith.divf %298, %299 : vector<2x32xf32>
    %301 = arith.extf %281 : vector<2x32xbf16> to vector<2x32xf32>
    %302 = arith.addf %301, %290 : vector<2x32xf32>
    %303 = arith.negf %302 : vector<2x32xf32>
    %304 = math.exp %303 : vector<2x32xf32>
    %cst_134 = arith.constant 1.000000e+00 : f32
    %305 = vector.broadcast %cst_134 : f32 to vector<2x32xf32>
    %306 = arith.addf %305, %304 : vector<2x32xf32>
    %307 = arith.divf %305, %306 : vector<2x32xf32>
    %308 = arith.extf %283 : vector<2x32xbf16> to vector<2x32xf32>
    %309 = vector.broadcast %7 : vector<1x32xf32> to vector<2x32xf32>
    %310 = arith.addf %293, %309 : vector<2x32xf32>
    %311 = arith.mulf %300, %310 : vector<2x32xf32>
    %312 = arith.addf %308, %311 : vector<2x32xf32>
    %313 = math.tanh %312 : vector<2x32xf32>
    %314 = arith.subf %216, %313 : vector<2x32xf32>
    %315 = arith.mulf %307, %314 : vector<2x32xf32>
    %316 = arith.addf %313, %315 : vector<2x32xf32>
    %c5_i32 = arith.constant 5 : i32
    %317 = arith.addi %10, %c5_i32 : i32
    %318 = vector.broadcast %317 : i32 to vector<2x1xi32>
    %319 = arith.cmpi sgt, %3, %318 : vector<2x1xi32>
    %320 = vector.shape_cast %319 : vector<2x1xi1> to vector<2x1xi1>
    %321 = vector.broadcast %320 : vector<2x1xi1> to vector<2x32xi1>
    %322 = arith.select %321, %316, %216 : vector<2x32xi1>, vector<2x32xf32>
    %cst_135 = arith.constant 0.000000e+00 : f32
    %323 = vector.shape_cast %319 : vector<2x1xi1> to vector<2x1xi1>
    %324 = vector.broadcast %323 : vector<2x1xi1> to vector<2x32xi1>
    %325 = vector.broadcast %cst_135 : f32 to vector<2x32xf32>
    %326 = arith.select %324, %322, %325 : vector<2x32xi1>, vector<2x32xf32>
    %327 = arith.truncf %326 : vector<2x32xf32> to vector<2x32xbf16>
    %c5_136 = arith.constant 5 : index
    %c0_137 = arith.constant 0 : index
    %c0_138 = arith.constant 0 : index
    %328 = vector.load %arg9[%c5_136, %c0_137, %c0_138] : memref<8x2x32xbf16, #tpu.memory_space<vmem>>, vector<1x2x32xbf16>
    %329 = vector.shape_cast %328 : vector<1x2x32xbf16> to vector<2x32xbf16>
    %330 = vector.shape_cast %327 : vector<2x32xbf16> to vector<1x2x32xbf16>
    tpu.vector_store %arg9[%c5_136, %c0_137, %c0_138], %330 {strides = array<i32>} : memref<8x2x32xbf16, #tpu.memory_space<vmem>>, vector<1x2x32xbf16>,
    %c0_139 = arith.constant 0 : index
    %c3 = arith.constant 3 : index
    %c0_140 = arith.constant 0 : index
    %c0_141 = arith.constant 0 : index
    %331 = vector.load %arg2[%c0_139, %c3, %c0_140, %c0_141] : memref<3x8x2x32xbf16, #tpu.memory_space<vmem>>, vector<1x1x2x32xbf16>
    %332 = vector.shape_cast %331 : vector<1x1x2x32xbf16> to vector<2x32xbf16>
    %c1_142 = arith.constant 1 : index
    %c3_143 = arith.constant 3 : index
    %c0_144 = arith.constant 0 : index
    %c0_145 = arith.constant 0 : index
    %333 = vector.load %arg2[%c1_142, %c3_143, %c0_144, %c0_145] : memref<3x8x2x32xbf16, #tpu.memory_space<vmem>>, vector<1x1x2x32xbf16>
    %334 = vector.shape_cast %333 : vector<1x1x2x32xbf16> to vector<2x32xbf16>
    %c2_146 = arith.constant 2 : index
    %c3_147 = arith.constant 3 : index
    %c0_148 = arith.constant 0 : index
    %c0_149 = arith.constant 0 : index
    %335 = vector.load %arg2[%c2_146, %c3_147, %c0_148, %c0_149] : memref<3x8x2x32xbf16, #tpu.memory_space<vmem>>, vector<1x1x2x32xbf16>
    %336 = vector.shape_cast %335 : vector<1x1x2x32xbf16> to vector<2x32xbf16>
    %337 = arith.truncf %269 : vector<2x32xf32> to vector<2x32xbf16>
    %338 = vector.extract_strided_slice %4 {offsets = [0, 0, 0], sizes = [1, 32, 32], strides = [1, 1, 1]} : vector<3x32x32xbf16> to vector<1x32x32xbf16>
    %339 = vector.shape_cast %338 : vector<1x32x32xbf16> to vector<32x32xbf16>
    %cst_150 = arith.constant dense<0.000000e+00> : vector<2x32xf32>
    %340 = tpu.matmul %337, %339, %cst_150 {dimension_numbers = #tpu.dot_dimension_numbers<[1], [0], [0], [1], [0, 0, 1, 1], [], []>} : vector<2x32xbf16>, vector<32x32xbf16>, vector<2x32xf32> -> vector<2x32xf32>
    %341 = vector.extract_strided_slice %4 {offsets = [1, 0, 0], sizes = [1, 32, 32], strides = [1, 1, 1]} : vector<3x32x32xbf16> to vector<1x32x32xbf16>
    %342 = vector.shape_cast %341 : vector<1x32x32xbf16> to vector<32x32xbf16>
    %cst_151 = arith.constant dense<0.000000e+00> : vector<2x32xf32>
    %343 = tpu.matmul %337, %342, %cst_151 {dimension_numbers = #tpu.dot_dimension_numbers<[1], [0], [0], [1], [0, 0, 1, 1], [], []>} : vector<2x32xbf16>, vector<32x32xbf16>, vector<2x32xf32> -> vector<2x32xf32>
    %344 = vector.extract_strided_slice %4 {offsets = [2, 0, 0], sizes = [1, 32, 32], strides = [1, 1, 1]} : vector<3x32x32xbf16> to vector<1x32x32xbf16>
    %345 = vector.shape_cast %344 : vector<1x32x32xbf16> to vector<32x32xbf16>
    %cst_152 = arith.constant dense<0.000000e+00> : vector<2x32xf32>
    %346 = tpu.matmul %337, %345, %cst_152 {dimension_numbers = #tpu.dot_dimension_numbers<[1], [0], [0], [1], [0, 0, 1, 1], [], []>} : vector<2x32xbf16>, vector<32x32xbf16>, vector<2x32xf32> -> vector<2x32xf32>
    %347 = arith.extf %332 : vector<2x32xbf16> to vector<2x32xf32>
    %348 = arith.addf %347, %340 : vector<2x32xf32>
    %349 = arith.negf %348 : vector<2x32xf32>
    %350 = math.exp %349 : vector<2x32xf32>
    %cst_153 = arith.constant 1.000000e+00 : f32
    %351 = vector.broadcast %cst_153 : f32 to vector<2x32xf32>
    %352 = arith.addf %351, %350 : vector<2x32xf32>
    %353 = arith.divf %351, %352 : vector<2x32xf32>
    %354 = arith.extf %334 : vector<2x32xbf16> to vector<2x32xf32>
    %355 = arith.addf %354, %343 : vector<2x32xf32>
    %356 = arith.negf %355 : vector<2x32xf32>
    %357 = math.exp %356 : vector<2x32xf32>
    %cst_154 = arith.constant 1.000000e+00 : f32
    %358 = vector.broadcast %cst_154 : f32 to vector<2x32xf32>
    %359 = arith.addf %358, %357 : vector<2x32xf32>
    %360 = arith.divf %358, %359 : vector<2x32xf32>
    %361 = arith.extf %336 : vector<2x32xbf16> to vector<2x32xf32>
    %362 = vector.broadcast %6 : vector<1x32xf32> to vector<2x32xf32>
    %363 = arith.addf %346, %362 : vector<2x32xf32>
    %364 = arith.mulf %353, %363 : vector<2x32xf32>
    %365 = arith.addf %361, %364 : vector<2x32xf32>
    %366 = math.tanh %365 : vector<2x32xf32>
    %367 = arith.subf %269, %366 : vector<2x32xf32>
    %368 = arith.mulf %360, %367 : vector<2x32xf32>
    %369 = arith.addf %366, %368 : vector<2x32xf32>
    %c3_i32 = arith.constant 3 : i32
    %370 = arith.addi %8, %c3_i32 : i32
    %371 = vector.broadcast %370 : i32 to vector<2x1xi32>
    %372 = arith.cmpi sgt, %3, %371 : vector<2x1xi32>
    %373 = vector.shape_cast %372 : vector<2x1xi1> to vector<2x1xi1>
    %374 = vector.broadcast %373 : vector<2x1xi1> to vector<2x32xi1>
    %375 = arith.select %374, %369, %269 : vector<2x32xi1>, vector<2x32xf32>
    %cst_155 = arith.constant 0.000000e+00 : f32
    %376 = vector.shape_cast %372 : vector<2x1xi1> to vector<2x1xi1>
    %377 = vector.broadcast %376 : vector<2x1xi1> to vector<2x32xi1>
    %378 = vector.broadcast %cst_155 : f32 to vector<2x32xf32>
    %379 = arith.select %377, %375, %378 : vector<2x32xi1>, vector<2x32xf32>
    %380 = arith.truncf %379 : vector<2x32xf32> to vector<2x32xbf16>
    %c3_156 = arith.constant 3 : index
    %c0_157 = arith.constant 0 : index
    %c0_158 = arith.constant 0 : index
    %381 = vector.load %arg8[%c3_156, %c0_157, %c0_158] : memref<8x2x32xbf16, #tpu.memory_space<vmem>>, vector<1x2x32xbf16>
    %382 = vector.shape_cast %381 : vector<1x2x32xbf16> to vector<2x32xbf16>
    %383 = vector.shape_cast %380 : vector<2x32xbf16> to vector<1x2x32xbf16>
    tpu.vector_store %arg8[%c3_156, %c0_157, %c0_158], %383 {strides = array<i32>} : memref<8x2x32xbf16, #tpu.memory_space<vmem>>, vector<1x2x32xbf16>,
    %c0_159 = arith.constant 0 : index
    %c4 = arith.constant 4 : index
    %c0_160 = arith.constant 0 : index
    %c0_161 = arith.constant 0 : index
    %384 = vector.load %arg3[%c0_159, %c4, %c0_160, %c0_161] : memref<3x8x2x32xbf16, #tpu.memory_space<vmem>>, vector<1x1x2x32xbf16>
    %385 = vector.shape_cast %384 : vector<1x1x2x32xbf16> to vector<2x32xbf16>
    %c1_162 = arith.constant 1 : index
    %c4_163 = arith.constant 4 : index
    %c0_164 = arith.constant 0 : index
    %c0_165 = arith.constant 0 : index
    %386 = vector.load %arg3[%c1_162, %c4_163, %c0_164, %c0_165] : memref<3x8x2x32xbf16, #tpu.memory_space<vmem>>, vector<1x1x2x32xbf16>
    %387 = vector.shape_cast %386 : vector<1x1x2x32xbf16> to vector<2x32xbf16>
    %c2_166 = arith.constant 2 : index
    %c4_167 = arith.constant 4 : index
    %c0_168 = arith.constant 0 : index
    %c0_169 = arith.constant 0 : index
    %388 = vector.load %arg3[%c2_166, %c4_167, %c0_168, %c0_169] : memref<3x8x2x32xbf16, #tpu.memory_space<vmem>>, vector<1x1x2x32xbf16>
    %389 = vector.shape_cast %388 : vector<1x1x2x32xbf16> to vector<2x32xbf16>
    %390 = arith.truncf %322 : vector<2x32xf32> to vector<2x32xbf16>
    %391 = vector.extract_strided_slice %5 {offsets = [0, 0, 0], sizes = [1, 32, 32], strides = [1, 1, 1]} : vector<3x32x32xbf16> to vector<1x32x32xbf16>
    %392 = vector.shape_cast %391 : vector<1x32x32xbf16> to vector<32x32xbf16>
    %cst_170 = arith.constant dense<0.000000e+00> : vector<2x32xf32>
    %393 = tpu.matmul %390, %392, %cst_170 {dimension_numbers = #tpu.dot_dimension_numbers<[1], [0], [0], [1], [0, 0, 1, 1], [], []>} : vector<2x32xbf16>, vector<32x32xbf16>, vector<2x32xf32> -> vector<2x32xf32>
    %394 = vector.extract_strided_slice %5 {offsets = [1, 0, 0], sizes = [1, 32, 32], strides = [1, 1, 1]} : vector<3x32x32xbf16> to vector<1x32x32xbf16>
    %395 = vector.shape_cast %394 : vector<1x32x32xbf16> to vector<32x32xbf16>
    %cst_171 = arith.constant dense<0.000000e+00> : vector<2x32xf32>
    %396 = tpu.matmul %390, %395, %cst_171 {dimension_numbers = #tpu.dot_dimension_numbers<[1], [0], [0], [1], [0, 0, 1, 1], [], []>} : vector<2x32xbf16>, vector<32x32xbf16>, vector<2x32xf32> -> vector<2x32xf32>
    %397 = vector.extract_strided_slice %5 {offsets = [2, 0, 0], sizes = [1, 32, 32], strides = [1, 1, 1]} : vector<3x32x32xbf16> to vector<1x32x32xbf16>
    %398 = vector.shape_cast %397 : vector<1x32x32xbf16> to vector<32x32xbf16>
    %cst_172 = arith.constant dense<0.000000e+00> : vector<2x32xf32>
    %399 = tpu.matmul %390, %398, %cst_172 {dimension_numbers = #tpu.dot_dimension_numbers<[1], [0], [0], [1], [0, 0, 1, 1], [], []>} : vector<2x32xbf16>, vector<32x32xbf16>, vector<2x32xf32> -> vector<2x32xf32>
    %400 = arith.extf %385 : vector<2x32xbf16> to vector<2x32xf32>
    %401 = arith.addf %400, %393 : vector<2x32xf32>
    %402 = arith.negf %401 : vector<2x32xf32>
    %403 = math.exp %402 : vector<2x32xf32>
    %cst_173 = arith.constant 1.000000e+00 : f32
    %404 = vector.broadcast %cst_173 : f32 to vector<2x32xf32>
    %405 = arith.addf %404, %403 : vector<2x32xf32>
    %406 = arith.divf %404, %405 : vector<2x32xf32>
    %407 = arith.extf %387 : vector<2x32xbf16> to vector<2x32xf32>
    %408 = arith.addf %407, %396 : vector<2x32xf32>
    %409 = arith.negf %408 : vector<2x32xf32>
    %410 = math.exp %409 : vector<2x32xf32>
    %cst_174 = arith.constant 1.000000e+00 : f32
    %411 = vector.broadcast %cst_174 : f32 to vector<2x32xf32>
    %412 = arith.addf %411, %410 : vector<2x32xf32>
    %413 = arith.divf %411, %412 : vector<2x32xf32>
    %414 = arith.extf %389 : vector<2x32xbf16> to vector<2x32xf32>
    %415 = vector.broadcast %7 : vector<1x32xf32> to vector<2x32xf32>
    %416 = arith.addf %399, %415 : vector<2x32xf32>
    %417 = arith.mulf %406, %416 : vector<2x32xf32>
    %418 = arith.addf %414, %417 : vector<2x32xf32>
    %419 = math.tanh %418 : vector<2x32xf32>
    %420 = arith.subf %322, %419 : vector<2x32xf32>
    %421 = arith.mulf %413, %420 : vector<2x32xf32>
    %422 = arith.addf %419, %421 : vector<2x32xf32>
    %c4_i32 = arith.constant 4 : i32
    %423 = arith.addi %10, %c4_i32 : i32
    %424 = vector.broadcast %423 : i32 to vector<2x1xi32>
    %425 = arith.cmpi sgt, %3, %424 : vector<2x1xi32>
    %426 = vector.shape_cast %425 : vector<2x1xi1> to vector<2x1xi1>
    %427 = vector.broadcast %426 : vector<2x1xi1> to vector<2x32xi1>
    %428 = arith.select %427, %422, %322 : vector<2x32xi1>, vector<2x32xf32>
    %cst_175 = arith.constant 0.000000e+00 : f32
    %429 = vector.shape_cast %425 : vector<2x1xi1> to vector<2x1xi1>
    %430 = vector.broadcast %429 : vector<2x1xi1> to vector<2x32xi1>
    %431 = vector.broadcast %cst_175 : f32 to vector<2x32xf32>
    %432 = arith.select %430, %428, %431 : vector<2x32xi1>, vector<2x32xf32>
    %433 = arith.truncf %432 : vector<2x32xf32> to vector<2x32xbf16>
    %c4_176 = arith.constant 4 : index
    %c0_177 = arith.constant 0 : index
    %c0_178 = arith.constant 0 : index
    %434 = vector.load %arg9[%c4_176, %c0_177, %c0_178] : memref<8x2x32xbf16, #tpu.memory_space<vmem>>, vector<1x2x32xbf16>
    %435 = vector.shape_cast %434 : vector<1x2x32xbf16> to vector<2x32xbf16>
    %436 = vector.shape_cast %433 : vector<2x32xbf16> to vector<1x2x32xbf16>
    tpu.vector_store %arg9[%c4_176, %c0_177, %c0_178], %436 {strides = array<i32>} : memref<8x2x32xbf16, #tpu.memory_space<vmem>>, vector<1x2x32xbf16>,
    %c0_179 = arith.constant 0 : index
    %c4_180 = arith.constant 4 : index
    %c0_181 = arith.constant 0 : index
    %c0_182 = arith.constant 0 : index
    %437 = vector.load %arg2[%c0_179, %c4_180, %c0_181, %c0_182] : memref<3x8x2x32xbf16, #tpu.memory_space<vmem>>, vector<1x1x2x32xbf16>
    %438 = vector.shape_cast %437 : vector<1x1x2x32xbf16> to vector<2x32xbf16>
    %c1_183 = arith.constant 1 : index
    %c4_184 = arith.constant 4 : index
    %c0_185 = arith.constant 0 : index
    %c0_186 = arith.constant 0 : index
    %439 = vector.load %arg2[%c1_183, %c4_184, %c0_185, %c0_186] : memref<3x8x2x32xbf16, #tpu.memory_space<vmem>>, vector<1x1x2x32xbf16>
    %440 = vector.shape_cast %439 : vector<1x1x2x32xbf16> to vector<2x32xbf16>
    %c2_187 = arith.constant 2 : index
    %c4_188 = arith.constant 4 : index
    %c0_189 = arith.constant 0 : index
    %c0_190 = arith.constant 0 : index
    %441 = vector.load %arg2[%c2_187, %c4_188, %c0_189, %c0_190] : memref<3x8x2x32xbf16, #tpu.memory_space<vmem>>, vector<1x1x2x32xbf16>
    %442 = vector.shape_cast %441 : vector<1x1x2x32xbf16> to vector<2x32xbf16>
    %443 = arith.truncf %375 : vector<2x32xf32> to vector<2x32xbf16>
    %444 = vector.extract_strided_slice %4 {offsets = [0, 0, 0], sizes = [1, 32, 32], strides = [1, 1, 1]} : vector<3x32x32xbf16> to vector<1x32x32xbf16>
    %445 = vector.shape_cast %444 : vector<1x32x32xbf16> to vector<32x32xbf16>
    %cst_191 = arith.constant dense<0.000000e+00> : vector<2x32xf32>
    %446 = tpu.matmul %443, %445, %cst_191 {dimension_numbers = #tpu.dot_dimension_numbers<[1], [0], [0], [1], [0, 0, 1, 1], [], []>} : vector<2x32xbf16>, vector<32x32xbf16>, vector<2x32xf32> -> vector<2x32xf32>
    %447 = vector.extract_strided_slice %4 {offsets = [1, 0, 0], sizes = [1, 32, 32], strides = [1, 1, 1]} : vector<3x32x32xbf16> to vector<1x32x32xbf16>
    %448 = vector.shape_cast %447 : vector<1x32x32xbf16> to vector<32x32xbf16>
    %cst_192 = arith.constant dense<0.000000e+00> : vector<2x32xf32>
    %449 = tpu.matmul %443, %448, %cst_192 {dimension_numbers = #tpu.dot_dimension_numbers<[1], [0], [0], [1], [0, 0, 1, 1], [], []>} : vector<2x32xbf16>, vector<32x32xbf16>, vector<2x32xf32> -> vector<2x32xf32>
    %450 = vector.extract_strided_slice %4 {offsets = [2, 0, 0], sizes = [1, 32, 32], strides = [1, 1, 1]} : vector<3x32x32xbf16> to vector<1x32x32xbf16>
    %451 = vector.shape_cast %450 : vector<1x32x32xbf16> to vector<32x32xbf16>
    %cst_193 = arith.constant dense<0.000000e+00> : vector<2x32xf32>
    %452 = tpu.matmul %443, %451, %cst_193 {dimension_numbers = #tpu.dot_dimension_numbers<[1], [0], [0], [1], [0, 0, 1, 1], [], []>} : vector<2x32xbf16>, vector<32x32xbf16>, vector<2x32xf32> -> vector<2x32xf32>
    %453 = arith.extf %438 : vector<2x32xbf16> to vector<2x32xf32>
    %454 = arith.addf %453, %446 : vector<2x32xf32>
    %455 = arith.negf %454 : vector<2x32xf32>
    %456 = math.exp %455 : vector<2x32xf32>
    %cst_194 = arith.constant 1.000000e+00 : f32
    %457 = vector.broadcast %cst_194 : f32 to vector<2x32xf32>
    %458 = arith.addf %457, %456 : vector<2x32xf32>
    %459 = arith.divf %457, %458 : vector<2x32xf32>
    %460 = arith.extf %440 : vector<2x32xbf16> to vector<2x32xf32>
    %461 = arith.addf %460, %449 : vector<2x32xf32>
    %462 = arith.negf %461 : vector<2x32xf32>
    %463 = math.exp %462 : vector<2x32xf32>
    %cst_195 = arith.constant 1.000000e+00 : f32
    %464 = vector.broadcast %cst_195 : f32 to vector<2x32xf32>
    %465 = arith.addf %464, %463 : vector<2x32xf32>
    %466 = arith.divf %464, %465 : vector<2x32xf32>
    %467 = arith.extf %442 : vector<2x32xbf16> to vector<2x32xf32>
    %468 = vector.broadcast %6 : vector<1x32xf32> to vector<2x32xf32>
    %469 = arith.addf %452, %468 : vector<2x32xf32>
    %470 = arith.mulf %459, %469 : vector<2x32xf32>
    %471 = arith.addf %467, %470 : vector<2x32xf32>
    %472 = math.tanh %471 : vector<2x32xf32>
    %473 = arith.subf %375, %472 : vector<2x32xf32>
    %474 = arith.mulf %466, %473 : vector<2x32xf32>
    %475 = arith.addf %472, %474 : vector<2x32xf32>
    %c4_i32_196 = arith.constant 4 : i32
    %476 = arith.addi %8, %c4_i32_196 : i32
    %477 = vector.broadcast %476 : i32 to vector<2x1xi32>
    %478 = arith.cmpi sgt, %3, %477 : vector<2x1xi32>
    %479 = vector.shape_cast %478 : vector<2x1xi1> to vector<2x1xi1>
    %480 = vector.broadcast %479 : vector<2x1xi1> to vector<2x32xi1>
    %481 = arith.select %480, %475, %375 : vector<2x32xi1>, vector<2x32xf32>
    %cst_197 = arith.constant 0.000000e+00 : f32
    %482 = vector.shape_cast %478 : vector<2x1xi1> to vector<2x1xi1>
    %483 = vector.broadcast %482 : vector<2x1xi1> to vector<2x32xi1>
    %484 = vector.broadcast %cst_197 : f32 to vector<2x32xf32>
    %485 = arith.select %483, %481, %484 : vector<2x32xi1>, vector<2x32xf32>
    %486 = arith.truncf %485 : vector<2x32xf32> to vector<2x32xbf16>
    %c4_198 = arith.constant 4 : index
    %c0_199 = arith.constant 0 : index
    %c0_200 = arith.constant 0 : index
    %487 = vector.load %arg8[%c4_198, %c0_199, %c0_200] : memref<8x2x32xbf16, #tpu.memory_space<vmem>>, vector<1x2x32xbf16>
    %488 = vector.shape_cast %487 : vector<1x2x32xbf16> to vector<2x32xbf16>
    %489 = vector.shape_cast %486 : vector<2x32xbf16> to vector<1x2x32xbf16>
    tpu.vector_store %arg8[%c4_198, %c0_199, %c0_200], %489 {strides = array<i32>} : memref<8x2x32xbf16, #tpu.memory_space<vmem>>, vector<1x2x32xbf16>,
    %c0_201 = arith.constant 0 : index
    %c3_202 = arith.constant 3 : index
    %c0_203 = arith.constant 0 : index
    %c0_204 = arith.constant 0 : index
    %490 = vector.load %arg3[%c0_201, %c3_202, %c0_203, %c0_204] : memref<3x8x2x32xbf16, #tpu.memory_space<vmem>>, vector<1x1x2x32xbf16>
    %491 = vector.shape_cast %490 : vector<1x1x2x32xbf16> to vector<2x32xbf16>
    %c1_205 = arith.constant 1 : index
    %c3_206 = arith.constant 3 : index
    %c0_207 = arith.constant 0 : index
    %c0_208 = arith.constant 0 : index
    %492 = vector.load %arg3[%c1_205, %c3_206, %c0_207, %c0_208] : memref<3x8x2x32xbf16, #tpu.memory_space<vmem>>, vector<1x1x2x32xbf16>
    %493 = vector.shape_cast %492 : vector<1x1x2x32xbf16> to vector<2x32xbf16>
    %c2_209 = arith.constant 2 : index
    %c3_210 = arith.constant 3 : index
    %c0_211 = arith.constant 0 : index
    %c0_212 = arith.constant 0 : index
    %494 = vector.load %arg3[%c2_209, %c3_210, %c0_211, %c0_212] : memref<3x8x2x32xbf16, #tpu.memory_space<vmem>>, vector<1x1x2x32xbf16>
    %495 = vector.shape_cast %494 : vector<1x1x2x32xbf16> to vector<2x32xbf16>
    %496 = arith.truncf %428 : vector<2x32xf32> to vector<2x32xbf16>
    %497 = vector.extract_strided_slice %5 {offsets = [0, 0, 0], sizes = [1, 32, 32], strides = [1, 1, 1]} : vector<3x32x32xbf16> to vector<1x32x32xbf16>
    %498 = vector.shape_cast %497 : vector<1x32x32xbf16> to vector<32x32xbf16>
    %cst_213 = arith.constant dense<0.000000e+00> : vector<2x32xf32>
    %499 = tpu.matmul %496, %498, %cst_213 {dimension_numbers = #tpu.dot_dimension_numbers<[1], [0], [0], [1], [0, 0, 1, 1], [], []>} : vector<2x32xbf16>, vector<32x32xbf16>, vector<2x32xf32> -> vector<2x32xf32>
    %500 = vector.extract_strided_slice %5 {offsets = [1, 0, 0], sizes = [1, 32, 32], strides = [1, 1, 1]} : vector<3x32x32xbf16> to vector<1x32x32xbf16>
    %501 = vector.shape_cast %500 : vector<1x32x32xbf16> to vector<32x32xbf16>
    %cst_214 = arith.constant dense<0.000000e+00> : vector<2x32xf32>
    %502 = tpu.matmul %496, %501, %cst_214 {dimension_numbers = #tpu.dot_dimension_numbers<[1], [0], [0], [1], [0, 0, 1, 1], [], []>} : vector<2x32xbf16>, vector<32x32xbf16>, vector<2x32xf32> -> vector<2x32xf32>
    %503 = vector.extract_strided_slice %5 {offsets = [2, 0, 0], sizes = [1, 32, 32], strides = [1, 1, 1]} : vector<3x32x32xbf16> to vector<1x32x32xbf16>
    %504 = vector.shape_cast %503 : vector<1x32x32xbf16> to vector<32x32xbf16>
    %cst_215 = arith.constant dense<0.000000e+00> : vector<2x32xf32>
    %505 = tpu.matmul %496, %504, %cst_215 {dimension_numbers = #tpu.dot_dimension_numbers<[1], [0], [0], [1], [0, 0, 1, 1], [], []>} : vector<2x32xbf16>, vector<32x32xbf16>, vector<2x32xf32> -> vector<2x32xf32>
    %506 = arith.extf %491 : vector<2x32xbf16> to vector<2x32xf32>
    %507 = arith.addf %506, %499 : vector<2x32xf32>
    %508 = arith.negf %507 : vector<2x32xf32>
    %509 = math.exp %508 : vector<2x32xf32>
    %cst_216 = arith.constant 1.000000e+00 : f32
    %510 = vector.broadcast %cst_216 : f32 to vector<2x32xf32>
    %511 = arith.addf %510, %509 : vector<2x32xf32>
    %512 = arith.divf %510, %511 : vector<2x32xf32>
    %513 = arith.extf %493 : vector<2x32xbf16> to vector<2x32xf32>
    %514 = arith.addf %513, %502 : vector<2x32xf32>
    %515 = arith.negf %514 : vector<2x32xf32>
    %516 = math.exp %515 : vector<2x32xf32>
    %cst_217 = arith.constant 1.000000e+00 : f32
    %517 = vector.broadcast %cst_217 : f32 to vector<2x32xf32>
    %518 = arith.addf %517, %516 : vector<2x32xf32>
    %519 = arith.divf %517, %518 : vector<2x32xf32>
    %520 = arith.extf %495 : vector<2x32xbf16> to vector<2x32xf32>
    %521 = vector.broadcast %7 : vector<1x32xf32> to vector<2x32xf32>
    %522 = arith.addf %505, %521 : vector<2x32xf32>
    %523 = arith.mulf %512, %522 : vector<2x32xf32>
    %524 = arith.addf %520, %523 : vector<2x32xf32>
    %525 = math.tanh %524 : vector<2x32xf32>
    %526 = arith.subf %428, %525 : vector<2x32xf32>
    %527 = arith.mulf %519, %526 : vector<2x32xf32>
    %528 = arith.addf %525, %527 : vector<2x32xf32>
    %c3_i32_218 = arith.constant 3 : i32
    %529 = arith.addi %10, %c3_i32_218 : i32
    %530 = vector.broadcast %529 : i32 to vector<2x1xi32>
    %531 = arith.cmpi sgt, %3, %530 : vector<2x1xi32>
    %532 = vector.shape_cast %531 : vector<2x1xi1> to vector<2x1xi1>
    %533 = vector.broadcast %532 : vector<2x1xi1> to vector<2x32xi1>
    %534 = arith.select %533, %528, %428 : vector<2x32xi1>, vector<2x32xf32>
    %cst_219 = arith.constant 0.000000e+00 : f32
    %535 = vector.shape_cast %531 : vector<2x1xi1> to vector<2x1xi1>
    %536 = vector.broadcast %535 : vector<2x1xi1> to vector<2x32xi1>
    %537 = vector.broadcast %cst_219 : f32 to vector<2x32xf32>
    %538 = arith.select %536, %534, %537 : vector<2x32xi1>, vector<2x32xf32>
    %539 = arith.truncf %538 : vector<2x32xf32> to vector<2x32xbf16>
    %c3_220 = arith.constant 3 : index
    %c0_221 = arith.constant 0 : index
    %c0_222 = arith.constant 0 : index
    %540 = vector.load %arg9[%c3_220, %c0_221, %c0_222] : memref<8x2x32xbf16, #tpu.memory_space<vmem>>, vector<1x2x32xbf16>
    %541 = vector.shape_cast %540 : vector<1x2x32xbf16> to vector<2x32xbf16>
    %542 = vector.shape_cast %539 : vector<2x32xbf16> to vector<1x2x32xbf16>
    tpu.vector_store %arg9[%c3_220, %c0_221, %c0_222], %542 {strides = array<i32>} : memref<8x2x32xbf16, #tpu.memory_space<vmem>>, vector<1x2x32xbf16>,
    %c0_223 = arith.constant 0 : index
    %c5_224 = arith.constant 5 : index
    %c0_225 = arith.constant 0 : index
    %c0_226 = arith.constant 0 : index
    %543 = vector.load %arg2[%c0_223, %c5_224, %c0_225, %c0_226] : memref<3x8x2x32xbf16, #tpu.memory_space<vmem>>, vector<1x1x2x32xbf16>
    %544 = vector.shape_cast %543 : vector<1x1x2x32xbf16> to vector<2x32xbf16>
    %c1_227 = arith.constant 1 : index
    %c5_228 = arith.constant 5 : index
    %c0_229 = arith.constant 0 : index
    %c0_230 = arith.constant 0 : index
    %545 = vector.load %arg2[%c1_227, %c5_228, %c0_229, %c0_230] : memref<3x8x2x32xbf16, #tpu.memory_space<vmem>>, vector<1x1x2x32xbf16>
    %546 = vector.shape_cast %545 : vector<1x1x2x32xbf16> to vector<2x32xbf16>
    %c2_231 = arith.constant 2 : index
    %c5_232 = arith.constant 5 : index
    %c0_233 = arith.constant 0 : index
    %c0_234 = arith.constant 0 : index
    %547 = vector.load %arg2[%c2_231, %c5_232, %c0_233, %c0_234] : memref<3x8x2x32xbf16, #tpu.memory_space<vmem>>, vector<1x1x2x32xbf16>
    %548 = vector.shape_cast %547 : vector<1x1x2x32xbf16> to vector<2x32xbf16>
    %549 = arith.truncf %481 : vector<2x32xf32> to vector<2x32xbf16>
    %550 = vector.extract_strided_slice %4 {offsets = [0, 0, 0], sizes = [1, 32, 32], strides = [1, 1, 1]} : vector<3x32x32xbf16> to vector<1x32x32xbf16>
    %551 = vector.shape_cast %550 : vector<1x32x32xbf16> to vector<32x32xbf16>
    %cst_235 = arith.constant dense<0.000000e+00> : vector<2x32xf32>
    %552 = tpu.matmul %549, %551, %cst_235 {dimension_numbers = #tpu.dot_dimension_numbers<[1], [0], [0], [1], [0, 0, 1, 1], [], []>} : vector<2x32xbf16>, vector<32x32xbf16>, vector<2x32xf32> -> vector<2x32xf32>
    %553 = vector.extract_strided_slice %4 {offsets = [1, 0, 0], sizes = [1, 32, 32], strides = [1, 1, 1]} : vector<3x32x32xbf16> to vector<1x32x32xbf16>
    %554 = vector.shape_cast %553 : vector<1x32x32xbf16> to vector<32x32xbf16>
    %cst_236 = arith.constant dense<0.000000e+00> : vector<2x32xf32>
    %555 = tpu.matmul %549, %554, %cst_236 {dimension_numbers = #tpu.dot_dimension_numbers<[1], [0], [0], [1], [0, 0, 1, 1], [], []>} : vector<2x32xbf16>, vector<32x32xbf16>, vector<2x32xf32> -> vector<2x32xf32>
    %556 = vector.extract_strided_slice %4 {offsets = [2, 0, 0], sizes = [1, 32, 32], strides = [1, 1, 1]} : vector<3x32x32xbf16> to vector<1x32x32xbf16>
    %557 = vector.shape_cast %556 : vector<1x32x32xbf16> to vector<32x32xbf16>
    %cst_237 = arith.constant dense<0.000000e+00> : vector<2x32xf32>
    %558 = tpu.matmul %549, %557, %cst_237 {dimension_numbers = #tpu.dot_dimension_numbers<[1], [0], [0], [1], [0, 0, 1, 1], [], []>} : vector<2x32xbf16>, vector<32x32xbf16>, vector<2x32xf32> -> vector<2x32xf32>
    %559 = arith.extf %544 : vector<2x32xbf16> to vector<2x32xf32>
    %560 = arith.addf %559, %552 : vector<2x32xf32>
    %561 = arith.negf %560 : vector<2x32xf32>
    %562 = math.exp %561 : vector<2x32xf32>
    %cst_238 = arith.constant 1.000000e+00 : f32
    %563 = vector.broadcast %cst_238 : f32 to vector<2x32xf32>
    %564 = arith.addf %563, %562 : vector<2x32xf32>
    %565 = arith.divf %563, %564 : vector<2x32xf32>
    %566 = arith.extf %546 : vector<2x32xbf16> to vector<2x32xf32>
    %567 = arith.addf %566, %555 : vector<2x32xf32>
    %568 = arith.negf %567 : vector<2x32xf32>
    %569 = math.exp %568 : vector<2x32xf32>
    %cst_239 = arith.constant 1.000000e+00 : f32
    %570 = vector.broadcast %cst_239 : f32 to vector<2x32xf32>
    %571 = arith.addf %570, %569 : vector<2x32xf32>
    %572 = arith.divf %570, %571 : vector<2x32xf32>
    %573 = arith.extf %548 : vector<2x32xbf16> to vector<2x32xf32>
    %574 = vector.broadcast %6 : vector<1x32xf32> to vector<2x32xf32>
    %575 = arith.addf %558, %574 : vector<2x32xf32>
    %576 = arith.mulf %565, %575 : vector<2x32xf32>
    %577 = arith.addf %573, %576 : vector<2x32xf32>
    %578 = math.tanh %577 : vector<2x32xf32>
    %579 = arith.subf %481, %578 : vector<2x32xf32>
    %580 = arith.mulf %572, %579 : vector<2x32xf32>
    %581 = arith.addf %578, %580 : vector<2x32xf32>
    %c5_i32_240 = arith.constant 5 : i32
    %582 = arith.addi %8, %c5_i32_240 : i32
    %583 = vector.broadcast %582 : i32 to vector<2x1xi32>
    %584 = arith.cmpi sgt, %3, %583 : vector<2x1xi32>
    %585 = vector.shape_cast %584 : vector<2x1xi1> to vector<2x1xi1>
    %586 = vector.broadcast %585 : vector<2x1xi1> to vector<2x32xi1>
    %587 = arith.select %586, %581, %481 : vector<2x32xi1>, vector<2x32xf32>
    %cst_241 = arith.constant 0.000000e+00 : f32
    %588 = vector.shape_cast %584 : vector<2x1xi1> to vector<2x1xi1>
    %589 = vector.broadcast %588 : vector<2x1xi1> to vector<2x32xi1>
    %590 = vector.broadcast %cst_241 : f32 to vector<2x32xf32>
    %591 = arith.select %589, %587, %590 : vector<2x32xi1>, vector<2x32xf32>
    %592 = arith.truncf %591 : vector<2x32xf32> to vector<2x32xbf16>
    %c5_242 = arith.constant 5 : index
    %c0_243 = arith.constant 0 : index
    %c0_244 = arith.constant 0 : index
    %593 = vector.load %arg8[%c5_242, %c0_243, %c0_244] : memref<8x2x32xbf16, #tpu.memory_space<vmem>>, vector<1x2x32xbf16>
    %594 = vector.shape_cast %593 : vector<1x2x32xbf16> to vector<2x32xbf16>
    %595 = vector.shape_cast %592 : vector<2x32xbf16> to vector<1x2x32xbf16>
    tpu.vector_store %arg8[%c5_242, %c0_243, %c0_244], %595 {strides = array<i32>} : memref<8x2x32xbf16, #tpu.memory_space<vmem>>, vector<1x2x32xbf16>,
    %c0_245 = arith.constant 0 : index
    %c2_246 = arith.constant 2 : index
    %c0_247 = arith.constant 0 : index
    %c0_248 = arith.constant 0 : index
    %596 = vector.load %arg3[%c0_245, %c2_246, %c0_247, %c0_248] : memref<3x8x2x32xbf16, #tpu.memory_space<vmem>>, vector<1x1x2x32xbf16>
    %597 = vector.shape_cast %596 : vector<1x1x2x32xbf16> to vector<2x32xbf16>
    %c1_249 = arith.constant 1 : index
    %c2_250 = arith.constant 2 : index
    %c0_251 = arith.constant 0 : index
    %c0_252 = arith.constant 0 : index
    %598 = vector.load %arg3[%c1_249, %c2_250, %c0_251, %c0_252] : memref<3x8x2x32xbf16, #tpu.memory_space<vmem>>, vector<1x1x2x32xbf16>
    %599 = vector.shape_cast %598 : vector<1x1x2x32xbf16> to vector<2x32xbf16>
    %c2_253 = arith.constant 2 : index
    %c2_254 = arith.constant 2 : index
    %c0_255 = arith.constant 0 : index
    %c0_256 = arith.constant 0 : index
    %600 = vector.load %arg3[%c2_253, %c2_254, %c0_255, %c0_256] : memref<3x8x2x32xbf16, #tpu.memory_space<vmem>>, vector<1x1x2x32xbf16>
    %601 = vector.shape_cast %600 : vector<1x1x2x32xbf16> to vector<2x32xbf16>
    %602 = arith.truncf %534 : vector<2x32xf32> to vector<2x32xbf16>
    %603 = vector.extract_strided_slice %5 {offsets = [0, 0, 0], sizes = [1, 32, 32], strides = [1, 1, 1]} : vector<3x32x32xbf16> to vector<1x32x32xbf16>
    %604 = vector.shape_cast %603 : vector<1x32x32xbf16> to vector<32x32xbf16>
    %cst_257 = arith.constant dense<0.000000e+00> : vector<2x32xf32>
    %605 = tpu.matmul %602, %604, %cst_257 {dimension_numbers = #tpu.dot_dimension_numbers<[1], [0], [0], [1], [0, 0, 1, 1], [], []>} : vector<2x32xbf16>, vector<32x32xbf16>, vector<2x32xf32> -> vector<2x32xf32>
    %606 = vector.extract_strided_slice %5 {offsets = [1, 0, 0], sizes = [1, 32, 32], strides = [1, 1, 1]} : vector<3x32x32xbf16> to vector<1x32x32xbf16>
    %607 = vector.shape_cast %606 : vector<1x32x32xbf16> to vector<32x32xbf16>
    %cst_258 = arith.constant dense<0.000000e+00> : vector<2x32xf32>
    %608 = tpu.matmul %602, %607, %cst_258 {dimension_numbers = #tpu.dot_dimension_numbers<[1], [0], [0], [1], [0, 0, 1, 1], [], []>} : vector<2x32xbf16>, vector<32x32xbf16>, vector<2x32xf32> -> vector<2x32xf32>
    %609 = vector.extract_strided_slice %5 {offsets = [2, 0, 0], sizes = [1, 32, 32], strides = [1, 1, 1]} : vector<3x32x32xbf16> to vector<1x32x32xbf16>
    %610 = vector.shape_cast %609 : vector<1x32x32xbf16> to vector<32x32xbf16>
    %cst_259 = arith.constant dense<0.000000e+00> : vector<2x32xf32>
    %611 = tpu.matmul %602, %610, %cst_259 {dimension_numbers = #tpu.dot_dimension_numbers<[1], [0], [0], [1], [0, 0, 1, 1], [], []>} : vector<2x32xbf16>, vector<32x32xbf16>, vector<2x32xf32> -> vector<2x32xf32>
    %612 = arith.extf %597 : vector<2x32xbf16> to vector<2x32xf32>
    %613 = arith.addf %612, %605 : vector<2x32xf32>
    %614 = arith.negf %613 : vector<2x32xf32>
    %615 = math.exp %614 : vector<2x32xf32>
    %cst_260 = arith.constant 1.000000e+00 : f32
    %616 = vector.broadcast %cst_260 : f32 to vector<2x32xf32>
    %617 = arith.addf %616, %615 : vector<2x32xf32>
    %618 = arith.divf %616, %617 : vector<2x32xf32>
    %619 = arith.extf %599 : vector<2x32xbf16> to vector<2x32xf32>
    %620 = arith.addf %619, %608 : vector<2x32xf32>
    %621 = arith.negf %620 : vector<2x32xf32>
    %622 = math.exp %621 : vector<2x32xf32>
    %cst_261 = arith.constant 1.000000e+00 : f32
    %623 = vector.broadcast %cst_261 : f32 to vector<2x32xf32>
    %624 = arith.addf %623, %622 : vector<2x32xf32>
    %625 = arith.divf %623, %624 : vector<2x32xf32>
    %626 = arith.extf %601 : vector<2x32xbf16> to vector<2x32xf32>
    %627 = vector.broadcast %7 : vector<1x32xf32> to vector<2x32xf32>
    %628 = arith.addf %611, %627 : vector<2x32xf32>
    %629 = arith.mulf %618, %628 : vector<2x32xf32>
    %630 = arith.addf %626, %629 : vector<2x32xf32>
    %631 = math.tanh %630 : vector<2x32xf32>
    %632 = arith.subf %534, %631 : vector<2x32xf32>
    %633 = arith.mulf %625, %632 : vector<2x32xf32>
    %634 = arith.addf %631, %633 : vector<2x32xf32>
    %c2_i32_262 = arith.constant 2 : i32
    %635 = arith.addi %10, %c2_i32_262 : i32
    %636 = vector.broadcast %635 : i32 to vector<2x1xi32>
    %637 = arith.cmpi sgt, %3, %636 : vector<2x1xi32>
    %638 = vector.shape_cast %637 : vector<2x1xi1> to vector<2x1xi1>
    %639 = vector.broadcast %638 : vector<2x1xi1> to vector<2x32xi1>
    %640 = arith.select %639, %634, %534 : vector<2x32xi1>, vector<2x32xf32>
    %cst_263 = arith.constant 0.000000e+00 : f32
    %641 = vector.shape_cast %637 : vector<2x1xi1> to vector<2x1xi1>
    %642 = vector.broadcast %641 : vector<2x1xi1> to vector<2x32xi1>
    %643 = vector.broadcast %cst_263 : f32 to vector<2x32xf32>
    %644 = arith.select %642, %640, %643 : vector<2x32xi1>, vector<2x32xf32>
    %645 = arith.truncf %644 : vector<2x32xf32> to vector<2x32xbf16>
    %c2_264 = arith.constant 2 : index
    %c0_265 = arith.constant 0 : index
    %c0_266 = arith.constant 0 : index
    %646 = vector.load %arg9[%c2_264, %c0_265, %c0_266] : memref<8x2x32xbf16, #tpu.memory_space<vmem>>, vector<1x2x32xbf16>
    %647 = vector.shape_cast %646 : vector<1x2x32xbf16> to vector<2x32xbf16>
    %648 = vector.shape_cast %645 : vector<2x32xbf16> to vector<1x2x32xbf16>
    tpu.vector_store %arg9[%c2_264, %c0_265, %c0_266], %648 {strides = array<i32>} : memref<8x2x32xbf16, #tpu.memory_space<vmem>>, vector<1x2x32xbf16>,
    %c0_267 = arith.constant 0 : index
    %c6_268 = arith.constant 6 : index
    %c0_269 = arith.constant 0 : index
    %c0_270 = arith.constant 0 : index
    %649 = vector.load %arg2[%c0_267, %c6_268, %c0_269, %c0_270] : memref<3x8x2x32xbf16, #tpu.memory_space<vmem>>, vector<1x1x2x32xbf16>
    %650 = vector.shape_cast %649 : vector<1x1x2x32xbf16> to vector<2x32xbf16>
    %c1_271 = arith.constant 1 : index
    %c6_272 = arith.constant 6 : index
    %c0_273 = arith.constant 0 : index
    %c0_274 = arith.constant 0 : index
    %651 = vector.load %arg2[%c1_271, %c6_272, %c0_273, %c0_274] : memref<3x8x2x32xbf16, #tpu.memory_space<vmem>>, vector<1x1x2x32xbf16>
    %652 = vector.shape_cast %651 : vector<1x1x2x32xbf16> to vector<2x32xbf16>
    %c2_275 = arith.constant 2 : index
    %c6_276 = arith.constant 6 : index
    %c0_277 = arith.constant 0 : index
    %c0_278 = arith.constant 0 : index
    %653 = vector.load %arg2[%c2_275, %c6_276, %c0_277, %c0_278] : memref<3x8x2x32xbf16, #tpu.memory_space<vmem>>, vector<1x1x2x32xbf16>
    %654 = vector.shape_cast %653 : vector<1x1x2x32xbf16> to vector<2x32xbf16>
    %655 = arith.truncf %587 : vector<2x32xf32> to vector<2x32xbf16>
    %656 = vector.extract_strided_slice %4 {offsets = [0, 0, 0], sizes = [1, 32, 32], strides = [1, 1, 1]} : vector<3x32x32xbf16> to vector<1x32x32xbf16>
    %657 = vector.shape_cast %656 : vector<1x32x32xbf16> to vector<32x32xbf16>
    %cst_279 = arith.constant dense<0.000000e+00> : vector<2x32xf32>
    %658 = tpu.matmul %655, %657, %cst_279 {dimension_numbers = #tpu.dot_dimension_numbers<[1], [0], [0], [1], [0, 0, 1, 1], [], []>} : vector<2x32xbf16>, vector<32x32xbf16>, vector<2x32xf32> -> vector<2x32xf32>
    %659 = vector.extract_strided_slice %4 {offsets = [1, 0, 0], sizes = [1, 32, 32], strides = [1, 1, 1]} : vector<3x32x32xbf16> to vector<1x32x32xbf16>
    %660 = vector.shape_cast %659 : vector<1x32x32xbf16> to vector<32x32xbf16>
    %cst_280 = arith.constant dense<0.000000e+00> : vector<2x32xf32>
    %661 = tpu.matmul %655, %660, %cst_280 {dimension_numbers = #tpu.dot_dimension_numbers<[1], [0], [0], [1], [0, 0, 1, 1], [], []>} : vector<2x32xbf16>, vector<32x32xbf16>, vector<2x32xf32> -> vector<2x32xf32>
    %662 = vector.extract_strided_slice %4 {offsets = [2, 0, 0], sizes = [1, 32, 32], strides = [1, 1, 1]} : vector<3x32x32xbf16> to vector<1x32x32xbf16>
    %663 = vector.shape_cast %662 : vector<1x32x32xbf16> to vector<32x32xbf16>
    %cst_281 = arith.constant dense<0.000000e+00> : vector<2x32xf32>
    %664 = tpu.matmul %655, %663, %cst_281 {dimension_numbers = #tpu.dot_dimension_numbers<[1], [0], [0], [1], [0, 0, 1, 1], [], []>} : vector<2x32xbf16>, vector<32x32xbf16>, vector<2x32xf32> -> vector<2x32xf32>
    %665 = arith.extf %650 : vector<2x32xbf16> to vector<2x32xf32>
    %666 = arith.addf %665, %658 : vector<2x32xf32>
    %667 = arith.negf %666 : vector<2x32xf32>
    %668 = math.exp %667 : vector<2x32xf32>
    %cst_282 = arith.constant 1.000000e+00 : f32
    %669 = vector.broadcast %cst_282 : f32 to vector<2x32xf32>
    %670 = arith.addf %669, %668 : vector<2x32xf32>
    %671 = arith.divf %669, %670 : vector<2x32xf32>
    %672 = arith.extf %652 : vector<2x32xbf16> to vector<2x32xf32>
    %673 = arith.addf %672, %661 : vector<2x32xf32>
    %674 = arith.negf %673 : vector<2x32xf32>
    %675 = math.exp %674 : vector<2x32xf32>
    %cst_283 = arith.constant 1.000000e+00 : f32
    %676 = vector.broadcast %cst_283 : f32 to vector<2x32xf32>
    %677 = arith.addf %676, %675 : vector<2x32xf32>
    %678 = arith.divf %676, %677 : vector<2x32xf32>
    %679 = arith.extf %654 : vector<2x32xbf16> to vector<2x32xf32>
    %680 = vector.broadcast %6 : vector<1x32xf32> to vector<2x32xf32>
    %681 = arith.addf %664, %680 : vector<2x32xf32>
    %682 = arith.mulf %671, %681 : vector<2x32xf32>
    %683 = arith.addf %679, %682 : vector<2x32xf32>
    %684 = math.tanh %683 : vector<2x32xf32>
    %685 = arith.subf %587, %684 : vector<2x32xf32>
    %686 = arith.mulf %678, %685 : vector<2x32xf32>
    %687 = arith.addf %684, %686 : vector<2x32xf32>
    %c6_i32_284 = arith.constant 6 : i32
    %688 = arith.addi %8, %c6_i32_284 : i32
    %689 = vector.broadcast %688 : i32 to vector<2x1xi32>
    %690 = arith.cmpi sgt, %3, %689 : vector<2x1xi32>
    %691 = vector.shape_cast %690 : vector<2x1xi1> to vector<2x1xi1>
    %692 = vector.broadcast %691 : vector<2x1xi1> to vector<2x32xi1>
    %693 = arith.select %692, %687, %587 : vector<2x32xi1>, vector<2x32xf32>
    %cst_285 = arith.constant 0.000000e+00 : f32
    %694 = vector.shape_cast %690 : vector<2x1xi1> to vector<2x1xi1>
    %695 = vector.broadcast %694 : vector<2x1xi1> to vector<2x32xi1>
    %696 = vector.broadcast %cst_285 : f32 to vector<2x32xf32>
    %697 = arith.select %695, %693, %696 : vector<2x32xi1>, vector<2x32xf32>
    %698 = arith.truncf %697 : vector<2x32xf32> to vector<2x32xbf16>
    %c6_286 = arith.constant 6 : index
    %c0_287 = arith.constant 0 : index
    %c0_288 = arith.constant 0 : index
    %699 = vector.load %arg8[%c6_286, %c0_287, %c0_288] : memref<8x2x32xbf16, #tpu.memory_space<vmem>>, vector<1x2x32xbf16>
    %700 = vector.shape_cast %699 : vector<1x2x32xbf16> to vector<2x32xbf16>
    %701 = vector.shape_cast %698 : vector<2x32xbf16> to vector<1x2x32xbf16>
    tpu.vector_store %arg8[%c6_286, %c0_287, %c0_288], %701 {strides = array<i32>} : memref<8x2x32xbf16, #tpu.memory_space<vmem>>, vector<1x2x32xbf16>,
    %c0_289 = arith.constant 0 : index
    %c1_290 = arith.constant 1 : index
    %c0_291 = arith.constant 0 : index
    %c0_292 = arith.constant 0 : index
    %702 = vector.load %arg3[%c0_289, %c1_290, %c0_291, %c0_292] : memref<3x8x2x32xbf16, #tpu.memory_space<vmem>>, vector<1x1x2x32xbf16>
    %703 = vector.shape_cast %702 : vector<1x1x2x32xbf16> to vector<2x32xbf16>
    %c1_293 = arith.constant 1 : index
    %c1_294 = arith.constant 1 : index
    %c0_295 = arith.constant 0 : index
    %c0_296 = arith.constant 0 : index
    %704 = vector.load %arg3[%c1_293, %c1_294, %c0_295, %c0_296] : memref<3x8x2x32xbf16, #tpu.memory_space<vmem>>, vector<1x1x2x32xbf16>
    %705 = vector.shape_cast %704 : vector<1x1x2x32xbf16> to vector<2x32xbf16>
    %c2_297 = arith.constant 2 : index
    %c1_298 = arith.constant 1 : index
    %c0_299 = arith.constant 0 : index
    %c0_300 = arith.constant 0 : index
    %706 = vector.load %arg3[%c2_297, %c1_298, %c0_299, %c0_300] : memref<3x8x2x32xbf16, #tpu.memory_space<vmem>>, vector<1x1x2x32xbf16>
    %707 = vector.shape_cast %706 : vector<1x1x2x32xbf16> to vector<2x32xbf16>
    %708 = arith.truncf %640 : vector<2x32xf32> to vector<2x32xbf16>
    %709 = vector.extract_strided_slice %5 {offsets = [0, 0, 0], sizes = [1, 32, 32], strides = [1, 1, 1]} : vector<3x32x32xbf16> to vector<1x32x32xbf16>
    %710 = vector.shape_cast %709 : vector<1x32x32xbf16> to vector<32x32xbf16>
    %cst_301 = arith.constant dense<0.000000e+00> : vector<2x32xf32>
    %711 = tpu.matmul %708, %710, %cst_301 {dimension_numbers = #tpu.dot_dimension_numbers<[1], [0], [0], [1], [0, 0, 1, 1], [], []>} : vector<2x32xbf16>, vector<32x32xbf16>, vector<2x32xf32> -> vector<2x32xf32>
    %712 = vector.extract_strided_slice %5 {offsets = [1, 0, 0], sizes = [1, 32, 32], strides = [1, 1, 1]} : vector<3x32x32xbf16> to vector<1x32x32xbf16>
    %713 = vector.shape_cast %712 : vector<1x32x32xbf16> to vector<32x32xbf16>
    %cst_302 = arith.constant dense<0.000000e+00> : vector<2x32xf32>
    %714 = tpu.matmul %708, %713, %cst_302 {dimension_numbers = #tpu.dot_dimension_numbers<[1], [0], [0], [1], [0, 0, 1, 1], [], []>} : vector<2x32xbf16>, vector<32x32xbf16>, vector<2x32xf32> -> vector<2x32xf32>
    %715 = vector.extract_strided_slice %5 {offsets = [2, 0, 0], sizes = [1, 32, 32], strides = [1, 1, 1]} : vector<3x32x32xbf16> to vector<1x32x32xbf16>
    %716 = vector.shape_cast %715 : vector<1x32x32xbf16> to vector<32x32xbf16>
    %cst_303 = arith.constant dense<0.000000e+00> : vector<2x32xf32>
    %717 = tpu.matmul %708, %716, %cst_303 {dimension_numbers = #tpu.dot_dimension_numbers<[1], [0], [0], [1], [0, 0, 1, 1], [], []>} : vector<2x32xbf16>, vector<32x32xbf16>, vector<2x32xf32> -> vector<2x32xf32>
    %718 = arith.extf %703 : vector<2x32xbf16> to vector<2x32xf32>
    %719 = arith.addf %718, %711 : vector<2x32xf32>
    %720 = arith.negf %719 : vector<2x32xf32>
    %721 = math.exp %720 : vector<2x32xf32>
    %cst_304 = arith.constant 1.000000e+00 : f32
    %722 = vector.broadcast %cst_304 : f32 to vector<2x32xf32>
    %723 = arith.addf %722, %721 : vector<2x32xf32>
    %724 = arith.divf %722, %723 : vector<2x32xf32>
    %725 = arith.extf %705 : vector<2x32xbf16> to vector<2x32xf32>
    %726 = arith.addf %725, %714 : vector<2x32xf32>
    %727 = arith.negf %726 : vector<2x32xf32>
    %728 = math.exp %727 : vector<2x32xf32>
    %cst_305 = arith.constant 1.000000e+00 : f32
    %729 = vector.broadcast %cst_305 : f32 to vector<2x32xf32>
    %730 = arith.addf %729, %728 : vector<2x32xf32>
    %731 = arith.divf %729, %730 : vector<2x32xf32>
    %732 = arith.extf %707 : vector<2x32xbf16> to vector<2x32xf32>
    %733 = vector.broadcast %7 : vector<1x32xf32> to vector<2x32xf32>
    %734 = arith.addf %717, %733 : vector<2x32xf32>
    %735 = arith.mulf %724, %734 : vector<2x32xf32>
    %736 = arith.addf %732, %735 : vector<2x32xf32>
    %737 = math.tanh %736 : vector<2x32xf32>
    %738 = arith.subf %640, %737 : vector<2x32xf32>
    %739 = arith.mulf %731, %738 : vector<2x32xf32>
    %740 = arith.addf %737, %739 : vector<2x32xf32>
    %c1_i32_306 = arith.constant 1 : i32
    %741 = arith.addi %10, %c1_i32_306 : i32
    %742 = vector.broadcast %741 : i32 to vector<2x1xi32>
    %743 = arith.cmpi sgt, %3, %742 : vector<2x1xi32>
    %744 = vector.shape_cast %743 : vector<2x1xi1> to vector<2x1xi1>
    %745 = vector.broadcast %744 : vector<2x1xi1> to vector<2x32xi1>
    %746 = arith.select %745, %740, %640 : vector<2x32xi1>, vector<2x32xf32>
    %cst_307 = arith.constant 0.000000e+00 : f32
    %747 = vector.shape_cast %743 : vector<2x1xi1> to vector<2x1xi1>
    %748 = vector.broadcast %747 : vector<2x1xi1> to vector<2x32xi1>
    %749 = vector.broadcast %cst_307 : f32 to vector<2x32xf32>
    %750 = arith.select %748, %746, %749 : vector<2x32xi1>, vector<2x32xf32>
    %751 = arith.truncf %750 : vector<2x32xf32> to vector<2x32xbf16>
    %c1_308 = arith.constant 1 : index
    %c0_309 = arith.constant 0 : index
    %c0_310 = arith.constant 0 : index
    %752 = vector.load %arg9[%c1_308, %c0_309, %c0_310] : memref<8x2x32xbf16, #tpu.memory_space<vmem>>, vector<1x2x32xbf16>
    %753 = vector.shape_cast %752 : vector<1x2x32xbf16> to vector<2x32xbf16>
    %754 = vector.shape_cast %751 : vector<2x32xbf16> to vector<1x2x32xbf16>
    tpu.vector_store %arg9[%c1_308, %c0_309, %c0_310], %754 {strides = array<i32>} : memref<8x2x32xbf16, #tpu.memory_space<vmem>>, vector<1x2x32xbf16>,
    %c0_311 = arith.constant 0 : index
    %c7_312 = arith.constant 7 : index
    %c0_313 = arith.constant 0 : index
    %c0_314 = arith.constant 0 : index
    %755 = vector.load %arg2[%c0_311, %c7_312, %c0_313, %c0_314] : memref<3x8x2x32xbf16, #tpu.memory_space<vmem>>, vector<1x1x2x32xbf16>
    %756 = vector.shape_cast %755 : vector<1x1x2x32xbf16> to vector<2x32xbf16>
    %c1_315 = arith.constant 1 : index
    %c7_316 = arith.constant 7 : index
    %c0_317 = arith.constant 0 : index
    %c0_318 = arith.constant 0 : index
    %757 = vector.load %arg2[%c1_315, %c7_316, %c0_317, %c0_318] : memref<3x8x2x32xbf16, #tpu.memory_space<vmem>>, vector<1x1x2x32xbf16>
    %758 = vector.shape_cast %757 : vector<1x1x2x32xbf16> to vector<2x32xbf16>
    %c2_319 = arith.constant 2 : index
    %c7_320 = arith.constant 7 : index
    %c0_321 = arith.constant 0 : index
    %c0_322 = arith.constant 0 : index
    %759 = vector.load %arg2[%c2_319, %c7_320, %c0_321, %c0_322] : memref<3x8x2x32xbf16, #tpu.memory_space<vmem>>, vector<1x1x2x32xbf16>
    %760 = vector.shape_cast %759 : vector<1x1x2x32xbf16> to vector<2x32xbf16>
    %761 = arith.truncf %693 : vector<2x32xf32> to vector<2x32xbf16>
    %762 = vector.extract_strided_slice %4 {offsets = [0, 0, 0], sizes = [1, 32, 32], strides = [1, 1, 1]} : vector<3x32x32xbf16> to vector<1x32x32xbf16>
    %763 = vector.shape_cast %762 : vector<1x32x32xbf16> to vector<32x32xbf16>
    %cst_323 = arith.constant dense<0.000000e+00> : vector<2x32xf32>
    %764 = tpu.matmul %761, %763, %cst_323 {dimension_numbers = #tpu.dot_dimension_numbers<[1], [0], [0], [1], [0, 0, 1, 1], [], []>} : vector<2x32xbf16>, vector<32x32xbf16>, vector<2x32xf32> -> vector<2x32xf32>
    %765 = vector.extract_strided_slice %4 {offsets = [1, 0, 0], sizes = [1, 32, 32], strides = [1, 1, 1]} : vector<3x32x32xbf16> to vector<1x32x32xbf16>
    %766 = vector.shape_cast %765 : vector<1x32x32xbf16> to vector<32x32xbf16>
    %cst_324 = arith.constant dense<0.000000e+00> : vector<2x32xf32>
    %767 = tpu.matmul %761, %766, %cst_324 {dimension_numbers = #tpu.dot_dimension_numbers<[1], [0], [0], [1], [0, 0, 1, 1], [], []>} : vector<2x32xbf16>, vector<32x32xbf16>, vector<2x32xf32> -> vector<2x32xf32>
    %768 = vector.extract_strided_slice %4 {offsets = [2, 0, 0], sizes = [1, 32, 32], strides = [1, 1, 1]} : vector<3x32x32xbf16> to vector<1x32x32xbf16>
    %769 = vector.shape_cast %768 : vector<1x32x32xbf16> to vector<32x32xbf16>
    %cst_325 = arith.constant dense<0.000000e+00> : vector<2x32xf32>
    %770 = tpu.matmul %761, %769, %cst_325 {dimension_numbers = #tpu.dot_dimension_numbers<[1], [0], [0], [1], [0, 0, 1, 1], [], []>} : vector<2x32xbf16>, vector<32x32xbf16>, vector<2x32xf32> -> vector<2x32xf32>
    %771 = arith.extf %756 : vector<2x32xbf16> to vector<2x32xf32>
    %772 = arith.addf %771, %764 : vector<2x32xf32>
    %773 = arith.negf %772 : vector<2x32xf32>
    %774 = math.exp %773 : vector<2x32xf32>
    %cst_326 = arith.constant 1.000000e+00 : f32
    %775 = vector.broadcast %cst_326 : f32 to vector<2x32xf32>
    %776 = arith.addf %775, %774 : vector<2x32xf32>
    %777 = arith.divf %775, %776 : vector<2x32xf32>
    %778 = arith.extf %758 : vector<2x32xbf16> to vector<2x32xf32>
    %779 = arith.addf %778, %767 : vector<2x32xf32>
    %780 = arith.negf %779 : vector<2x32xf32>
    %781 = math.exp %780 : vector<2x32xf32>
    %cst_327 = arith.constant 1.000000e+00 : f32
    %782 = vector.broadcast %cst_327 : f32 to vector<2x32xf32>
    %783 = arith.addf %782, %781 : vector<2x32xf32>
    %784 = arith.divf %782, %783 : vector<2x32xf32>
    %785 = arith.extf %760 : vector<2x32xbf16> to vector<2x32xf32>
    %786 = vector.broadcast %6 : vector<1x32xf32> to vector<2x32xf32>
    %787 = arith.addf %770, %786 : vector<2x32xf32>
    %788 = arith.mulf %777, %787 : vector<2x32xf32>
    %789 = arith.addf %785, %788 : vector<2x32xf32>
    %790 = math.tanh %789 : vector<2x32xf32>
    %791 = arith.subf %693, %790 : vector<2x32xf32>
    %792 = arith.mulf %784, %791 : vector<2x32xf32>
    %793 = arith.addf %790, %792 : vector<2x32xf32>
    %c7_i32_328 = arith.constant 7 : i32
    %794 = arith.addi %8, %c7_i32_328 : i32
    %795 = vector.broadcast %794 : i32 to vector<2x1xi32>
    %796 = arith.cmpi sgt, %3, %795 : vector<2x1xi32>
    %797 = vector.shape_cast %796 : vector<2x1xi1> to vector<2x1xi1>
    %798 = vector.broadcast %797 : vector<2x1xi1> to vector<2x32xi1>
    %799 = arith.select %798, %793, %693 : vector<2x32xi1>, vector<2x32xf32>
    %cst_329 = arith.constant 0.000000e+00 : f32
    %800 = vector.shape_cast %796 : vector<2x1xi1> to vector<2x1xi1>
    %801 = vector.broadcast %800 : vector<2x1xi1> to vector<2x32xi1>
    %802 = vector.broadcast %cst_329 : f32 to vector<2x32xf32>
    %803 = arith.select %801, %799, %802 : vector<2x32xi1>, vector<2x32xf32>
    %804 = arith.truncf %803 : vector<2x32xf32> to vector<2x32xbf16>
    %c7_330 = arith.constant 7 : index
    %c0_331 = arith.constant 0 : index
    %c0_332 = arith.constant 0 : index
    %805 = vector.load %arg8[%c7_330, %c0_331, %c0_332] : memref<8x2x32xbf16, #tpu.memory_space<vmem>>, vector<1x2x32xbf16>
    %806 = vector.shape_cast %805 : vector<1x2x32xbf16> to vector<2x32xbf16>
    %807 = vector.shape_cast %804 : vector<2x32xbf16> to vector<1x2x32xbf16>
    tpu.vector_store %arg8[%c7_330, %c0_331, %c0_332], %807 {strides = array<i32>} : memref<8x2x32xbf16, #tpu.memory_space<vmem>>, vector<1x2x32xbf16>,
    %c0_333 = arith.constant 0 : index
    %c0_334 = arith.constant 0 : index
    %c0_335 = arith.constant 0 : index
    %c0_336 = arith.constant 0 : index
    %808 = vector.load %arg3[%c0_333, %c0_334, %c0_335, %c0_336] : memref<3x8x2x32xbf16, #tpu.memory_space<vmem>>, vector<1x1x2x32xbf16>
    %809 = vector.shape_cast %808 : vector<1x1x2x32xbf16> to vector<2x32xbf16>
    %c1_337 = arith.constant 1 : index
    %c0_338 = arith.constant 0 : index
    %c0_339 = arith.constant 0 : index
    %c0_340 = arith.constant 0 : index
    %810 = vector.load %arg3[%c1_337, %c0_338, %c0_339, %c0_340] : memref<3x8x2x32xbf16, #tpu.memory_space<vmem>>, vector<1x1x2x32xbf16>
    %811 = vector.shape_cast %810 : vector<1x1x2x32xbf16> to vector<2x32xbf16>
    %c2_341 = arith.constant 2 : index
    %c0_342 = arith.constant 0 : index
    %c0_343 = arith.constant 0 : index
    %c0_344 = arith.constant 0 : index
    %812 = vector.load %arg3[%c2_341, %c0_342, %c0_343, %c0_344] : memref<3x8x2x32xbf16, #tpu.memory_space<vmem>>, vector<1x1x2x32xbf16>
    %813 = vector.shape_cast %812 : vector<1x1x2x32xbf16> to vector<2x32xbf16>
    %814 = arith.truncf %746 : vector<2x32xf32> to vector<2x32xbf16>
    %815 = vector.extract_strided_slice %5 {offsets = [0, 0, 0], sizes = [1, 32, 32], strides = [1, 1, 1]} : vector<3x32x32xbf16> to vector<1x32x32xbf16>
    %816 = vector.shape_cast %815 : vector<1x32x32xbf16> to vector<32x32xbf16>
    %cst_345 = arith.constant dense<0.000000e+00> : vector<2x32xf32>
    %817 = tpu.matmul %814, %816, %cst_345 {dimension_numbers = #tpu.dot_dimension_numbers<[1], [0], [0], [1], [0, 0, 1, 1], [], []>} : vector<2x32xbf16>, vector<32x32xbf16>, vector<2x32xf32> -> vector<2x32xf32>
    %818 = vector.extract_strided_slice %5 {offsets = [1, 0, 0], sizes = [1, 32, 32], strides = [1, 1, 1]} : vector<3x32x32xbf16> to vector<1x32x32xbf16>
    %819 = vector.shape_cast %818 : vector<1x32x32xbf16> to vector<32x32xbf16>
    %cst_346 = arith.constant dense<0.000000e+00> : vector<2x32xf32>
    %820 = tpu.matmul %814, %819, %cst_346 {dimension_numbers = #tpu.dot_dimension_numbers<[1], [0], [0], [1], [0, 0, 1, 1], [], []>} : vector<2x32xbf16>, vector<32x32xbf16>, vector<2x32xf32> -> vector<2x32xf32>
    %821 = vector.extract_strided_slice %5 {offsets = [2, 0, 0], sizes = [1, 32, 32], strides = [1, 1, 1]} : vector<3x32x32xbf16> to vector<1x32x32xbf16>
    %822 = vector.shape_cast %821 : vector<1x32x32xbf16> to vector<32x32xbf16>
    %cst_347 = arith.constant dense<0.000000e+00> : vector<2x32xf32>
    %823 = tpu.matmul %814, %822, %cst_347 {dimension_numbers = #tpu.dot_dimension_numbers<[1], [0], [0], [1], [0, 0, 1, 1], [], []>} : vector<2x32xbf16>, vector<32x32xbf16>, vector<2x32xf32> -> vector<2x32xf32>
    %824 = arith.extf %809 : vector<2x32xbf16> to vector<2x32xf32>
    %825 = arith.addf %824, %817 : vector<2x32xf32>
    %826 = arith.negf %825 : vector<2x32xf32>
    %827 = math.exp %826 : vector<2x32xf32>
    %cst_348 = arith.constant 1.000000e+00 : f32
    %828 = vector.broadcast %cst_348 : f32 to vector<2x32xf32>
    %829 = arith.addf %828, %827 : vector<2x32xf32>
    %830 = arith.divf %828, %829 : vector<2x32xf32>
    %831 = arith.extf %811 : vector<2x32xbf16> to vector<2x32xf32>
    %832 = arith.addf %831, %820 : vector<2x32xf32>
    %833 = arith.negf %832 : vector<2x32xf32>
    %834 = math.exp %833 : vector<2x32xf32>
    %cst_349 = arith.constant 1.000000e+00 : f32
    %835 = vector.broadcast %cst_349 : f32 to vector<2x32xf32>
    %836 = arith.addf %835, %834 : vector<2x32xf32>
    %837 = arith.divf %835, %836 : vector<2x32xf32>
    %838 = arith.extf %813 : vector<2x32xbf16> to vector<2x32xf32>
    %839 = vector.broadcast %7 : vector<1x32xf32> to vector<2x32xf32>
    %840 = arith.addf %823, %839 : vector<2x32xf32>
    %841 = arith.mulf %830, %840 : vector<2x32xf32>
    %842 = arith.addf %838, %841 : vector<2x32xf32>
    %843 = math.tanh %842 : vector<2x32xf32>
    %844 = arith.subf %746, %843 : vector<2x32xf32>
    %845 = arith.mulf %837, %844 : vector<2x32xf32>
    %846 = arith.addf %843, %845 : vector<2x32xf32>
    %c0_i32_350 = arith.constant 0 : i32
    %847 = arith.addi %10, %c0_i32_350 : i32
    %848 = vector.broadcast %847 : i32 to vector<2x1xi32>
    %849 = arith.cmpi sgt, %3, %848 : vector<2x1xi32>
    %850 = vector.shape_cast %849 : vector<2x1xi1> to vector<2x1xi1>
    %851 = vector.broadcast %850 : vector<2x1xi1> to vector<2x32xi1>
    %852 = arith.select %851, %846, %746 : vector<2x32xi1>, vector<2x32xf32>
    %cst_351 = arith.constant 0.000000e+00 : f32
    %853 = vector.shape_cast %849 : vector<2x1xi1> to vector<2x1xi1>
    %854 = vector.broadcast %853 : vector<2x1xi1> to vector<2x32xi1>
    %855 = vector.broadcast %cst_351 : f32 to vector<2x32xf32>
    %856 = arith.select %854, %852, %855 : vector<2x32xi1>, vector<2x32xf32>
    %857 = arith.truncf %856 : vector<2x32xf32> to vector<2x32xbf16>
    %c0_352 = arith.constant 0 : index
    %c0_353 = arith.constant 0 : index
    %c0_354 = arith.constant 0 : index
    %858 = vector.load %arg9[%c0_352, %c0_353, %c0_354] : memref<8x2x32xbf16, #tpu.memory_space<vmem>>, vector<1x2x32xbf16>
    %859 = vector.shape_cast %858 : vector<1x2x32xbf16> to vector<2x32xbf16>
    %860 = vector.shape_cast %857 : vector<2x32xbf16> to vector<1x2x32xbf16>
    tpu.vector_store %arg9[%c0_352, %c0_353, %c0_354], %860 {strides = array<i32>} : memref<8x2x32xbf16, #tpu.memory_space<vmem>>, vector<1x2x32xbf16>,
    %c0_355 = arith.constant 0 : index
    %c0_356 = arith.constant 0 : index
    %861 = vector.load %arg10[%c0_355, %c0_356] : memref<2x32xf32, #tpu.memory_space<vmem>>, vector<2x32xf32>
    tpu.vector_store %arg10[%c0_355, %c0_356], %799 {strides = array<i32>} : memref<2x32xf32, #tpu.memory_space<vmem>>, vector<2x32xf32>,
    %c0_357 = arith.constant 0 : index
    %c0_358 = arith.constant 0 : index
    %862 = vector.load %arg11[%c0_357, %c0_358] : memref<2x32xf32, #tpu.memory_space<vmem>>, vector<2x32xf32>
    tpu.vector_store %arg11[%c0_357, %c0_358], %852 {strides = array<i32>} : memref<2x32xf32, #tpu.memory_space<vmem>>, vector<2x32xf32>,
    return
  }
  func.func @transform_0(%arg0: i32) -> (i32, i32) {
    %c0_i32 = arith.constant 0 : i32
    %c0_i32_0 = arith.constant 0 : i32
    %c0_i32_1 = arith.constant 0 : i32
    return %c0_i32, %c0_i32_0 : i32, i32
  }
  func.func @transform_1(%arg0: i32) -> (i32, i32, i32, i32) {
    %c0_i32 = arith.constant 0 : i32
    %c0_i32_0 = arith.constant 0 : i32
    %c0_i32_1 = arith.constant 0 : i32
    %c0_i32_2 = arith.constant 0 : i32
    return %c0_i32, %arg0, %c0_i32_0, %c0_i32_1 : i32, i32, i32, i32
  }
  func.func @transform_2(%arg0: i32) -> (i32, i32, i32, i32) {
    %c1_i32 = arith.constant 1 : i32
    %0 = arith.subi %c1_i32, %arg0 : i32
    %c0_i32 = arith.constant 0 : i32
    %c0_i32_0 = arith.constant 0 : i32
    %c0_i32_1 = arith.constant 0 : i32
    %c0_i32_2 = arith.constant 0 : i32
    return %c0_i32, %0, %c0_i32_0, %c0_i32_1 : i32, i32, i32, i32
  }
  func.func @transform_3(%arg0: i32) -> (i32, i32, i32) {
    %c0_i32 = arith.constant 0 : i32
    %c0_i32_0 = arith.constant 0 : i32
    %c0_i32_1 = arith.constant 0 : i32
    %c0_i32_2 = arith.constant 0 : i32
    return %c0_i32, %c0_i32_0, %c0_i32_1 : i32, i32, i32
  }
  func.func @transform_4(%arg0: i32) -> (i32, i32, i32) {
    %c0_i32 = arith.constant 0 : i32
    %c0_i32_0 = arith.constant 0 : i32
    %c0_i32_1 = arith.constant 0 : i32
    %c0_i32_2 = arith.constant 0 : i32
    return %c0_i32, %c0_i32_0, %c0_i32_1 : i32, i32, i32
  }
  func.func @transform_5(%arg0: i32) -> (i32, i32) {
    %c0_i32 = arith.constant 0 : i32
    %c0_i32_0 = arith.constant 0 : i32
    %c0_i32_1 = arith.constant 0 : i32
    return %c0_i32, %c0_i32_0 : i32, i32
  }
  func.func @transform_6(%arg0: i32) -> (i32, i32) {
    %c0_i32 = arith.constant 0 : i32
    %c0_i32_0 = arith.constant 0 : i32
    %c0_i32_1 = arith.constant 0 : i32
    return %c0_i32, %c0_i32_0 : i32, i32
  }
  func.func @transform_7(%arg0: i32) -> (i32, i32, i32) {
    %c0_i32 = arith.constant 0 : i32
    %c0_i32_0 = arith.constant 0 : i32
    %c0_i32_1 = arith.constant 0 : i32
    return %arg0, %c0_i32, %c0_i32_0 : i32, i32, i32
  }
  func.func @transform_8(%arg0: i32) -> (i32, i32, i32) {
    %c1_i32 = arith.constant 1 : i32
    %0 = arith.subi %c1_i32, %arg0 : i32
    %c0_i32 = arith.constant 0 : i32
    %c0_i32_0 = arith.constant 0 : i32
    %c0_i32_1 = arith.constant 0 : i32
    return %0, %c0_i32, %c0_i32_0 : i32, i32, i32
  }
}

</mosaic_0001>

<llo_original>
// kernel: tpu_custom_call.1
$region0: #{tpu_custom_call.1}
  #allocation0 [shape = 'u32[]', space=smem, size = 0x4, offset = 0x4, fixed_abs, tag = 'smem constant byte address 0x4 - core index']
  #allocation1 [shape = 'u32[144,128]{1,0:T(1,128)}', space=vmem, size = 0x12000, scoped, tag = 'internal scratch']
  #allocation2 [shape = 'f32[2,32]{1,0:T(2,128)}', space=vmem, size = 0x400, scoped, tag = 'scratch operand']
  #allocation3 [shape = 'f32[2,32]{1,0:T(2,128)}', space=vmem, size = 0x400, scoped, tag = 'scratch operand']
  #allocation15 [shape = 's32[]', space=sflag, size = 0x4, offset = 0, fixed_abs, tag = 'sflag constant byte address 0x0 - dummy sync flag']
  #allocation17 [shape = 's32[]', space=sflag, size = 0x4, offset = 0, fixed_abs, tag = 'sflag constant byte address 0x0 - dummy sync flag']
  %s0 = inlined_call_operand.vmem [shape: s32[2,1], index: 0, kind: input, shape index: {}]
  %s1 = inlined_call_operand.hbm [shape: bf16[3,16,2,32], index: 1, kind: input, shape index: {}]
  %s2 = inlined_call_operand.hbm [shape: bf16[3,16,2,32], index: 2, kind: input, shape index: {}]
  %s3 = inlined_call_operand.hbm [shape: bf16[3,32,32], index: 3, kind: input, shape index: {}]
  %s4 = inlined_call_operand.hbm [shape: bf16[3,32,32], index: 4, kind: input, shape index: {}]
  %s5 = inlined_call_operand.vmem [shape: f32[1,32], index: 5, kind: input, shape index: {}]
  %s6 = inlined_call_operand.vmem [shape: f32[1,32], index: 6, kind: input, shape index: {}]
  %s7 = inlined_call_operand.hbm [shape: bf16[16,2,32], index: 7, kind: output, shape index: {0}]
  %s8 = inlined_call_operand.hbm [shape: bf16[16,2,32], index: 8, kind: output, shape index: {1}]
  %9 = xla_tuple %s7, %s8
  %s10 = sld [smem:[#allocation0]]
  $region89: #{tpu_custom_call.1} parent=0
    _
  %s12 = ssub.s32 1, %s10
  %s13 = scalar_select 0, %s12, %s10
  $region1: #{tpu_custom_call.1} parent=0
    #allocation4 [shape = 'u8[24576]{0}', space=vmem, size = 0x6000, scoped, tag = 'input window, operand 1']
    #allocation5 [shape = 's32[2]{0}', space=sflag, size = 0x8, scoped, tag = 'scoped memory for tpu_custom_call.1']
    #allocation6 [shape = 's32[2]{0}', space=sflag, size = 0x8, scoped, tag = 'scoped memory for tpu_custom_call.1']
    #allocation7 [shape = 'u8[24576]{0}', space=vmem, size = 0x6000, scoped, tag = 'input window, operand 2']
    #allocation8 [shape = 's32[2]{0}', space=sflag, size = 0x8, scoped, tag = 'scoped memory for tpu_custom_call.1']
    #allocation9 [shape = 'u8[24576]{0}', space=vmem, size = 0x6000, scoped, tag = 'input window, operand 3, single buffered']
    #allocation10 [shape = 'u8[24576]{0}', space=vmem, size = 0x6000, scoped, tag = 'input window, operand 4, single buffered']
    #allocation11 [shape = 's32[1]{0}', space=sflag, size = 0x4, scoped, tag = 'scoped memory for tpu_custom_call.1']
    #allocation12 [shape = 'u8[8192]{0}', space=vmem, size = 0x2000, scoped, tag = 'output window, operand 0']
    #allocation13 [shape = 'u8[8192]{0}', space=vmem, size = 0x2000, scoped, tag = 'output window, operand 1']
    #allocation14 [shape = 's32[2]{0}', space=sflag, size = 0x8, scoped, tag = 'scoped memory for tpu_custom_call.1']
    %14 = vsyncpa [#allocation5], 0
    %s15 = scalar_lea.sflag [#allocation5], 1
    %16 = vsyncpa %s15, 0
    %17 = vsyncpa [#allocation8], 0
    %s18 = scalar_lea.sflag [#allocation8], 1
    %19 = vsyncpa %s18, 0
    %20 = vsyncpa [#allocation11], 0
    %21 = vsyncpa [#allocation6], 0
    %s22 = scalar_lea.sflag [#allocation6], 1
    %23 = vsyncpa %s22, 0
    %24 = vsyncpa [#allocation14], 0
    %s25 = scalar_lea.sflag [#allocation14], 1
    %26 = vsyncpa %s25, 0
    loop: start=0, step=1, limit=4
    $region2: #{tpu_custom_call.1} parent=1 // loop_pre_header
      _
    $region3: #{tpu_custom_call.1} parent=1 // loop_header
      %s28 = sphi 0, %s32
      %p29 = scmp.ge.s32.totalorder %s28, 4
      %s36 = sphi 0, %s36
      %s38 = sphi 0, %s36
      %s39 = sphi 0, %s38
      %s53 = sphi 0, %s39
      %s59 = sphi 0, %s61
      %s62 = sphi 0, %s59
      %s63 = sphi 0, %s62
      %s79 = sphi 0, %s63
      %s87 = sphi 0, %s89
      %s90 = sphi 0, %s87
      %s91 = sphi 0, %s90
      %s107 = sphi 0, %s91
      %s111 = sphi 0, %s111
      %s113 = sphi 0, %s111
      %s114 = sphi 0, %s113
      %s128 = sphi 0, %s114
      %s132 = sphi 0, %s132
      %s134 = sphi 0, %s132
      %s135 = sphi 0, %s134
      %s149 = sphi 0, %s135
      %s153 = sphi 0, %s153
      %s155 = sphi 0, %s153
      %s156 = sphi 0, %s155
      %s170 = sphi 0, %s156
      %s174 = sphi 0, %s174
      %s176 = sphi 0, %s174
      %s177 = sphi 0, %s176
      %s191 = sphi 0, %s177
      %s197 = sphi 0, %s199
      %s200 = sphi 0, %s197
      %s201 = sphi 0, %s200
      %s217 = sphi 0, %s201
      %s225 = sphi 0, %s227
      %s228 = sphi 0, %s225
      %s229 = sphi 0, %s228
      %s245 = sphi 0, %s229
    $region4: #{tpu_custom_call.1} parent=1 // loop_header_branch
      %31 = sbr.rel (%p29) target = $region8
    $region5: #{tpu_custom_call.1} parent=1 // loop_body
      %s33 = ssub.s32 %s28, 1
      %s34 = ssub.s32 %s28, 2
      %s35 = sadd.s32 %s28, 1
      %s37 = sadd.s32 %s36, 1
      %p40 = scmp.eq.s32.totalorder %s28, 1
      %p41 = scmp.ne.s32.totalorder %s36, %s38
      %p42 = scmp.eq.s32.totalorder %s28, 0
      %p43 = por %p41, %p42
      %p44 = scmp.ne.s32.totalorder %s36, %s38
      %p45 = scmp.eq.s32.totalorder %s33, 1
      %p46 = por %p44, %p45
      %p47 = scmp.ne.s32.totalorder %s38, %s39
      %p48 = scmp.eq.s32.totalorder %s33, 0
      %p49 = por %p47, %p48
      %p50 = scmp.ne.s32.totalorder %s38, %s39
      %p51 = scmp.eq.s32.totalorder %s34, 1
      %p52 = por %p50, %p51
      %p54 = scmp.ne.s32.totalorder %s39, %s53
      %p55 = scmp.eq.s32.totalorder %s34, 0
      %p56 = por %p54, %p55
      %s57 = ssub.s32 %s28, %s35
      %p58 = scmp.eq.s32.totalorder %s57, 0
      %s60 = sadd.s32 %s59, 1
      %s61 = scalar_select %p58, %s59, %s60
      %p64 = pneg %p58
      %p65 = scmp.eq.s32.totalorder %s28, 1
      %p66 = por %p64, %p65
      %p67 = scmp.ne.s32.totalorder %s59, %s62
      %p68 = scmp.eq.s32.totalorder %s28, 0
      %p69 = por %p67, %p68
      %p70 = scmp.ne.s32.totalorder %s59, %s62
      %p71 = scmp.eq.s32.totalorder %s33, 1
      %p72 = por %p70, %p71
      %p73 = scmp.ne.s32.totalorder %s62, %s63
      %p74 = scmp.eq.s32.totalorder %s33, 0
      %p75 = por %p73, %p74
      %p76 = scmp.ne.s32.totalorder %s62, %s63
      %p77 = scmp.eq.s32.totalorder %s34, 1
      %p78 = por %p76, %p77
      %p80 = scmp.ne.s32.totalorder %s63, %s79
      %p81 = scmp.eq.s32.totalorder %s34, 0
      %p82 = por %p80, %p81
      %s83 = ssub.s32 1, %s28
      %s84 = ssub.s32 1, %s35
      %s85 = ssub.s32 %s83, %s84
      %p86 = scmp.eq.s32.totalorder %s85, 0
      %s88 = sadd.s32 %s87, 1
      %s89 = scalar_select %p86, %s87, %s88
      %p92 = pneg %p86
      %p93 = scmp.eq.s32.totalorder %s28, 1
      %p94 = por %p92, %p93
      %p95 = scmp.ne.s32.totalorder %s87, %s90
      %p96 = scmp.eq.s32.totalorder %s28, 0
      %p97 = por %p95, %p96
      %p98 = scmp.ne.s32.totalorder %s87, %s90
      %p99 = scmp.eq.s32.totalorder %s33, 1
      %p100 = por %p98, %p99
      %p101 = scmp.ne.s32.totalorder %s90, %s91
      %p102 = scmp.eq.s32.totalorder %s33, 0
      %p103 = por %p101, %p102
      %p104 = scmp.ne.s32.totalorder %s90, %s91
      %p105 = scmp.eq.s32.totalorder %s34, 1
      %p106 = por %p104, %p105
      %p108 = scmp.ne.s32.totalorder %s91, %s107
      %p109 = scmp.eq.s32.totalorder %s34, 0
      %p110 = por %p108, %p109
      %s112 = sadd.s32 %s111, 1
      %p115 = scmp.eq.s32.totalorder %s28, 1
      %p116 = scmp.ne.s32.totalorder %s111, %s113
      %p117 = scmp.eq.s32.totalorder %s28, 0
      %p118 = por %p116, %p117
      %p119 = scmp.ne.s32.totalorder %s111, %s113
      %p120 = scmp.eq.s32.totalorder %s33, 1
      %p121 = por %p119, %p120
      %p122 = scmp.ne.s32.totalorder %s113, %s114
      %p123 = scmp.eq.s32.totalorder %s33, 0
      %p124 = por %p122, %p123
      %p125 = scmp.ne.s32.totalorder %s113, %s114
      %p126 = scmp.eq.s32.totalorder %s34, 1
      %p127 = por %p125, %p126
      %p129 = scmp.ne.s32.totalorder %s114, %s128
      %p130 = scmp.eq.s32.totalorder %s34, 0
      %p131 = por %p129, %p130
      %s133 = sadd.s32 %s132, 1
      %p136 = scmp.eq.s32.totalorder %s28, 1
      %p137 = scmp.ne.s32.totalorder %s132, %s134
      %p138 = scmp.eq.s32.totalorder %s28, 0
      %p139 = por %p137, %p138
      %p140 = scmp.ne.s32.totalorder %s132, %s134
      %p141 = scmp.eq.s32.totalorder %s33, 1
      %p142 = por %p140, %p141
      %p143 = scmp.ne.s32.totalorder %s134, %s135
      %p144 = scmp.eq.s32.totalorder %s33, 0
      %p145 = por %p143, %p144
      %p146 = scmp.ne.s32.totalorder %s134, %s135
      %p147 = scmp.eq.s32.totalorder %s34, 1
      %p148 = por %p146, %p147
      %p150 = scmp.ne.s32.totalorder %s135, %s149
      %p151 = scmp.eq.s32.totalorder %s34, 0
      %p152 = por %p150, %p151
      %s154 = sadd.s32 %s153, 1
      %p157 = scmp.eq.s32.totalorder %s28, 1
      %p158 = scmp.ne.s32.totalorder %s153, %s155
      %p159 = scmp.eq.s32.totalorder %s28, 0
      %p160 = por %p158, %p159
      %p161 = scmp.ne.s32.totalorder %s153, %s155
      %p162 = scmp.eq.s32.totalorder %s33, 1
      %p163 = por %p161, %p162
      %p164 = scmp.ne.s32.totalorder %s155, %s156
      %p165 = scmp.eq.s32.totalorder %s33, 0
      %p166 = por %p164, %p165
      %p167 = scmp.ne.s32.totalorder %s155, %s156
      %p168 = scmp.eq.s32.totalorder %s34, 1
      %p169 = por %p167, %p168
      %p171 = scmp.ne.s32.totalorder %s156, %s170
      %p172 = scmp.eq.s32.totalorder %s34, 0
      %p173 = por %p171, %p172
      %s175 = sadd.s32 %s174, 1
      %p178 = scmp.eq.s32.totalorder %s28, 1
      %p179 = scmp.ne.s32.totalorder %s174, %s176
      %p180 = scmp.eq.s32.totalorder %s28, 0
      %p181 = por %p179, %p180
      %p182 = scmp.ne.s32.totalorder %s174, %s176
      %p183 = scmp.eq.s32.totalorder %s33, 1
      %p184 = por %p182, %p183
      %p185 = scmp.ne.s32.totalorder %s176, %s177
      %p186 = scmp.eq.s32.totalorder %s33, 0
      %p187 = por %p185, %p186
      %p188 = scmp.ne.s32.totalorder %s176, %s177
      %p189 = scmp.eq.s32.totalorder %s34, 1
      %p190 = por %p188, %p189
      %p192 = scmp.ne.s32.totalorder %s177, %s191
      %p193 = scmp.eq.s32.totalorder %s34, 0
      %p194 = por %p192, %p193
      %s195 = ssub.s32 %s28, %s35
      %p196 = scmp.eq.s32.totalorder %s195, 0
      %s198 = sadd.s32 %s197, 1
      %s199 = scalar_select %p196, %s197, %s198
      %p202 = pneg %p196
      %p203 = scmp.eq.s32.totalorder %s28, 1
      %p204 = por %p202, %p203
      %p205 = scmp.ne.s32.totalorder %s197, %s200
      %p206 = scmp.eq.s32.totalorder %s28, 0
      %p207 = por %p205, %p206
      %p208 = scmp.ne.s32.totalorder %s197, %s200
      %p209 = scmp.eq.s32.totalorder %s33, 1
      %p210 = por %p208, %p209
      %p211 = scmp.ne.s32.totalorder %s200, %s201
      %p212 = scmp.eq.s32.totalorder %s33, 0
      %p213 = por %p211, %p212
      %p214 = scmp.ne.s32.totalorder %s200, %s201
      %p215 = scmp.eq.s32.totalorder %s34, 1
      %p216 = por %p214, %p215
      %p218 = scmp.ne.s32.totalorder %s201, %s217
      %p219 = scmp.eq.s32.totalorder %s34, 0
      %p220 = por %p218, %p219
      %s221 = ssub.s32 1, %s28
      %s222 = ssub.s32 1, %s35
      %s223 = ssub.s32 %s221, %s222
      %p224 = scmp.eq.s32.totalorder %s223, 0
      %s226 = sadd.s32 %s225, 1
      %s227 = scalar_select %p224, %s225, %s226
      %p230 = pneg %p224
      %p231 = scmp.eq.s32.totalorder %s28, 1
      %p232 = por %p230, %p231
      %p233 = scmp.ne.s32.totalorder %s225, %s228
      %p234 = scmp.eq.s32.totalorder %s28, 0
      %p235 = por %p233, %p234
      %p236 = scmp.ne.s32.totalorder %s225, %s228
      %p237 = scmp.eq.s32.totalorder %s33, 1
      %p238 = por %p236, %p237
      %p239 = scmp.ne.s32.totalorder %s228, %s229
      %p240 = scmp.eq.s32.totalorder %s33, 0
      %p241 = por %p239, %p240
      %p242 = scmp.ne.s32.totalorder %s228, %s229
      %p243 = scmp.eq.s32.totalorder %s34, 1
      %p244 = por %p242, %p243
      %p246 = scmp.ne.s32.totalorder %s229, %s245
      %p247 = scmp.eq.s32.totalorder %s34, 0
      %p248 = por %p246, %p247
      %p249 = scmp.le.s32.totalorder 1, %s28
      %p250 = scmp.lt.s32.totalorder %s28, 3
      %p251 = pnand %p249, %p250
      %p252 = pneg %p251
      // Predicated region
      $region9: #{tpu_custom_call.1} parent=5 // pred_check
        _
      $region10: #{tpu_custom_call.1} parent=5 // pred_check_branch
        %254 = sbr.rel (%p251) target = $region12
      $region11: #{tpu_custom_call.1} parent=5 // pred_region
        %s255 = ssub.s32 %s28, 1
        // Predicated region
        $region13: #{tpu_custom_call.1} parent=11 // pred_check
          %p256 = pneg %p49
        $region14: #{tpu_custom_call.1} parent=11 // pred_check_branch
          %258 = sbr.rel (%p256) target = $region16
        $region15: #{tpu_custom_call.1} parent=11 // pred_region
          _
        $region16: #{tpu_custom_call.1} parent=11 // pred_fallthru
          _
        // Predicated region
        $region17: #{tpu_custom_call.1} parent=11 // pred_check
          %p259 = pneg %p124
        $region18: #{tpu_custom_call.1} parent=11 // pred_check_branch
          %261 = sbr.rel (%p259) target = $region20
        $region19: #{tpu_custom_call.1} parent=11 // pred_region
          %s263 = ssub.s32 768, 768
          %264 = vsyncadd [#allocation8], %s263
          %s265 = sshll.u32 [#allocation9], 4
          %s266 = int_to_ptr.vmem [resolvable:$true] %s265
          %271 = dma.hbm_to_vmem [thread:$0]  %s3, 768, %s266, [#allocation8], 64, 64, 4
        $region20: #{tpu_custom_call.1} parent=11 // pred_fallthru
          _
        // Predicated region
        $region21: #{tpu_custom_call.1} parent=11 // pred_check
          %p272 = pneg %p145
        $region22: #{tpu_custom_call.1} parent=11 // pred_check_branch
          %274 = sbr.rel (%p272) target = $region24
        $region23: #{tpu_custom_call.1} parent=11 // pred_region
          %s276 = ssub.s32 768, 768
          %277 = vsyncadd [#allocation11], %s276
          %s278 = sshll.u32 [#allocation10], 4
          %s279 = int_to_ptr.vmem [resolvable:$true] %s278
          %284 = dma.hbm_to_vmem [thread:$0]  %s4, 768, %s279, [#allocation11], 64, 64, 4
        $region24: #{tpu_custom_call.1} parent=11 // pred_fallthru
          _
        // Predicated region
        $region25: #{tpu_custom_call.1} parent=11 // pred_check
          %p285 = pneg %p166
        $region26: #{tpu_custom_call.1} parent=11 // pred_check_branch
          %287 = sbr.rel (%p285) target = $region28
        $region27: #{tpu_custom_call.1} parent=11 // pred_region
          _
        $region28: #{tpu_custom_call.1} parent=11 // pred_fallthru
          _
        // Predicated region
        $region29: #{tpu_custom_call.1} parent=11 // pred_check
          %p288 = pneg %p187
        $region30: #{tpu_custom_call.1} parent=11 // pred_check_branch
          %290 = sbr.rel (%p288) target = $region32
        $region31: #{tpu_custom_call.1} parent=11 // pred_region
          _
        $region32: #{tpu_custom_call.1} parent=11 // pred_fallthru
          _
      $region12: #{tpu_custom_call.1} parent=5 // pred_fallthru
        _
      %p291 = scmp.lt.s32.totalorder %s28, 2
      // Predicated region
      $region33: #{tpu_custom_call.1} parent=5 // pred_check
        %p292 = pneg %p291
      $region34: #{tpu_custom_call.1} parent=5 // pred_check_branch
        %294 = sbr.rel (%p292) target = $region36
      $region35: #{tpu_custom_call.1} parent=5 // pred_region
        // Predicated region
        $region37: #{tpu_custom_call.1} parent=35 // pred_check
          %p295 = pneg %p69
        $region38: #{tpu_custom_call.1} parent=35 // pred_check_branch
          %297 = sbr.rel (%p295) target = $region40
        $region39: #{tpu_custom_call.1} parent=35 // pred_region
          #allocation16 [shape = 'u32[6]{0}', space=smem, size = 0x18, scoped, tag = 'DMA stride descriptor']
          %s298 = sand.u32 %s59, 1
          %s299 = scalar_lea.sflag [#allocation5], %s298
          %s300 = sand.u32 %s59, 1
          %s301 = smul.addr %s300, 24
          %s302 = scalar_lea.vmem [#allocation4], %s301
          %s303 = smul.u32 8, %s28
          %s305 = ssub.s32 384, 384
          %306 = vsyncadd %s299, %s305
          %s307 = smul.addr %s303, 16
          %s308 = scalar_lea.hbm %s1, %s307
          %s310 = sshll.u32 1, 14
          %s311 = sxor.u32 4294967295, %s310
          %s313 = sld [smem:[#allocation0]]
          %s314 = sadd.s32 2, %s313
          %s316 = sshll.u32 7, 26
          %s317 = sxor.u32 4294967295, %s316
          %s318 = sand.u32 0, %s317
          %s319 = sshll.u32 %s314, 26
          %s320 = sor.u32 %s318, %s319
          %s321 = sshll.u32 %s302, 4
          %s322 = int_to_ptr.vmem [resolvable:$true] %s321
          %328 = sst [smem:[#allocation16]] 256
          %s329 = scalar_lea.smem [#allocation16], 1
          %330 = sst [smem:[%s329]] 128
          %s331 = scalar_lea.smem [#allocation16], 2
          %332 = sst [smem:[%s331]] 8
          %s333 = scalar_lea.smem [#allocation16], 3
          %334 = sst [smem:[%s333]] 16
          %s335 = scalar_lea.smem [#allocation16], 4
          %336 = sst [smem:[%s335]] 16
          %s337 = scalar_lea.smem [#allocation16], 5
          %338 = sst [smem:[%s337]] 1
          %340 = dma.general %s308, 384, %s322, %s299, 131072, [#allocation16], %s320, 0
        $region40: #{tpu_custom_call.1} parent=35 // pred_fallthru
          _
        // Predicated region
        $region41: #{tpu_custom_call.1} parent=35 // pred_check
          %p341 = pneg %p97
        $region42: #{tpu_custom_call.1} parent=35 // pred_check_branch
          %343 = sbr.rel (%p341) target = $region44
        $region43: #{tpu_custom_call.1} parent=35 // pred_region
          #allocation18 [shape = 'u32[6]{0}', space=smem, size = 0x18, scoped, tag = 'DMA stride descriptor']
          %s344 = sand.u32 %s28, 1
          %s345 = scalar_lea.sflag [#allocation8], %s344
          %s346 = sand.u32 %s87, 1
          %s347 = smul.addr %s346, 24
          %s348 = scalar_lea.vmem [#allocation7], %s347
          %s349 = ssub.s32 1, %s28
          %s350 = smul.u32 8, %s349
          %s352 = ssub.s32 384, 384
          %353 = vsyncadd %s345, %s352
          %s354 = smul.addr %s350, 16
          %s355 = scalar_lea.hbm %s2, %s354
          %s357 = sshll.u32 1, 14
          %s358 = sxor.u32 4294967295, %s357
          %s360 = sld [smem:[#allocation0]]
          %s361 = sadd.s32 2, %s360
          %s363 = sshll.u32 7, 26
          %s364 = sxor.u32 4294967295, %s363
          %s365 = sand.u32 0, %s364
          %s366 = sshll.u32 %s361, 26
          %s367 = sor.u32 %s365, %s366
          %s368 = sshll.u32 %s348, 4
          %s369 = int_to_ptr.vmem [resolvable:$true] %s368
          %375 = sst [smem:[#allocation18]] 256
          %s376 = scalar_lea.smem [#allocation18], 1
          %377 = sst [smem:[%s376]] 128
          %s378 = scalar_lea.smem [#allocation18], 2
          %379 = sst [smem:[%s378]] 8
          %s380 = scalar_lea.smem [#allocation18], 3
          %381 = sst [smem:[%s380]] 16
          %s382 = scalar_lea.smem [#allocation18], 4
          %383 = sst [smem:[%s382]] 16
          %s384 = scalar_lea.smem [#allocation18], 5
          %385 = sst [smem:[%s384]] 1
          %387 = dma.general %s355, 384, %s369, %s345, 131072, [#allocation18], %s367, 0
        $region44: #{tpu_custom_call.1} parent=35 // pred_fallthru
          _
      $region36: #{tpu_custom_call.1} parent=5 // pred_fallthru
        _
      %p388 = scmp.le.s32.totalorder 1, %s28
      %p389 = scmp.lt.s32.totalorder %s28, 3
      %p390 = pnand %p388, %p389
      %p391 = pneg %p390
      // Predicated region
      $region45: #{tpu_custom_call.1} parent=5 // pred_check
        _
      $region46: #{tpu_custom_call.1} parent=5 // pred_check_branch
        %393 = sbr.rel (%p390) target = $region48
      $region47: #{tpu_custom_call.1} parent=5 // pred_region
        %s394 = ssub.s32 %s28, 1
        %s395 = sand.u32 %s62, 1
        %s396 = scalar_lea.sflag [#allocation5], %s395
        %s397 = sand.u32 %s62, 1
        %s398 = smul.addr %s397, 24
        %s399 = scalar_lea.vmem [#allocation4], %s398
        // Predicated region
        $region49: #{tpu_custom_call.1} parent=47 // pred_check
          %p400 = pneg %p75
        $region50: #{tpu_custom_call.1} parent=47 // pred_check_branch
          %402 = sbr.rel (%p400) target = $region52
        $region51: #{tpu_custom_call.1} parent=47 // pred_region
          %403 = dma.done %s396, 384
        $region52: #{tpu_custom_call.1} parent=47 // pred_fallthru
          _
        %s404 = sand.u32 %s33, 1
        %s405 = scalar_lea.sflag [#allocation8], %s404
        %s406 = sand.u32 %s90, 1
        %s407 = smul.addr %s406, 24
        %s408 = scalar_lea.vmem [#allocation7], %s407
        // Predicated region
        $region53: #{tpu_custom_call.1} parent=47 // pred_check
          %p409 = pneg %p103
        $region54: #{tpu_custom_call.1} parent=47 // pred_check_branch
          %411 = sbr.rel (%p409) target = $region56
        $region55: #{tpu_custom_call.1} parent=47 // pred_region
          %412 = dma.done %s405, 384
        $region56: #{tpu_custom_call.1} parent=47 // pred_fallthru
          _
        // Predicated region
        $region57: #{tpu_custom_call.1} parent=47 // pred_check
          %p413 = pneg %p124
        $region58: #{tpu_custom_call.1} parent=47 // pred_check_branch
          %415 = sbr.rel (%p413) target = $region60
        $region59: #{tpu_custom_call.1} parent=47 // pred_region
          %416 = dma.done [#allocation8], 768
        $region60: #{tpu_custom_call.1} parent=47 // pred_fallthru
          _
        // Predicated region
        $region61: #{tpu_custom_call.1} parent=47 // pred_check
          %p417 = pneg %p145
        $region62: #{tpu_custom_call.1} parent=47 // pred_check_branch
          %419 = sbr.rel (%p417) target = $region64
        $region63: #{tpu_custom_call.1} parent=47 // pred_region
          %420 = dma.done [#allocation11], 768
        $region64: #{tpu_custom_call.1} parent=47 // pred_fallthru
          _
        %p421 = pneg %p49
        %p422 = pneg %p46
        %s423 = sand.u32 %s62, 1
        %s424 = scalar_lea.sflag [#allocation5], %s423
        %s425 = sand.u32 %s62, 1
        %s426 = smul.addr %s425, 24
        %s427 = scalar_lea.vmem [#allocation4], %s426
        %p428 = pneg %p75
        %p429 = pneg %p72
        %s430 = sand.u32 %s33, 1
        %s431 = scalar_lea.sflag [#allocation8], %s430
        %s432 = sand.u32 %s90, 1
        %s433 = smul.addr %s432, 24
        %s434 = scalar_lea.vmem [#allocation7], %s433
        %p435 = pneg %p103
        %p436 = pneg %p100
        %p437 = pneg %p124
        %p438 = pneg %p121
        %p439 = pneg %p145
        %p440 = pneg %p142
        %p441 = pneg %p166
        %p442 = pneg %p163
        %p443 = pneg %p187
        %p444 = pneg %p184
        %p445 = pneg %p213
        %p446 = pneg %p210
        %s447 = sand.u32 %s200, 1
        %s448 = scalar_lea.sflag [#allocation6], %s447
        %s449 = sand.u32 %s200, 1
        %s450 = smul.addr %s449, 8
        %s451 = scalar_lea.vmem [#allocation12], %s450
        %p452 = pneg %p241
        %p453 = pneg %p238
        %s454 = sand.u32 %s228, 1
        %s455 = scalar_lea.sflag [#allocation14], %s454
        %s456 = sand.u32 %s228, 1
        %s457 = smul.addr %s456, 8
        %s458 = scalar_lea.vmem [#allocation13], %s457
        %s459 = smul.u32 8, %s33
        %s460 = ssub.s32 1, %s33
        %s461 = smul.u32 8, %s460
        %s462 = smul.u32 8, %s33
        %s463 = ssub.s32 1, %s33
        %s464 = smul.u32 8, %s463
        %p466 = scmp.eq.s32.totalorder %s33, 0
        // Predicated region
        $region65: #{tpu_custom_call.1} parent=47 // pred_check
          %p467 = pneg %p466
        $region66: #{tpu_custom_call.1} parent=47 // pred_check_branch
          %469 = sbr.rel (%p467) target = $region68
        $region67: #{tpu_custom_call.1} parent=47 // pred_region
          %vm470 = vcmask 254976
          %471 = vst.msk [vmem:[#allocation2] sm:$0x3] %vm470, 0.0
          %472 = vst.msk [vmem:[#allocation3] sm:$0x3] %vm470, 0.0
        $region68: #{tpu_custom_call.1} parent=47 // pred_fallthru
          _
        %v473 = vld [vmem:[%s0] sm:$0x3]
        %v474 = vld [vmem:[#allocation9] sm:$0xf]
        %v475 = vld [vmem:[#allocation9 + $0x4] sm:$0xf]
        %v476 = vld [vmem:[#allocation9 + $0x8] sm:$0xf]
        %v477 = vld [vmem:[#allocation9 + $0xc] sm:$0xf]
        %v478 = vld [vmem:[#allocation9 + $0x10] sm:$0xf]
        %v479 = vld [vmem:[#allocation9 + $0x14] sm:$0xf]
        %v480 = vld [vmem:[#allocation9 + $0x18] sm:$0xf]
        %v481 = vld [vmem:[#allocation9 + $0x1c] sm:$0xf]
        %v482 = vld [vmem:[#allocation9 + $0x20] sm:$0xf]
        %v483 = vld [vmem:[#allocation9 + $0x24] sm:$0xf]
        %v484 = vld [vmem:[#allocation9 + $0x28] sm:$0xf]
        %v485 = vld [vmem:[#allocation9 + $0x2c] sm:$0xf]
        %v486 = vld [vmem:[#allocation10] sm:$0xf]
        %v487 = vld [vmem:[#allocation10 + $0x4] sm:$0xf]
        %v488 = vld [vmem:[#allocation10 + $0x8] sm:$0xf]
        %v489 = vld [vmem:[#allocation10 + $0xc] sm:$0xf]
        %v490 = vld [vmem:[#allocation10 + $0x10] sm:$0xf]
        %v491 = vld [vmem:[#allocation10 + $0x14] sm:$0xf]
        %v492 = vld [vmem:[#allocation10 + $0x18] sm:$0xf]
        %v493 = vld [vmem:[#allocation10 + $0x1c] sm:$0xf]
        %v494 = vld [vmem:[#allocation10 + $0x20] sm:$0xf]
        %v495 = vld [vmem:[#allocation10 + $0x24] sm:$0xf]
        %v496 = vld [vmem:[#allocation10 + $0x28] sm:$0xf]
        %v497 = vld [vmem:[#allocation10 + $0x2c] sm:$0xf]
        %v498 = vld [vmem:[%s5] sm:$0x1]
        %v499 = vld [vmem:[%s6] sm:$0x1]
        %s500 = smul.u32 %s33, 8
        %s501 = ssub.s32 1, %s33
        %s502 = smul.u32 %s501, 8
        %v503 = vld [vmem:[#allocation2] sm:$0x3]
        %v504 = vld [vmem:[#allocation3] sm:$0x3]
        %v505 = vld [vmem:[%s399] sm:$0x1]
        %s506 = scalar_lea.vmem %s399, 8 [#allocation4]
        %v507 = vld [vmem:[%s506] sm:$0x1]
        %s508 = scalar_lea.vmem %s399, 16 [#allocation4]
        %v509 = vld [vmem:[%s508] sm:$0x1]
        %v510 = vpack.c.bf16 %v503, %v503
        %v515 = vunpack.c.l.b16 %v474
        %v516 = vunpack.c.l.b16 %v475
        %v517 = vunpack.c.l.b16 %v476
        %v518 = vunpack.c.l.b16 %v477
        %v519 = vpack.c.b16 %v516, %v515
        %v520 = vpack.c.b16 %v518, %v517
        %vm523 = vcmask 261120
        %v525 = vsel %vm523, %v510, 0
        %527 = vmatprep.subr.bf16.mxu0 0
        %528 = vmatpush1.bf16.msra.mxu0 0
        %529 = vmatprep.subr.bf16.mxu0 0
        %530 = vmatpush1.bf16.msra.mxu0 0
        %531 = vmatprep.subr.bf16.mxu0 0
        %532 = vmatpush1.bf16.msra.mxu0 0
        %533 = vmatprep.subr.bf16.mxu0 0
        %534 = vmatpush1.bf16.msra.mxu0 0
        %535 = vmatprep.subr.bf16.mxu0 0
        %536 = vmatpush1.bf16.msra.mxu0 0
        %537 = vmatprep.subr.bf16.mxu0 0
        %538 = vmatpush1.bf16.msra.mxu0 0
        %539 = vmatprep.subr.bf16.mxu0 0
        %540 = vmatpush1.bf16.msra.mxu0 %v520
        %541 = vmatprep.subr.bf16.mxu0 0
        %542 = vmatpush1.bf16.msra.mxu0 %v519
        %543 = vmatprep.subr.bf16.mxu0 0
        %544 = vmatpush2.bf16.msra.mxu0 0
        %545 = vmatprep.subr.bf16.mxu0 0
        %546 = vmatpush2.bf16.msra.mxu0 0
        %547 = vmatprep.subr.bf16.mxu0 0
        %548 = vmatpush2.bf16.msra.mxu0 0
        %549 = vmatprep.subr.bf16.mxu0 0
        %550 = vmatpush2.bf16.msra.mxu0 0
        %551 = vmatprep.subr.bf16.mxu0 0
        %552 = vmatpush2.bf16.msra.mxu0 0
        %553 = vmatprep.subr.bf16.mxu0 0
        %554 = vmatpush2.bf16.msra.mxu0 0
        %555 = vmatprep.subr.bf16.mxu0 0
        %556 = vmatpush2.bf16.msra.mxu0 0
        %557 = vmatprep.subr.bf16.mxu0 0
        %558 = vmatpush2.bf16.msra.mxu0 0
        %559 = vmatprep.mubr.bf16.mxu0 0
        %560 = vmatmul.mubr.bf16.gmra.mxu0 %v525
        %v561 = vpop.f32.mrf.mxu0
        %v562 = vadd.f32 0.0, %v561
        %v563 = vpop.f32.mrf.mxu0
        %v564 = vpop.f32.mrf.mxu0
        %v565 = vpop.f32.mrf.mxu0
        %566 = vdwg.mxu0
        %v571 = vunpack.c.l.b16 %v478
        %v572 = vunpack.c.l.b16 %v479
        %v573 = vunpack.c.l.b16 %v480
        %v574 = vunpack.c.l.b16 %v481
        %v575 = vpack.c.b16 %v572, %v571
        %v576 = vpack.c.b16 %v574, %v573
        %579 = vmatprep.subr.bf16.mxu0 0
        %580 = vmatpush1.bf16.msra.mxu0 0
        %581 = vmatprep.subr.bf16.mxu0 0
        %582 = vmatpush1.bf16.msra.mxu0 0
        %583 = vmatprep.subr.bf16.mxu0 0
        %584 = vmatpush1.bf16.msra.mxu0 0
        %585 = vmatprep.subr.bf16.mxu0 0
        %586 = vmatpush1.bf16.msra.mxu0 0
        %587 = vmatprep.subr.bf16.mxu0 0
        %588 = vmatpush1.bf16.msra.mxu0 0
        %589 = vmatprep.subr.bf16.mxu0 0
        %590 = vmatpush1.bf16.msra.mxu0 0
        %591 = vmatprep.subr.bf16.mxu0 0
        %592 = vmatpush1.bf16.msra.mxu0 %v576
        %593 = vmatprep.subr.bf16.mxu0 0
        %594 = vmatpush1.bf16.msra.mxu0 %v575
        %595 = vmatprep.subr.bf16.mxu0 0
        %596 = vmatpush2.bf16.msra.mxu0 0
        %597 = vmatprep.subr.bf16.mxu0 0
        %598 = vmatpush2.bf16.msra.mxu0 0
        %599 = vmatprep.subr.bf16.mxu0 0
        %600 = vmatpush2.bf16.msra.mxu0 0
        %601 = vmatprep.subr.bf16.mxu0 0
        %602 = vmatpush2.bf16.msra.mxu0 0
        %603 = vmatprep.subr.bf16.mxu0 0
        %604 = vmatpush2.bf16.msra.mxu0 0
        %605 = vmatprep.subr.bf16.mxu0 0
        %606 = vmatpush2.bf16.msra.mxu0 0
        %607 = vmatprep.subr.bf16.mxu0 0
        %608 = vmatpush2.bf16.msra.mxu0 0
        %609 = vmatprep.subr.bf16.mxu0 0
        %610 = vmatpush2.bf16.msra.mxu0 0
        %611 = vmatprep.mubr.bf16.mxu0 0
        %612 = vmatmul.mubr.bf16.gmra.mxu0 %v525
        %v613 = vpop.f32.mrf.mxu0
        %v614 = vadd.f32 0.0, %v613
        %v615 = vpop.f32.mrf.mxu0
        %v616 = vpop.f32.mrf.mxu0
        %v617 = vpop.f32.mrf.mxu0
        %618 = vdwg.mxu0
        %v619 = vunpack.c.l.bf16 %v505
        %v620 = vadd.f32 %v619, %v562
        %v621 = vxor.u32 %v620, 2147483648
        %v622 = vmul.f32 %v621, 1.442695
        %v623 = vpow.pop %v622
        %v624 = vadd.f32 %v623, 1.0
        %v625 = vrcp.pop %v624
        %v626 = vmul.f32 1.0, %v625
        %v627 = vunpack.c.l.bf16 %v507
        %v628 = vadd.f32 %v627, %v614
        %v629 = vxor.u32 %v628, 2147483648
        %v630 = vmul.f32 %v629, 1.442695
        %v631 = vpow.pop %v630
        %v632 = vadd.f32 %v631, 1.0
        %v633 = vrcp.pop %v632
        %v634 = vmul.f32 1.0, %v633
        %v635 = vunpack.c.l.bf16 %v509
        %v637 = vlaneseq
        %v638 = vshrl.u32 %v637, 7
        %v639 = vsub.s32 0, %v638
        %v640 = vrot.slane %v498, %v639
        %v646 = vunpack.c.l.b16 %v482
        %v647 = vunpack.c.l.b16 %v483
        %v648 = vunpack.c.l.b16 %v484
        %v649 = vunpack.c.l.b16 %v485
        %v650 = vpack.c.b16 %v647, %v646
        %v651 = vpack.c.b16 %v649, %v648
        %654 = vmatprep.subr.bf16.mxu0 0
        %655 = vmatpush1.bf16.msra.mxu0 0
        %656 = vmatprep.subr.bf16.mxu0 0
        %657 = vmatpush1.bf16.msra.mxu0 0
        %658 = vmatprep.subr.bf16.mxu0 0
        %659 = vmatpush1.bf16.msra.mxu0 0
        %660 = vmatprep.subr.bf16.mxu0 0
        %661 = vmatpush1.bf16.msra.mxu0 0
        %662 = vmatprep.subr.bf16.mxu0 0
        %663 = vmatpush1.bf16.msra.mxu0 0
        %664 = vmatprep.subr.bf16.mxu0 0
        %665 = vmatpush1.bf16.msra.mxu0 0
        %666 = vmatprep.subr.bf16.mxu0 0
        %667 = vmatpush1.bf16.msra.mxu0 %v651
        %668 = vmatprep.subr.bf16.mxu0 0
        %669 = vmatpush1.bf16.msra.mxu0 %v650
        %670 = vmatprep.subr.bf16.mxu0 0
        %671 = vmatpush2.bf16.msra.mxu0 0
        %672 = vmatprep.subr.bf16.mxu0 0
        %673 = vmatpush2.bf16.msra.mxu0 0
        %674 = vmatprep.subr.bf16.mxu0 0
        %675 = vmatpush2.bf16.msra.mxu0 0
        %676 = vmatprep.subr.bf16.mxu0 0
        %677 = vmatpush2.bf16.msra.mxu0 0
        %678 = vmatprep.subr.bf16.mxu0 0
        %679 = vmatpush2.bf16.msra.mxu0 0
        %680 = vmatprep.subr.bf16.mxu0 0
        %681 = vmatpush2.bf16.msra.mxu0 0
        %682 = vmatprep.subr.bf16.mxu0 0
        %683 = vmatpush2.bf16.msra.mxu0 0
        %684 = vmatprep.subr.bf16.mxu0 0
        %685 = vmatpush2.bf16.msra.mxu0 0
        %686 = vmatprep.mubr.bf16.mxu0 0
        %687 = vmatmul.mubr.bf16.gmra.mxu0 %v525
        %v688 = vpop.f32.mrf.mxu0
        %v689 = vadd.f32 %v640, %v688
        %v690 = vpop.f32.mrf.mxu0
        %v691 = vpop.f32.mrf.mxu0
        %v692 = vpop.f32.mrf.mxu0
        %693 = vdwg.mxu0
        %v694 = vmul.f32 %v626, %v689
        %v695 = vadd.f32 %v635, %v694
        %v696 = vtanh.pop %v695
        %v697 = vsub.f32 %v503, %v696
        %v698 = vmul.f32 %v634, %v697
        %v699 = vadd.f32 %v696, %v698
        %v700 = vstv %s500
        %vm701 = vcmp.gt.s32.totalorder %v473, %v700
        %v702 = vsel %vm701, 1, 0
        %703 = vset.pattern.permute.xlu0 0
        %704 = vperm.xlu0 %703, %v702
        %v705 = vpop.permute.xlu0 %704
        %vm706 = vcmp.eq.s32.totalorder %v705, 1
        %v707 = vsel %vm706, %v699, %v503
        %v708 = vsel %vm706, %v699, 0.0
        %v709 = vpack.c.bf16 %v708, %v708
        %vm710 = vcmask 253952
        %711 = vst.msk [vmem:[%s451] sm:$0x1] %vm710, %v709
        %s712 = scalar_lea.vmem %s408, 7 [#allocation7]
        %v713 = vld [vmem:[%s712] sm:$0x1]
        %s714 = scalar_lea.vmem %s408, 15 [#allocation7]
        %v715 = vld [vmem:[%s714] sm:$0x1]
        %s716 = scalar_lea.vmem %s408, 23 [#allocation7]
        %v717 = vld [vmem:[%s716] sm:$0x1]
        %v718 = vpack.c.bf16 %v504, %v504
        %v723 = vunpack.c.l.b16 %v486
        %v724 = vunpack.c.l.b16 %v487
        %v725 = vunpack.c.l.b16 %v488
        %v726 = vunpack.c.l.b16 %v489
        %v727 = vpack.c.b16 %v724, %v723
        %v728 = vpack.c.b16 %v726, %v725
        %v732 = vsel %vm523, %v718, 0
        %734 = vmatprep.subr.bf16.mxu0 0
        %735 = vmatpush1.bf16.msra.mxu0 0
        %736 = vmatprep.subr.bf16.mxu0 0
        %737 = vmatpush1.bf16.msra.mxu0 0
        %738 = vmatprep.subr.bf16.mxu0 0
        %739 = vmatpush1.bf16.msra.mxu0 0
        %740 = vmatprep.subr.bf16.mxu0 0
        %741 = vmatpush1.bf16.msra.mxu0 0
        %742 = vmatprep.subr.bf16.mxu0 0
        %743 = vmatpush1.bf16.msra.mxu0 0
        %744 = vmatprep.subr.bf16.mxu0 0
        %745 = vmatpush1.bf16.msra.mxu0 0
        %746 = vmatprep.subr.bf16.mxu0 0
        %747 = vmatpush1.bf16.msra.mxu0 %v728
        %748 = vmatprep.subr.bf16.mxu0 0
        %749 = vmatpush1.bf16.msra.mxu0 %v727
        %750 = vmatprep.subr.bf16.mxu0 0
        %751 = vmatpush2.bf16.msra.mxu0 0
        %752 = vmatprep.subr.bf16.mxu0 0
        %753 = vmatpush2.bf16.msra.mxu0 0
        %754 = vmatprep.subr.bf16.mxu0 0
        %755 = vmatpush2.bf16.msra.mxu0 0
        %756 = vmatprep.subr.bf16.mxu0 0
        %757 = vmatpush2.bf16.msra.mxu0 0
        %758 = vmatprep.subr.bf16.mxu0 0
        %759 = vmatpush2.bf16.msra.mxu0 0
        %760 = vmatprep.subr.bf16.mxu0 0
        %761 = vmatpush2.bf16.msra.mxu0 0
        %762 = vmatprep.subr.bf16.mxu0 0
        %763 = vmatpush2.bf16.msra.mxu0 0
        %764 = vmatprep.subr.bf16.mxu0 0
        %765 = vmatpush2.bf16.msra.mxu0 0
        %766 = vmatprep.mubr.bf16.mxu0 0
        %767 = vmatmul.mubr.bf16.gmra.mxu0 %v732
        %v768 = vpop.f32.mrf.mxu0
        %v769 = vadd.f32 0.0, %v768
        %v770 = vpop.f32.mrf.mxu0
        %v771 = vpop.f32.mrf.mxu0
        %v772 = vpop.f32.mrf.mxu0
        %773 = vdwg.mxu0
        %v778 = vunpack.c.l.b16 %v490
        %v779 = vunpack.c.l.b16 %v491
        %v780 = vunpack.c.l.b16 %v492
        %v781 = vunpack.c.l.b16 %v493
        %v782 = vpack.c.b16 %v779, %v778
        %v783 = vpack.c.b16 %v781, %v780
        %786 = vmatprep.subr.bf16.mxu0 0
        %787 = vmatpush1.bf16.msra.mxu0 0
        %788 = vmatprep.subr.bf16.mxu0 0
        %789 = vmatpush1.bf16.msra.mxu0 0
        %790 = vmatprep.subr.bf16.mxu0 0
        %791 = vmatpush1.bf16.msra.mxu0 0
        %792 = vmatprep.subr.bf16.mxu0 0
        %793 = vmatpush1.bf16.msra.mxu0 0
        %794 = vmatprep.subr.bf16.mxu0 0
        %795 = vmatpush1.bf16.msra.mxu0 0
        %796 = vmatprep.subr.bf16.mxu0 0
        %797 = vmatpush1.bf16.msra.mxu0 0
        %798 = vmatprep.subr.bf16.mxu0 0
        %799 = vmatpush1.bf16.msra.mxu0 %v783
        %800 = vmatprep.subr.bf16.mxu0 0
        %801 = vmatpush1.bf16.msra.mxu0 %v782
        %802 = vmatprep.subr.bf16.mxu0 0
        %803 = vmatpush2.bf16.msra.mxu0 0
        %804 = vmatprep.subr.bf16.mxu0 0
        %805 = vmatpush2.bf16.msra.mxu0 0
        %806 = vmatprep.subr.bf16.mxu0 0
        %807 = vmatpush2.bf16.msra.mxu0 0
        %808 = vmatprep.subr.bf16.mxu0 0
        %809 = vmatpush2.bf16.msra.mxu0 0
        %810 = vmatprep.subr.bf16.mxu0 0
        %811 = vmatpush2.bf16.msra.mxu0 0
        %812 = vmatprep.subr.bf16.mxu0 0
        %813 = vmatpush2.bf16.msra.mxu0 0
        %814 = vmatprep.subr.bf16.mxu0 0
        %815 = vmatpush2.bf16.msra.mxu0 0
        %816 = vmatprep.subr.bf16.mxu0 0
        %817 = vmatpush2.bf16.msra.mxu0 0
        %818 = vmatprep.mubr.bf16.mxu0 0
        %819 = vmatmul.mubr.bf16.gmra.mxu0 %v732
        %v820 = vpop.f32.mrf.mxu0
        %v821 = vadd.f32 0.0, %v820
        %v822 = vpop.f32.mrf.mxu0
        %v823 = vpop.f32.mrf.mxu0
        %v824 = vpop.f32.mrf.mxu0
        %825 = vdwg.mxu0
        %v826 = vunpack.c.l.bf16 %v713
        %v827 = vadd.f32 %v826, %v769
        %v828 = vxor.u32 %v827, 2147483648
        %v829 = vmul.f32 %v828, 1.442695
        %v830 = vpow.pop %v829
        %v831 = vadd.f32 %v830, 1.0
        %v832 = vrcp.pop %v831
        %v833 = vmul.f32 1.0, %v832
        %v834 = vunpack.c.l.bf16 %v715
        %v835 = vadd.f32 %v834, %v821
        %v836 = vxor.u32 %v835, 2147483648
        %v837 = vmul.f32 %v836, 1.442695
        %v838 = vpow.pop %v837
        %v839 = vadd.f32 %v838, 1.0
        %v840 = vrcp.pop %v839
        %v841 = vmul.f32 1.0, %v840
        %v842 = vunpack.c.l.bf16 %v717
        %v844 = vlaneseq
        %v845 = vshrl.u32 %v844, 7
        %v846 = vsub.s32 0, %v845
        %v847 = vrot.slane %v499, %v846
        %v853 = vunpack.c.l.b16 %v494
        %v854 = vunpack.c.l.b16 %v495
        %v855 = vunpack.c.l.b16 %v496
        %v856 = vunpack.c.l.b16 %v497
        %v857 = vpack.c.b16 %v854, %v853
        %v858 = vpack.c.b16 %v856, %v855
        %861 = vmatprep.subr.bf16.mxu0 0
        %862 = vmatpush1.bf16.msra.mxu0 0
        %863 = vmatprep.subr.bf16.mxu0 0
        %864 = vmatpush1.bf16.msra.mxu0 0
        %865 = vmatprep.subr.bf16.mxu0 0
        %866 = vmatpush1.bf16.msra.mxu0 0
        %867 = vmatprep.subr.bf16.mxu0 0
        %868 = vmatpush1.bf16.msra.mxu0 0
        %869 = vmatprep.subr.bf16.mxu0 0
        %870 = vmatpush1.bf16.msra.mxu0 0
        %871 = vmatprep.subr.bf16.mxu0 0
        %872 = vmatpush1.bf16.msra.mxu0 0
        %873 = vmatprep.subr.bf16.mxu0 0
        %874 = vmatpush1.bf16.msra.mxu0 %v858
        %875 = vmatprep.subr.bf16.mxu0 0
        %876 = vmatpush1.bf16.msra.mxu0 %v857
        %877 = vmatprep.subr.bf16.mxu0 0
        %878 = vmatpush2.bf16.msra.mxu0 0
        %879 = vmatprep.subr.bf16.mxu0 0
        %880 = vmatpush2.bf16.msra.mxu0 0
        %881 = vmatprep.subr.bf16.mxu0 0
        %882 = vmatpush2.bf16.msra.mxu0 0
        %883 = vmatprep.subr.bf16.mxu0 0
        %884 = vmatpush2.bf16.msra.mxu0 0
        %885 = vmatprep.subr.bf16.mxu0 0
        %886 = vmatpush2.bf16.msra.mxu0 0
        %887 = vmatprep.subr.bf16.mxu0 0
        %888 = vmatpush2.bf16.msra.mxu0 0
        %889 = vmatprep.subr.bf16.mxu0 0
        %890 = vmatpush2.bf16.msra.mxu0 0
        %891 = vmatprep.subr.bf16.mxu0 0
        %892 = vmatpush2.bf16.msra.mxu0 0
        %893 = vmatprep.mubr.bf16.mxu0 0
        %894 = vmatmul.mubr.bf16.gmra.mxu0 %v732
        %v895 = vpop.f32.mrf.mxu0
        %v896 = vadd.f32 %v847, %v895
        %v897 = vpop.f32.mrf.mxu0
        %v898 = vpop.f32.mrf.mxu0
        %v899 = vpop.f32.mrf.mxu0
        %900 = vdwg.mxu0
        %v901 = vmul.f32 %v833, %v896
        %v902 = vadd.f32 %v842, %v901
        %v903 = vtanh.pop %v902
        %v904 = vsub.f32 %v504, %v903
        %v905 = vmul.f32 %v841, %v904
        %v906 = vadd.f32 %v903, %v905
        %s907 = sadd.s32 %s502, 7
        %v908 = vstv %s907
        %vm909 = vcmp.gt.s32.totalorder %v473, %v908
        %v910 = vsel %vm909, 1, 0
        %911 = vset.pattern.permute.xlu0 0
        %912 = vperm.xlu0 %911, %v910
        %v913 = vpop.permute.xlu0 %912
        %vm914 = vcmp.eq.s32.totalorder %v913, 1
        %v915 = vsel %vm914, %v906, %v504
        %v916 = vsel %vm914, %v906, 0.0
        %v917 = vpack.c.bf16 %v916, %v916
        %s918 = scalar_lea.vmem %s458, 7 [#allocation13]
        %919 = vst.msk [vmem:[%s918] sm:$0x1] %vm710, %v917
        %s920 = scalar_lea.vmem %s399, 1 [#allocation4]
        %v921 = vld [vmem:[%s920] sm:$0x1]
        %s922 = scalar_lea.vmem %s399, 9 [#allocation4]
        %v923 = vld [vmem:[%s922] sm:$0x1]
        %s924 = scalar_lea.vmem %s399, 17 [#allocation4]
        %v925 = vld [vmem:[%s924] sm:$0x1]
        %v926 = vpack.c.bf16 %v707, %v707
        %v928 = vsel %vm523, %v926, 0
        %930 = vmatprep.subr.bf16.mxu0 0
        %931 = vmatpush1.bf16.msra.mxu0 0
        %932 = vmatprep.subr.bf16.mxu0 0
        %933 = vmatpush1.bf16.msra.mxu0 0
        %934 = vmatprep.subr.bf16.mxu0 0
        %935 = vmatpush1.bf16.msra.mxu0 0
        %936 = vmatprep.subr.bf16.mxu0 0
        %937 = vmatpush1.bf16.msra.mxu0 0
        %938 = vmatprep.subr.bf16.mxu0 0
        %939 = vmatpush1.bf16.msra.mxu0 0
        %940 = vmatprep.subr.bf16.mxu0 0
        %941 = vmatpush1.bf16.msra.mxu0 0
        %942 = vmatprep.subr.bf16.mxu0 0
        %943 = vmatpush1.bf16.msra.mxu0 %v520
        %944 = vmatprep.subr.bf16.mxu0 0
        %945 = vmatpush1.bf16.msra.mxu0 %v519
        %946 = vmatprep.subr.bf16.mxu0 0
        %947 = vmatpush2.bf16.msra.mxu0 0
        %948 = vmatprep.subr.bf16.mxu0 0
        %949 = vmatpush2.bf16.msra.mxu0 0
        %950 = vmatprep.subr.bf16.mxu0 0
        %951 = vmatpush2.bf16.msra.mxu0 0
        %952 = vmatprep.subr.bf16.mxu0 0
        %953 = vmatpush2.bf16.msra.mxu0 0
        %954 = vmatprep.subr.bf16.mxu0 0
        %955 = vmatpush2.bf16.msra.mxu0 0
        %956 = vmatprep.subr.bf16.mxu0 0
        %957 = vmatpush2.bf16.msra.mxu0 0
        %958 = vmatprep.subr.bf16.mxu0 0
        %959 = vmatpush2.bf16.msra.mxu0 0
        %960 = vmatprep.subr.bf16.mxu0 0
        %961 = vmatpush2.bf16.msra.mxu0 0
        %962 = vmatprep.mubr.bf16.mxu0 0
        %963 = vmatmul.mubr.bf16.gmra.mxu0 %v928
        %v964 = vpop.f32.mrf.mxu0
        %v965 = vadd.f32 0.0, %v964
        %v966 = vpop.f32.mrf.mxu0
        %v967 = vpop.f32.mrf.mxu0
        %v968 = vpop.f32.mrf.mxu0
        %969 = vdwg.mxu0
        %970 = vmatprep.subr.bf16.mxu0 0
        %971 = vmatpush1.bf16.msra.mxu0 0
        %972 = vmatprep.subr.bf16.mxu0 0
        %973 = vmatpush1.bf16.msra.mxu0 0
        %974 = vmatprep.subr.bf16.mxu0 0
        %975 = vmatpush1.bf16.msra.mxu0 0
        %976 = vmatprep.subr.bf16.mxu0 0
        %977 = vmatpush1.bf16.msra.mxu0 0
        %978 = vmatprep.subr.bf16.mxu0 0
        %979 = vmatpush1.bf16.msra.mxu0 0
        %980 = vmatprep.subr.bf16.mxu0 0
        %981 = vmatpush1.bf16.msra.mxu0 0
        %982 = vmatprep.subr.bf16.mxu0 0
        %983 = vmatpush1.bf16.msra.mxu0 %v576
        %984 = vmatprep.subr.bf16.mxu0 0
        %985 = vmatpush1.bf16.msra.mxu0 %v575
        %986 = vmatprep.subr.bf16.mxu0 0
        %987 = vmatpush2.bf16.msra.mxu0 0
        %988 = vmatprep.subr.bf16.mxu0 0
        %989 = vmatpush2.bf16.msra.mxu0 0
        %990 = vmatprep.subr.bf16.mxu0 0
        %991 = vmatpush2.bf16.msra.mxu0 0
        %992 = vmatprep.subr.bf16.mxu0 0
        %993 = vmatpush2.bf16.msra.mxu0 0
        %994 = vmatprep.subr.bf16.mxu0 0
        %995 = vmatpush2.bf16.msra.mxu0 0
        %996 = vmatprep.subr.bf16.mxu0 0
        %997 = vmatpush2.bf16.msra.mxu0 0
        %998 = vmatprep.subr.bf16.mxu0 0
        %999 = vmatpush2.bf16.msra.mxu0 0
        %1000 = vmatprep.subr.bf16.mxu0 0
        %1001 = vmatpush2.bf16.msra.mxu0 0
        %1002 = vmatprep.mubr.bf16.mxu0 0
        %1003 = vmatmul.mubr.bf16.gmra.mxu0 %v928
        %v1004 = vpop.f32.mrf.mxu0
        %v1005 = vadd.f32 0.0, %v1004
        %v1006 = vpop.f32.mrf.mxu0
        %v1007 = vpop.f32.mrf.mxu0
        %v1008 = vpop.f32.mrf.mxu0
        %1009 = vdwg.mxu0
        %v1010 = vunpack.c.l.bf16 %v921
        %v1011 = vadd.f32 %v1010, %v965
        %v1012 = vxor.u32 %v1011, 2147483648
        %v1013 = vmul.f32 %v1012, 1.442695
        %v1014 = vpow.pop %v1013
        %v1015 = vadd.f32 %v1014, 1.0
        %v1016 = vrcp.pop %v1015
        %v1017 = vmul.f32 1.0, %v1016
        %v1018 = vunpack.c.l.bf16 %v923
        %v1019 = vadd.f32 %v1018, %v1005
        %v1020 = vxor.u32 %v1019, 2147483648
        %v1021 = vmul.f32 %v1020, 1.442695
        %v1022 = vpow.pop %v1021
        %v1023 = vadd.f32 %v1022, 1.0
        %v1024 = vrcp.pop %v1023
        %v1025 = vmul.f32 1.0, %v1024
        %v1026 = vunpack.c.l.bf16 %v925
        %1027 = vmatprep.subr.bf16.mxu0 0
        %1028 = vmatpush1.bf16.msra.mxu0 0
        %1029 = vmatprep.subr.bf16.mxu0 0
        %1030 = vmatpush1.bf16.msra.mxu0 0
        %1031 = vmatprep.subr.bf16.mxu0 0
        %1032 = vmatpush1.bf16.msra.mxu0 0
        %1033 = vmatprep.subr.bf16.mxu0 0
        %1034 = vmatpush1.bf16.msra.mxu0 0
        %1035 = vmatprep.subr.bf16.mxu0 0
        %1036 = vmatpush1.bf16.msra.mxu0 0
        %1037 = vmatprep.subr.bf16.mxu0 0
        %1038 = vmatpush1.bf16.msra.mxu0 0
        %1039 = vmatprep.subr.bf16.mxu0 0
        %1040 = vmatpush1.bf16.msra.mxu0 %v651
        %1041 = vmatprep.subr.bf16.mxu0 0
        %1042 = vmatpush1.bf16.msra.mxu0 %v650
        %1043 = vmatprep.subr.bf16.mxu0 0
        %1044 = vmatpush2.bf16.msra.mxu0 0
        %1045 = vmatprep.subr.bf16.mxu0 0
        %1046 = vmatpush2.bf16.msra.mxu0 0
        %1047 = vmatprep.subr.bf16.mxu0 0
        %1048 = vmatpush2.bf16.msra.mxu0 0
        %1049 = vmatprep.subr.bf16.mxu0 0
        %1050 = vmatpush2.bf16.msra.mxu0 0
        %1051 = vmatprep.subr.bf16.mxu0 0
        %1052 = vmatpush2.bf16.msra.mxu0 0
        %1053 = vmatprep.subr.bf16.mxu0 0
        %1054 = vmatpush2.bf16.msra.mxu0 0
        %1055 = vmatprep.subr.bf16.mxu0 0
        %1056 = vmatpush2.bf16.msra.mxu0 0
        %1057 = vmatprep.subr.bf16.mxu0 0
        %1058 = vmatpush2.bf16.msra.mxu0 0
        %1059 = vmatprep.mubr.bf16.mxu0 0
        %1060 = vmatmul.mubr.bf16.gmra.mxu0 %v928
        %v1061 = vpop.f32.mrf.mxu0
        %v1062 = vadd.f32 %v640, %v1061
        %v1063 = vpop.f32.mrf.mxu0
        %v1064 = vpop.f32.mrf.mxu0
        %v1065 = vpop.f32.mrf.mxu0
        %1066 = vdwg.mxu0
        %v1067 = vmul.f32 %v1017, %v1062
        %v1068 = vadd.f32 %v1026, %v1067
        %v1069 = vtanh.pop %v1068
        %v1070 = vsub.f32 %v707, %v1069
        %v1071 = vmul.f32 %v1025, %v1070
        %v1072 = vadd.f32 %v1069, %v1071
        %s1073 = sadd.s32 %s500, 1
        %v1074 = vstv %s1073
        %vm1075 = vcmp.gt.s32.totalorder %v473, %v1074
        %v1076 = vsel %vm1075, 1, 0
        %1077 = vset.pattern.permute.xlu0 0
        %1078 = vperm.xlu0 %1077, %v1076
        %v1079 = vpop.permute.xlu0 %1078
        %vm1080 = vcmp.eq.s32.totalorder %v1079, 1
        %v1081 = vsel %vm1080, %v1072, %v707
        %v1082 = vsel %vm1080, %v1072, 0.0
        %v1083 = vpack.c.bf16 %v1082, %v1082
        %s1084 = scalar_lea.vmem %s451, 1 [#allocation12]
        %1085 = vst.msk [vmem:[%s1084] sm:$0x1] %vm710, %v1083
        %s1086 = scalar_lea.vmem %s408, 6 [#allocation7]
        %v1087 = vld [vmem:[%s1086] sm:$0x1]
        %s1088 = scalar_lea.vmem %s408, 14 [#allocation7]
        %v1089 = vld [vmem:[%s1088] sm:$0x1]
        %s1090 = scalar_lea.vmem %s408, 22 [#allocation7]
        %v1091 = vld [vmem:[%s1090] sm:$0x1]
        %v1092 = vpack.c.bf16 %v915, %v915
        %v1094 = vsel %vm523, %v1092, 0
        %1096 = vmatprep.subr.bf16.mxu0 0
        %1097 = vmatpush1.bf16.msra.mxu0 0
        %1098 = vmatprep.subr.bf16.mxu0 0
        %1099 = vmatpush1.bf16.msra.mxu0 0
        %1100 = vmatprep.subr.bf16.mxu0 0
        %1101 = vmatpush1.bf16.msra.mxu0 0
        %1102 = vmatprep.subr.bf16.mxu0 0
        %1103 = vmatpush1.bf16.msra.mxu0 0
        %1104 = vmatprep.subr.bf16.mxu0 0
        %1105 = vmatpush1.bf16.msra.mxu0 0
        %1106 = vmatprep.subr.bf16.mxu0 0
        %1107 = vmatpush1.bf16.msra.mxu0 0
        %1108 = vmatprep.subr.bf16.mxu0 0
        %1109 = vmatpush1.bf16.msra.mxu0 %v728
        %1110 = vmatprep.subr.bf16.mxu0 0
        %1111 = vmatpush1.bf16.msra.mxu0 %v727
        %1112 = vmatprep.subr.bf16.mxu0 0
        %1113 = vmatpush2.bf16.msra.mxu0 0
        %1114 = vmatprep.subr.bf16.mxu0 0
        %1115 = vmatpush2.bf16.msra.mxu0 0
        %1116 = vmatprep.subr.bf16.mxu0 0
        %1117 = vmatpush2.bf16.msra.mxu0 0
        %1118 = vmatprep.subr.bf16.mxu0 0
        %1119 = vmatpush2.bf16.msra.mxu0 0
        %1120 = vmatprep.subr.bf16.mxu0 0
        %1121 = vmatpush2.bf16.msra.mxu0 0
        %1122 = vmatprep.subr.bf16.mxu0 0
        %1123 = vmatpush2.bf16.msra.mxu0 0
        %1124 = vmatprep.subr.bf16.mxu0 0
        %1125 = vmatpush2.bf16.msra.mxu0 0
        %1126 = vmatprep.subr.bf16.mxu0 0
        %1127 = vmatpush2.bf16.msra.mxu0 0
        %1128 = vmatprep.mubr.bf16.mxu0 0
        %1129 = vmatmul.mubr.bf16.gmra.mxu0 %v1094
        %v1130 = vpop.f32.mrf.mxu0
        %v1131 = vadd.f32 0.0, %v1130
        %v1132 = vpop.f32.mrf.mxu0
        %v1133 = vpop.f32.mrf.mxu0
        %v1134 = vpop.f32.mrf.mxu0
        %1135 = vdwg.mxu0
        %1136 = vmatprep.subr.bf16.mxu0 0
        %1137 = vmatpush1.bf16.msra.mxu0 0
        %1138 = vmatprep.subr.bf16.mxu0 0
        %1139 = vmatpush1.bf16.msra.mxu0 0
        %1140 = vmatprep.subr.bf16.mxu0 0
        %1141 = vmatpush1.bf16.msra.mxu0 0
        %1142 = vmatprep.subr.bf16.mxu0 0
        %1143 = vmatpush1.bf16.msra.mxu0 0
        %1144 = vmatprep.subr.bf16.mxu0 0
        %1145 = vmatpush1.bf16.msra.mxu0 0
        %1146 = vmatprep.subr.bf16.mxu0 0
        %1147 = vmatpush1.bf16.msra.mxu0 0
        %1148 = vmatprep.subr.bf16.mxu0 0
        %1149 = vmatpush1.bf16.msra.mxu0 %v783
        %1150 = vmatprep.subr.bf16.mxu0 0
        %1151 = vmatpush1.bf16.msra.mxu0 %v782
        %1152 = vmatprep.subr.bf16.mxu0 0
        %1153 = vmatpush2.bf16.msra.mxu0 0
        %1154 = vmatprep.subr.bf16.mxu0 0
        %1155 = vmatpush2.bf16.msra.mxu0 0
        %1156 = vmatprep.subr.bf16.mxu0 0
        %1157 = vmatpush2.bf16.msra.mxu0 0
        %1158 = vmatprep.subr.bf16.mxu0 0
        %1159 = vmatpush2.bf16.msra.mxu0 0
        %1160 = vmatprep.subr.bf16.mxu0 0
        %1161 = vmatpush2.bf16.msra.mxu0 0
        %1162 = vmatprep.subr.bf16.mxu0 0
        %1163 = vmatpush2.bf16.msra.mxu0 0
        %1164 = vmatprep.subr.bf16.mxu0 0
        %1165 = vmatpush2.bf16.msra.mxu0 0
        %1166 = vmatprep.subr.bf16.mxu0 0
        %1167 = vmatpush2.bf16.msra.mxu0 0
        %1168 = vmatprep.mubr.bf16.mxu0 0
        %1169 = vmatmul.mubr.bf16.gmra.mxu0 %v1094
        %v1170 = vpop.f32.mrf.mxu0
        %v1171 = vadd.f32 0.0, %v1170
        %v1172 = vpop.f32.mrf.mxu0
        %v1173 = vpop.f32.mrf.mxu0
        %v1174 = vpop.f32.mrf.mxu0
        %1175 = vdwg.mxu0
        %v1176 = vunpack.c.l.bf16 %v1087
        %v1177 = vadd.f32 %v1176, %v1131
        %v1178 = vxor.u32 %v1177, 2147483648
        %v1179 = vmul.f32 %v1178, 1.442695
        %v1180 = vpow.pop %v1179
        %v1181 = vadd.f32 %v1180, 1.0
        %v1182 = vrcp.pop %v1181
        %v1183 = vmul.f32 1.0, %v1182
        %v1184 = vunpack.c.l.bf16 %v1089
        %v1185 = vadd.f32 %v1184, %v1171
        %v1186 = vxor.u32 %v1185, 2147483648
        %v1187 = vmul.f32 %v1186, 1.442695
        %v1188 = vpow.pop %v1187
        %v1189 = vadd.f32 %v1188, 1.0
        %v1190 = vrcp.pop %v1189
        %v1191 = vmul.f32 1.0, %v1190
        %v1192 = vunpack.c.l.bf16 %v1091
        %1193 = vmatprep.subr.bf16.mxu0 0
        %1194 = vmatpush1.bf16.msra.mxu0 0
        %1195 = vmatprep.subr.bf16.mxu0 0
        %1196 = vmatpush1.bf16.msra.mxu0 0
        %1197 = vmatprep.subr.bf16.mxu0 0
        %1198 = vmatpush1.bf16.msra.mxu0 0
        %1199 = vmatprep.subr.bf16.mxu0 0
        %1200 = vmatpush1.bf16.msra.mxu0 0
        %1201 = vmatprep.subr.bf16.mxu0 0
        %1202 = vmatpush1.bf16.msra.mxu0 0
        %1203 = vmatprep.subr.bf16.mxu0 0
        %1204 = vmatpush1.bf16.msra.mxu0 0
        %1205 = vmatprep.subr.bf16.mxu0 0
        %1206 = vmatpush1.bf16.msra.mxu0 %v858
        %1207 = vmatprep.subr.bf16.mxu0 0
        %1208 = vmatpush1.bf16.msra.mxu0 %v857
        %1209 = vmatprep.subr.bf16.mxu0 0
        %1210 = vmatpush2.bf16.msra.mxu0 0
        %1211 = vmatprep.subr.bf16.mxu0 0
        %1212 = vmatpush2.bf16.msra.mxu0 0
        %1213 = vmatprep.subr.bf16.mxu0 0
        %1214 = vmatpush2.bf16.msra.mxu0 0
        %1215 = vmatprep.subr.bf16.mxu0 0
        %1216 = vmatpush2.bf16.msra.mxu0 0
        %1217 = vmatprep.subr.bf16.mxu0 0
        %1218 = vmatpush2.bf16.msra.mxu0 0
        %1219 = vmatprep.subr.bf16.mxu0 0
        %1220 = vmatpush2.bf16.msra.mxu0 0
        %1221 = vmatprep.subr.bf16.mxu0 0
        %1222 = vmatpush2.bf16.msra.mxu0 0
        %1223 = vmatprep.subr.bf16.mxu0 0
        %1224 = vmatpush2.bf16.msra.mxu0 0
        %1225 = vmatprep.mubr.bf16.mxu0 0
        %1226 = vmatmul.mubr.bf16.gmra.mxu0 %v1094
        %v1227 = vpop.f32.mrf.mxu0
        %v1228 = vadd.f32 %v847, %v1227
        %v1229 = vpop.f32.mrf.mxu0
        %v1230 = vpop.f32.mrf.mxu0
        %v1231 = vpop.f32.mrf.mxu0
        %1232 = vdwg.mxu0
        %v1233 = vmul.f32 %v1183, %v1228
        %v1234 = vadd.f32 %v1192, %v1233
        %v1235 = vtanh.pop %v1234
        %v1236 = vsub.f32 %v915, %v1235
        %v1237 = vmul.f32 %v1191, %v1236
        %v1238 = vadd.f32 %v1235, %v1237
        %s1239 = sadd.s32 %s502, 6
        %v1240 = vstv %s1239
        %vm1241 = vcmp.gt.s32.totalorder %v473, %v1240
        %v1242 = vsel %vm1241, 1, 0
        %1243 = vset.pattern.permute.xlu0 0
        %1244 = vperm.xlu0 %1243, %v1242
        %v1245 = vpop.permute.xlu0 %1244
        %vm1246 = vcmp.eq.s32.totalorder %v1245, 1
        %v1247 = vsel %vm1246, %v1238, %v915
        %v1248 = vsel %vm1246, %v1238, 0.0
        %v1249 = vpack.c.bf16 %v1248, %v1248
        %s1250 = scalar_lea.vmem %s458, 6 [#allocation13]
        %1251 = vst.msk [vmem:[%s1250] sm:$0x1] %vm710, %v1249
        %s1252 = scalar_lea.vmem %s399, 2 [#allocation4]
        %v1253 = vld [vmem:[%s1252] sm:$0x1]
        %s1254 = scalar_lea.vmem %s399, 10 [#allocation4]
        %v1255 = vld [vmem:[%s1254] sm:$0x1]
        %s1256 = scalar_lea.vmem %s399, 18 [#allocation4]
        %v1257 = vld [vmem:[%s1256] sm:$0x1]
        %v1258 = vpack.c.bf16 %v1081, %v1081
        %v1260 = vsel %vm523, %v1258, 0
        %1262 = vmatprep.subr.bf16.mxu0 0
        %1263 = vmatpush1.bf16.msra.mxu0 0
        %1264 = vmatprep.subr.bf16.mxu0 0
        %1265 = vmatpush1.bf16.msra.mxu0 0
        %1266 = vmatprep.subr.bf16.mxu0 0
        %1267 = vmatpush1.bf16.msra.mxu0 0
        %1268 = vmatprep.subr.bf16.mxu0 0
        %1269 = vmatpush1.bf16.msra.mxu0 0
        %1270 = vmatprep.subr.bf16.mxu0 0
        %1271 = vmatpush1.bf16.msra.mxu0 0
        %1272 = vmatprep.subr.bf16.mxu0 0
        %1273 = vmatpush1.bf16.msra.mxu0 0
        %1274 = vmatprep.subr.bf16.mxu0 0
        %1275 = vmatpush1.bf16.msra.mxu0 %v520
        %1276 = vmatprep.subr.bf16.mxu0 0
        %1277 = vmatpush1.bf16.msra.mxu0 %v519
        %1278 = vmatprep.subr.bf16.mxu0 0
        %1279 = vmatpush2.bf16.msra.mxu0 0
        %1280 = vmatprep.subr.bf16.mxu0 0
        %1281 = vmatpush2.bf16.msra.mxu0 0
        %1282 = vmatprep.subr.bf16.mxu0 0
        %1283 = vmatpush2.bf16.msra.mxu0 0
        %1284 = vmatprep.subr.bf16.mxu0 0
        %1285 = vmatpush2.bf16.msra.mxu0 0
        %1286 = vmatprep.subr.bf16.mxu0 0
        %1287 = vmatpush2.bf16.msra.mxu0 0
        %1288 = vmatprep.subr.bf16.mxu0 0
        %1289 = vmatpush2.bf16.msra.mxu0 0
        %1290 = vmatprep.subr.bf16.mxu0 0
        %1291 = vmatpush2.bf16.msra.mxu0 0
        %1292 = vmatprep.subr.bf16.mxu0 0
        %1293 = vmatpush2.bf16.msra.mxu0 0
        %1294 = vmatprep.mubr.bf16.mxu0 0
        %1295 = vmatmul.mubr.bf16.gmra.mxu0 %v1260
        %v1296 = vpop.f32.mrf.mxu0
        %v1297 = vadd.f32 0.0, %v1296
        %v1298 = vpop.f32.mrf.mxu0
        %v1299 = vpop.f32.mrf.mxu0
        %v1300 = vpop.f32.mrf.mxu0
        %1301 = vdwg.mxu0
        %1302 = vmatprep.subr.bf16.mxu0 0
        %1303 = vmatpush1.bf16.msra.mxu0 0
        %1304 = vmatprep.subr.bf16.mxu0 0
        %1305 = vmatpush1.bf16.msra.mxu0 0
        %1306 = vmatprep.subr.bf16.mxu0 0
        %1307 = vmatpush1.bf16.msra.mxu0 0
        %1308 = vmatprep.subr.bf16.mxu0 0
        %1309 = vmatpush1.bf16.msra.mxu0 0
        %1310 = vmatprep.subr.bf16.mxu0 0
        %1311 = vmatpush1.bf16.msra.mxu0 0
        %1312 = vmatprep.subr.bf16.mxu0 0
        %1313 = vmatpush1.bf16.msra.mxu0 0
        %1314 = vmatprep.subr.bf16.mxu0 0
        %1315 = vmatpush1.bf16.msra.mxu0 %v576
        %1316 = vmatprep.subr.bf16.mxu0 0
        %1317 = vmatpush1.bf16.msra.mxu0 %v575
        %1318 = vmatprep.subr.bf16.mxu0 0
        %1319 = vmatpush2.bf16.msra.mxu0 0
        %1320 = vmatprep.subr.bf16.mxu0 0
        %1321 = vmatpush2.bf16.msra.mxu0 0
        %1322 = vmatprep.subr.bf16.mxu0 0
        %1323 = vmatpush2.bf16.msra.mxu0 0
        %1324 = vmatprep.subr.bf16.mxu0 0
        %1325 = vmatpush2.bf16.msra.mxu0 0
        %1326 = vmatprep.subr.bf16.mxu0 0
        %1327 = vmatpush2.bf16.msra.mxu0 0
        %1328 = vmatprep.subr.bf16.mxu0 0
        %1329 = vmatpush2.bf16.msra.mxu0 0
        %1330 = vmatprep.subr.bf16.mxu0 0
        %1331 = vmatpush2.bf16.msra.mxu0 0
        %1332 = vmatprep.subr.bf16.mxu0 0
        %1333 = vmatpush2.bf16.msra.mxu0 0
        %1334 = vmatprep.mubr.bf16.mxu0 0
        %1335 = vmatmul.mubr.bf16.gmra.mxu0 %v1260
        %v1336 = vpop.f32.mrf.mxu0
        %v1337 = vadd.f32 0.0, %v1336
        %v1338 = vpop.f32.mrf.mxu0
        %v1339 = vpop.f32.mrf.mxu0
        %v1340 = vpop.f32.mrf.mxu0
        %1341 = vdwg.mxu0
        %v1342 = vunpack.c.l.bf16 %v1253
        %v1343 = vadd.f32 %v1342, %v1297
        %v1344 = vxor.u32 %v1343, 2147483648
        %v1345 = vmul.f32 %v1344, 1.442695
        %v1346 = vpow.pop %v1345
        %v1347 = vadd.f32 %v1346, 1.0
        %v1348 = vrcp.pop %v1347
        %v1349 = vmul.f32 1.0, %v1348
        %v1350 = vunpack.c.l.bf16 %v1255
        %v1351 = vadd.f32 %v1350, %v1337
        %v1352 = vxor.u32 %v1351, 2147483648
        %v1353 = vmul.f32 %v1352, 1.442695
        %v1354 = vpow.pop %v1353
        %v1355 = vadd.f32 %v1354, 1.0
        %v1356 = vrcp.pop %v1355
        %v1357 = vmul.f32 1.0, %v1356
        %v1358 = vunpack.c.l.bf16 %v1257
        %1359 = vmatprep.subr.bf16.mxu0 0
        %1360 = vmatpush1.bf16.msra.mxu0 0
        %1361 = vmatprep.subr.bf16.mxu0 0
        %1362 = vmatpush1.bf16.msra.mxu0 0
        %1363 = vmatprep.subr.bf16.mxu0 0
        %1364 = vmatpush1.bf16.msra.mxu0 0
        %1365 = vmatprep.subr.bf16.mxu0 0
        %1366 = vmatpush1.bf16.msra.mxu0 0
        %1367 = vmatprep.subr.bf16.mxu0 0
        %1368 = vmatpush1.bf16.msra.mxu0 0
        %1369 = vmatprep.subr.bf16.mxu0 0
        %1370 = vmatpush1.bf16.msra.mxu0 0
        %1371 = vmatprep.subr.bf16.mxu0 0
        %1372 = vmatpush1.bf16.msra.mxu0 %v651
        %1373 = vmatprep.subr.bf16.mxu0 0
        %1374 = vmatpush1.bf16.msra.mxu0 %v650
        %1375 = vmatprep.subr.bf16.mxu0 0
        %1376 = vmatpush2.bf16.msra.mxu0 0
        %1377 = vmatprep.subr.bf16.mxu0 0
        %1378 = vmatpush2.bf16.msra.mxu0 0
        %1379 = vmatprep.subr.bf16.mxu0 0
        %1380 = vmatpush2.bf16.msra.mxu0 0
        %1381 = vmatprep.subr.bf16.mxu0 0
        %1382 = vmatpush2.bf16.msra.mxu0 0
        %1383 = vmatprep.subr.bf16.mxu0 0
        %1384 = vmatpush2.bf16.msra.mxu0 0
        %1385 = vmatprep.subr.bf16.mxu0 0
        %1386 = vmatpush2.bf16.msra.mxu0 0
        %1387 = vmatprep.subr.bf16.mxu0 0
        %1388 = vmatpush2.bf16.msra.mxu0 0
        %1389 = vmatprep.subr.bf16.mxu0 0
        %1390 = vmatpush2.bf16.msra.mxu0 0
        %1391 = vmatprep.mubr.bf16.mxu0 0
        %1392 = vmatmul.mubr.bf16.gmra.mxu0 %v1260
        %v1393 = vpop.f32.mrf.mxu0
        %v1394 = vadd.f32 %v640, %v1393
        %v1395 = vpop.f32.mrf.mxu0
        %v1396 = vpop.f32.mrf.mxu0
        %v1397 = vpop.f32.mrf.mxu0
        %1398 = vdwg.mxu0
        %v1399 = vmul.f32 %v1349, %v1394
        %v1400 = vadd.f32 %v1358, %v1399
        %v1401 = vtanh.pop %v1400
        %v1402 = vsub.f32 %v1081, %v1401
        %v1403 = vmul.f32 %v1357, %v1402
        %v1404 = vadd.f32 %v1401, %v1403
        %s1405 = sadd.s32 %s500, 2
        %v1406 = vstv %s1405
        %vm1407 = vcmp.gt.s32.totalorder %v473, %v1406
        %v1408 = vsel %vm1407, 1, 0
        %1409 = vset.pattern.permute.xlu0 0
        %1410 = vperm.xlu0 %1409, %v1408
        %v1411 = vpop.permute.xlu0 %1410
        %vm1412 = vcmp.eq.s32.totalorder %v1411, 1
        %v1413 = vsel %vm1412, %v1404, %v1081
        %v1414 = vsel %vm1412, %v1404, 0.0
        %v1415 = vpack.c.bf16 %v1414, %v1414
        %s1416 = scalar_lea.vmem %s451, 2 [#allocation12]
        %1417 = vst.msk [vmem:[%s1416] sm:$0x1] %vm710, %v1415
        %s1418 = scalar_lea.vmem %s408, 5 [#allocation7]
        %v1419 = vld [vmem:[%s1418] sm:$0x1]
        %s1420 = scalar_lea.vmem %s408, 13 [#allocation7]
        %v1421 = vld [vmem:[%s1420] sm:$0x1]
        %s1422 = scalar_lea.vmem %s408, 21 [#allocation7]
        %v1423 = vld [vmem:[%s1422] sm:$0x1]
        %v1424 = vpack.c.bf16 %v1247, %v1247
        %v1426 = vsel %vm523, %v1424, 0
        %1428 = vmatprep.subr.bf16.mxu0 0
        %1429 = vmatpush1.bf16.msra.mxu0 0
        %1430 = vmatprep.subr.bf16.mxu0 0
        %1431 = vmatpush1.bf16.msra.mxu0 0
        %1432 = vmatprep.subr.bf16.mxu0 0
        %1433 = vmatpush1.bf16.msra.mxu0 0
        %1434 = vmatprep.subr.bf16.mxu0 0
        %1435 = vmatpush1.bf16.msra.mxu0 0
        %1436 = vmatprep.subr.bf16.mxu0 0
        %1437 = vmatpush1.bf16.msra.mxu0 0
        %1438 = vmatprep.subr.bf16.mxu0 0
        %1439 = vmatpush1.bf16.msra.mxu0 0
        %1440 = vmatprep.subr.bf16.mxu0 0
        %1441 = vmatpush1.bf16.msra.mxu0 %v728
        %1442 = vmatprep.subr.bf16.mxu0 0
        %1443 = vmatpush1.bf16.msra.mxu0 %v727
        %1444 = vmatprep.subr.bf16.mxu0 0
        %1445 = vmatpush2.bf16.msra.mxu0 0
        %1446 = vmatprep.subr.bf16.mxu0 0
        %1447 = vmatpush2.bf16.msra.mxu0 0
        %1448 = vmatprep.subr.bf16.mxu0 0
        %1449 = vmatpush2.bf16.msra.mxu0 0
        %1450 = vmatprep.subr.bf16.mxu0 0
        %1451 = vmatpush2.bf16.msra.mxu0 0
        %1452 = vmatprep.subr.bf16.mxu0 0
        %1453 = vmatpush2.bf16.msra.mxu0 0
        %1454 = vmatprep.subr.bf16.mxu0 0
        %1455 = vmatpush2.bf16.msra.mxu0 0
        %1456 = vmatprep.subr.bf16.mxu0 0
        %1457 = vmatpush2.bf16.msra.mxu0 0
        %1458 = vmatprep.subr.bf16.mxu0 0
        %1459 = vmatpush2.bf16.msra.mxu0 0
        %1460 = vmatprep.mubr.bf16.mxu0 0
        %1461 = vmatmul.mubr.bf16.gmra.mxu0 %v1426
        %v1462 = vpop.f32.mrf.mxu0
        %v1463 = vadd.f32 0.0, %v1462
        %v1464 = vpop.f32.mrf.mxu0
        %v1465 = vpop.f32.mrf.mxu0
        %v1466 = vpop.f32.mrf.mxu0
        %1467 = vdwg.mxu0
        %1468 = vmatprep.subr.bf16.mxu0 0
        %1469 = vmatpush1.bf16.msra.mxu0 0
        %1470 = vmatprep.subr.bf16.mxu0 0
        %1471 = vmatpush1.bf16.msra.mxu0 0
        %1472 = vmatprep.subr.bf16.mxu0 0
        %1473 = vmatpush1.bf16.msra.mxu0 0
        %1474 = vmatprep.subr.bf16.mxu0 0
        %1475 = vmatpush1.bf16.msra.mxu0 0
        %1476 = vmatprep.subr.bf16.mxu0 0
        %1477 = vmatpush1.bf16.msra.mxu0 0
        %1478 = vmatprep.subr.bf16.mxu0 0
        %1479 = vmatpush1.bf16.msra.mxu0 0
        %1480 = vmatprep.subr.bf16.mxu0 0
        %1481 = vmatpush1.bf16.msra.mxu0 %v783
        %1482 = vmatprep.subr.bf16.mxu0 0
        %1483 = vmatpush1.bf16.msra.mxu0 %v782
        %1484 = vmatprep.subr.bf16.mxu0 0
        %1485 = vmatpush2.bf16.msra.mxu0 0
        %1486 = vmatprep.subr.bf16.mxu0 0
        %1487 = vmatpush2.bf16.msra.mxu0 0
        %1488 = vmatprep.subr.bf16.mxu0 0
        %1489 = vmatpush2.bf16.msra.mxu0 0
        %1490 = vmatprep.subr.bf16.mxu0 0
        %1491 = vmatpush2.bf16.msra.mxu0 0
        %1492 = vmatprep.subr.bf16.mxu0 0
        %1493 = vmatpush2.bf16.msra.mxu0 0
        %1494 = vmatprep.subr.bf16.mxu0 0
        %1495 = vmatpush2.bf16.msra.mxu0 0
        %1496 = vmatprep.subr.bf16.mxu0 0
        %1497 = vmatpush2.bf16.msra.mxu0 0
        %1498 = vmatprep.subr.bf16.mxu0 0
        %1499 = vmatpush2.bf16.msra.mxu0 0
        %1500 = vmatprep.mubr.bf16.mxu0 0
        %1501 = vmatmul.mubr.bf16.gmra.mxu0 %v1426
        %v1502 = vpop.f32.mrf.mxu0
        %v1503 = vadd.f32 0.0, %v1502
        %v1504 = vpop.f32.mrf.mxu0
        %v1505 = vpop.f32.mrf.mxu0
        %v1506 = vpop.f32.mrf.mxu0
        %1507 = vdwg.mxu0
        %v1508 = vunpack.c.l.bf16 %v1419
        %v1509 = vadd.f32 %v1508, %v1463
        %v1510 = vxor.u32 %v1509, 2147483648
        %v1511 = vmul.f32 %v1510, 1.442695
        %v1512 = vpow.pop %v1511
        %v1513 = vadd.f32 %v1512, 1.0
        %v1514 = vrcp.pop %v1513
        %v1515 = vmul.f32 1.0, %v1514
        %v1516 = vunpack.c.l.bf16 %v1421
        %v1517 = vadd.f32 %v1516, %v1503
        %v1518 = vxor.u32 %v1517, 2147483648
        %v1519 = vmul.f32 %v1518, 1.442695
        %v1520 = vpow.pop %v1519
        %v1521 = vadd.f32 %v1520, 1.0
        %v1522 = vrcp.pop %v1521
        %v1523 = vmul.f32 1.0, %v1522
        %v1524 = vunpack.c.l.bf16 %v1423
        %1525 = vmatprep.subr.bf16.mxu0 0
        %1526 = vmatpush1.bf16.msra.mxu0 0
        %1527 = vmatprep.subr.bf16.mxu0 0
        %1528 = vmatpush1.bf16.msra.mxu0 0
        %1529 = vmatprep.subr.bf16.mxu0 0
        %1530 = vmatpush1.bf16.msra.mxu0 0
        %1531 = vmatprep.subr.bf16.mxu0 0
        %1532 = vmatpush1.bf16.msra.mxu0 0
        %1533 = vmatprep.subr.bf16.mxu0 0
        %1534 = vmatpush1.bf16.msra.mxu0 0
        %1535 = vmatprep.subr.bf16.mxu0 0
        %1536 = vmatpush1.bf16.msra.mxu0 0
        %1537 = vmatprep.subr.bf16.mxu0 0
        %1538 = vmatpush1.bf16.msra.mxu0 %v858
        %1539 = vmatprep.subr.bf16.mxu0 0
        %1540 = vmatpush1.bf16.msra.mxu0 %v857
        %1541 = vmatprep.subr.bf16.mxu0 0
        %1542 = vmatpush2.bf16.msra.mxu0 0
        %1543 = vmatprep.subr.bf16.mxu0 0
        %1544 = vmatpush2.bf16.msra.mxu0 0
        %1545 = vmatprep.subr.bf16.mxu0 0
        %1546 = vmatpush2.bf16.msra.mxu0 0
        %1547 = vmatprep.subr.bf16.mxu0 0
        %1548 = vmatpush2.bf16.msra.mxu0 0
        %1549 = vmatprep.subr.bf16.mxu0 0
        %1550 = vmatpush2.bf16.msra.mxu0 0
        %1551 = vmatprep.subr.bf16.mxu0 0
        %1552 = vmatpush2.bf16.msra.mxu0 0
        %1553 = vmatprep.subr.bf16.mxu0 0
        %1554 = vmatpush2.bf16.msra.mxu0 0
        %1555 = vmatprep.subr.bf16.mxu0 0
        %1556 = vmatpush2.bf16.msra.mxu0 0
        %1557 = vmatprep.mubr.bf16.mxu0 0
        %1558 = vmatmul.mubr.bf16.gmra.mxu0 %v1426
        %v1559 = vpop.f32.mrf.mxu0
        %v1560 = vadd.f32 %v847, %v1559
        %v1561 = vpop.f32.mrf.mxu0
        %v1562 = vpop.f32.mrf.mxu0
        %v1563 = vpop.f32.mrf.mxu0
        %1564 = vdwg.mxu0
        %v1565 = vmul.f32 %v1515, %v1560
        %v1566 = vadd.f32 %v1524, %v1565
        %v1567 = vtanh.pop %v1566
        %v1568 = vsub.f32 %v1247, %v1567
        %v1569 = vmul.f32 %v1523, %v1568
        %v1570 = vadd.f32 %v1567, %v1569
        %s1571 = sadd.s32 %s502, 5
        %v1572 = vstv %s1571
        %vm1573 = vcmp.gt.s32.totalorder %v473, %v1572
        %v1574 = vsel %vm1573, 1, 0
        %1575 = vset.pattern.permute.xlu0 0
        %1576 = vperm.xlu0 %1575, %v1574
        %v1577 = vpop.permute.xlu0 %1576
        %vm1578 = vcmp.eq.s32.totalorder %v1577, 1
        %v1579 = vsel %vm1578, %v1570, %v1247
        %v1580 = vsel %vm1578, %v1570, 0.0
        %v1581 = vpack.c.bf16 %v1580, %v1580
        %s1582 = scalar_lea.vmem %s458, 5 [#allocation13]
        %1583 = vst.msk [vmem:[%s1582] sm:$0x1] %vm710, %v1581
        %s1584 = scalar_lea.vmem %s399, 3 [#allocation4]
        %v1585 = vld [vmem:[%s1584] sm:$0x1]
        %s1586 = scalar_lea.vmem %s399, 11 [#allocation4]
        %v1587 = vld [vmem:[%s1586] sm:$0x1]
        %s1588 = scalar_lea.vmem %s399, 19 [#allocation4]
        %v1589 = vld [vmem:[%s1588] sm:$0x1]
        %v1590 = vpack.c.bf16 %v1413, %v1413
        %v1592 = vsel %vm523, %v1590, 0
        %1594 = vmatprep.subr.bf16.mxu0 0
        %1595 = vmatpush1.bf16.msra.mxu0 0
        %1596 = vmatprep.subr.bf16.mxu0 0
        %1597 = vmatpush1.bf16.msra.mxu0 0
        %1598 = vmatprep.subr.bf16.mxu0 0
        %1599 = vmatpush1.bf16.msra.mxu0 0
        %1600 = vmatprep.subr.bf16.mxu0 0
        %1601 = vmatpush1.bf16.msra.mxu0 0
        %1602 = vmatprep.subr.bf16.mxu0 0
        %1603 = vmatpush1.bf16.msra.mxu0 0
        %1604 = vmatprep.subr.bf16.mxu0 0
        %1605 = vmatpush1.bf16.msra.mxu0 0
        %1606 = vmatprep.subr.bf16.mxu0 0
        %1607 = vmatpush1.bf16.msra.mxu0 %v520
        %1608 = vmatprep.subr.bf16.mxu0 0
        %1609 = vmatpush1.bf16.msra.mxu0 %v519
        %1610 = vmatprep.subr.bf16.mxu0 0
        %1611 = vmatpush2.bf16.msra.mxu0 0
        %1612 = vmatprep.subr.bf16.mxu0 0
        %1613 = vmatpush2.bf16.msra.mxu0 0
        %1614 = vmatprep.subr.bf16.mxu0 0
        %1615 = vmatpush2.bf16.msra.mxu0 0
        %1616 = vmatprep.subr.bf16.mxu0 0
        %1617 = vmatpush2.bf16.msra.mxu0 0
        %1618 = vmatprep.subr.bf16.mxu0 0
        %1619 = vmatpush2.bf16.msra.mxu0 0
        %1620 = vmatprep.subr.bf16.mxu0 0
        %1621 = vmatpush2.bf16.msra.mxu0 0
        %1622 = vmatprep.subr.bf16.mxu0 0
        %1623 = vmatpush2.bf16.msra.mxu0 0
        %1624 = vmatprep.subr.bf16.mxu0 0
        %1625 = vmatpush2.bf16.msra.mxu0 0
        %1626 = vmatprep.mubr.bf16.mxu0 0
        %1627 = vmatmul.mubr.bf16.gmra.mxu0 %v1592
        %v1628 = vpop.f32.mrf.mxu0
        %v1629 = vadd.f32 0.0, %v1628
        %v1630 = vpop.f32.mrf.mxu0
        %v1631 = vpop.f32.mrf.mxu0
        %v1632 = vpop.f32.mrf.mxu0
        %1633 = vdwg.mxu0
        %1634 = vmatprep.subr.bf16.mxu0 0
        %1635 = vmatpush1.bf16.msra.mxu0 0
        %1636 = vmatprep.subr.bf16.mxu0 0
        %1637 = vmatpush1.bf16.msra.mxu0 0
        %1638 = vmatprep.subr.bf16.mxu0 0
        %1639 = vmatpush1.bf16.msra.mxu0 0
        %1640 = vmatprep.subr.bf16.mxu0 0
        %1641 = vmatpush1.bf16.msra.mxu0 0
        %1642 = vmatprep.subr.bf16.mxu0 0
        %1643 = vmatpush1.bf16.msra.mxu0 0
        %1644 = vmatprep.subr.bf16.mxu0 0
        %1645 = vmatpush1.bf16.msra.mxu0 0
        %1646 = vmatprep.subr.bf16.mxu0 0
        %1647 = vmatpush1.bf16.msra.mxu0 %v576
        %1648 = vmatprep.subr.bf16.mxu0 0
        %1649 = vmatpush1.bf16.msra.mxu0 %v575
        %1650 = vmatprep.subr.bf16.mxu0 0
        %1651 = vmatpush2.bf16.msra.mxu0 0
        %1652 = vmatprep.subr.bf16.mxu0 0
        %1653 = vmatpush2.bf16.msra.mxu0 0
        %1654 = vmatprep.subr.bf16.mxu0 0
        %1655 = vmatpush2.bf16.msra.mxu0 0
        %1656 = vmatprep.subr.bf16.mxu0 0
        %1657 = vmatpush2.bf16.msra.mxu0 0
        %1658 = vmatprep.subr.bf16.mxu0 0
        %1659 = vmatpush2.bf16.msra.mxu0 0
        %1660 = vmatprep.subr.bf16.mxu0 0
        %1661 = vmatpush2.bf16.msra.mxu0 0
        %1662 = vmatprep.subr.bf16.mxu0 0
        %1663 = vmatpush2.bf16.msra.mxu0 0
        %1664 = vmatprep.subr.bf16.mxu0 0
        %1665 = vmatpush2.bf16.msra.mxu0 0
        %1666 = vmatprep.mubr.bf16.mxu0 0
        %1667 = vmatmul.mubr.bf16.gmra.mxu0 %v1592
        %v1668 = vpop.f32.mrf.mxu0
        %v1669 = vadd.f32 0.0, %v1668
        %v1670 = vpop.f32.mrf.mxu0
        %v1671 = vpop.f32.mrf.mxu0
        %v1672 = vpop.f32.mrf.mxu0
        %1673 = vdwg.mxu0
        %v1674 = vunpack.c.l.bf16 %v1585
        %v1675 = vadd.f32 %v1674, %v1629
        %v1676 = vxor.u32 %v1675, 2147483648
        %v1677 = vmul.f32 %v1676, 1.442695
        %v1678 = vpow.pop %v1677
        %v1679 = vadd.f32 %v1678, 1.0
        %v1680 = vrcp.pop %v1679
        %v1681 = vmul.f32 1.0, %v1680
        %v1682 = vunpack.c.l.bf16 %v1587
        %v1683 = vadd.f32 %v1682, %v1669
        %v1684 = vxor.u32 %v1683, 2147483648
        %v1685 = vmul.f32 %v1684, 1.442695
        %v1686 = vpow.pop %v1685
        %v1687 = vadd.f32 %v1686, 1.0
        %v1688 = vrcp.pop %v1687
        %v1689 = vmul.f32 1.0, %v1688
        %v1690 = vunpack.c.l.bf16 %v1589
        %1691 = vmatprep.subr.bf16.mxu0 0
        %1692 = vmatpush1.bf16.msra.mxu0 0
        %1693 = vmatprep.subr.bf16.mxu0 0
        %1694 = vmatpush1.bf16.msra.mxu0 0
        %1695 = vmatprep.subr.bf16.mxu0 0
        %1696 = vmatpush1.bf16.msra.mxu0 0
        %1697 = vmatprep.subr.bf16.mxu0 0
        %1698 = vmatpush1.bf16.msra.mxu0 0
        %1699 = vmatprep.subr.bf16.mxu0 0
        %1700 = vmatpush1.bf16.msra.mxu0 0
        %1701 = vmatprep.subr.bf16.mxu0 0
        %1702 = vmatpush1.bf16.msra.mxu0 0
        %1703 = vmatprep.subr.bf16.mxu0 0
        %1704 = vmatpush1.bf16.msra.mxu0 %v651
        %1705 = vmatprep.subr.bf16.mxu0 0
        %1706 = vmatpush1.bf16.msra.mxu0 %v650
        %1707 = vmatprep.subr.bf16.mxu0 0
        %1708 = vmatpush2.bf16.msra.mxu0 0
        %1709 = vmatprep.subr.bf16.mxu0 0
        %1710 = vmatpush2.bf16.msra.mxu0 0
        %1711 = vmatprep.subr.bf16.mxu0 0
        %1712 = vmatpush2.bf16.msra.mxu0 0
        %1713 = vmatprep.subr.bf16.mxu0 0
        %1714 = vmatpush2.bf16.msra.mxu0 0
        %1715 = vmatprep.subr.bf16.mxu0 0
        %1716 = vmatpush2.bf16.msra.mxu0 0
        %1717 = vmatprep.subr.bf16.mxu0 0
        %1718 = vmatpush2.bf16.msra.mxu0 0
        %1719 = vmatprep.subr.bf16.mxu0 0
        %1720 = vmatpush2.bf16.msra.mxu0 0
        %1721 = vmatprep.subr.bf16.mxu0 0
        %1722 = vmatpush2.bf16.msra.mxu0 0
        %1723 = vmatprep.mubr.bf16.mxu0 0
        %1724 = vmatmul.mubr.bf16.gmra.mxu0 %v1592
        %v1725 = vpop.f32.mrf.mxu0
        %v1726 = vadd.f32 %v640, %v1725
        %v1727 = vpop.f32.mrf.mxu0
        %v1728 = vpop.f32.mrf.mxu0
        %v1729 = vpop.f32.mrf.mxu0
        %1730 = vdwg.mxu0
        %v1731 = vmul.f32 %v1681, %v1726
        %v1732 = vadd.f32 %v1690, %v1731
        %v1733 = vtanh.pop %v1732
        %v1734 = vsub.f32 %v1413, %v1733
        %v1735 = vmul.f32 %v1689, %v1734
        %v1736 = vadd.f32 %v1733, %v1735
        %s1737 = sadd.s32 %s500, 3
        %v1738 = vstv %s1737
        %vm1739 = vcmp.gt.s32.totalorder %v473, %v1738
        %v1740 = vsel %vm1739, 1, 0
        %1741 = vset.pattern.permute.xlu0 0
        %1742 = vperm.xlu0 %1741, %v1740
        %v1743 = vpop.permute.xlu0 %1742
        %vm1744 = vcmp.eq.s32.totalorder %v1743, 1
        %v1745 = vsel %vm1744, %v1736, %v1413
        %v1746 = vsel %vm1744, %v1736, 0.0
        %v1747 = vpack.c.bf16 %v1746, %v1746
        %s1748 = scalar_lea.vmem %s451, 3 [#allocation12]
        %1749 = vst.msk [vmem:[%s1748] sm:$0x1] %vm710, %v1747
        %s1750 = scalar_lea.vmem %s408, 4 [#allocation7]
        %v1751 = vld [vmem:[%s1750] sm:$0x1]
        %s1752 = scalar_lea.vmem %s408, 12 [#allocation7]
        %v1753 = vld [vmem:[%s1752] sm:$0x1]
        %s1754 = scalar_lea.vmem %s408, 20 [#allocation7]
        %v1755 = vld [vmem:[%s1754] sm:$0x1]
        %v1756 = vpack.c.bf16 %v1579, %v1579
        %v1758 = vsel %vm523, %v1756, 0
        %1760 = vmatprep.subr.bf16.mxu0 0
        %1761 = vmatpush1.bf16.msra.mxu0 0
        %1762 = vmatprep.subr.bf16.mxu0 0
        %1763 = vmatpush1.bf16.msra.mxu0 0
        %1764 = vmatprep.subr.bf16.mxu0 0
        %1765 = vmatpush1.bf16.msra.mxu0 0
        %1766 = vmatprep.subr.bf16.mxu0 0
        %1767 = vmatpush1.bf16.msra.mxu0 0
        %1768 = vmatprep.subr.bf16.mxu0 0
        %1769 = vmatpush1.bf16.msra.mxu0 0
        %1770 = vmatprep.subr.bf16.mxu0 0
        %1771 = vmatpush1.bf16.msra.mxu0 0
        %1772 = vmatprep.subr.bf16.mxu0 0
        %1773 = vmatpush1.bf16.msra.mxu0 %v728
        %1774 = vmatprep.subr.bf16.mxu0 0
        %1775 = vmatpush1.bf16.msra.mxu0 %v727
        %1776 = vmatprep.subr.bf16.mxu0 0
        %1777 = vmatpush2.bf16.msra.mxu0 0
        %1778 = vmatprep.subr.bf16.mxu0 0
        %1779 = vmatpush2.bf16.msra.mxu0 0
        %1780 = vmatprep.subr.bf16.mxu0 0
        %1781 = vmatpush2.bf16.msra.mxu0 0
        %1782 = vmatprep.subr.bf16.mxu0 0
        %1783 = vmatpush2.bf16.msra.mxu0 0
        %1784 = vmatprep.subr.bf16.mxu0 0
        %1785 = vmatpush2.bf16.msra.mxu0 0
        %1786 = vmatprep.subr.bf16.mxu0 0
        %1787 = vmatpush2.bf16.msra.mxu0 0
        %1788 = vmatprep.subr.bf16.mxu0 0
        %1789 = vmatpush2.bf16.msra.mxu0 0
        %1790 = vmatprep.subr.bf16.mxu0 0
        %1791 = vmatpush2.bf16.msra.mxu0 0
        %1792 = vmatprep.mubr.bf16.mxu0 0
        %1793 = vmatmul.mubr.bf16.gmra.mxu0 %v1758
        %v1794 = vpop.f32.mrf.mxu0
        %v1795 = vadd.f32 0.0, %v1794
        %v1796 = vpop.f32.mrf.mxu0
        %v1797 = vpop.f32.mrf.mxu0
        %v1798 = vpop.f32.mrf.mxu0
        %1799 = vdwg.mxu0
        %1800 = vmatprep.subr.bf16.mxu0 0
        %1801 = vmatpush1.bf16.msra.mxu0 0
        %1802 = vmatprep.subr.bf16.mxu0 0
        %1803 = vmatpush1.bf16.msra.mxu0 0
        %1804 = vmatprep.subr.bf16.mxu0 0
        %1805 = vmatpush1.bf16.msra.mxu0 0
        %1806 = vmatprep.subr.bf16.mxu0 0
        %1807 = vmatpush1.bf16.msra.mxu0 0
        %1808 = vmatprep.subr.bf16.mxu0 0
        %1809 = vmatpush1.bf16.msra.mxu0 0
        %1810 = vmatprep.subr.bf16.mxu0 0
        %1811 = vmatpush1.bf16.msra.mxu0 0
        %1812 = vmatprep.subr.bf16.mxu0 0
        %1813 = vmatpush1.bf16.msra.mxu0 %v783
        %1814 = vmatprep.subr.bf16.mxu0 0
        %1815 = vmatpush1.bf16.msra.mxu0 %v782
        %1816 = vmatprep.subr.bf16.mxu0 0
        %1817 = vmatpush2.bf16.msra.mxu0 0
        %1818 = vmatprep.subr.bf16.mxu0 0
        %1819 = vmatpush2.bf16.msra.mxu0 0
        %1820 = vmatprep.subr.bf16.mxu0 0
        %1821 = vmatpush2.bf16.msra.mxu0 0
        %1822 = vmatprep.subr.bf16.mxu0 0
        %1823 = vmatpush2.bf16.msra.mxu0 0
        %1824 = vmatprep.subr.bf16.mxu0 0
        %1825 = vmatpush2.bf16.msra.mxu0 0
        %1826 = vmatprep.subr.bf16.mxu0 0
        %1827 = vmatpush2.bf16.msra.mxu0 0
        %1828 = vmatprep.subr.bf16.mxu0 0
        %1829 = vmatpush2.bf16.msra.mxu0 0
        %1830 = vmatprep.subr.bf16.mxu0 0
        %1831 = vmatpush2.bf16.msra.mxu0 0
        %1832 = vmatprep.mubr.bf16.mxu0 0
        %1833 = vmatmul.mubr.bf16.gmra.mxu0 %v1758
        %v1834 = vpop.f32.mrf.mxu0
        %v1835 = vadd.f32 0.0, %v1834
        %v1836 = vpop.f32.mrf.mxu0
        %v1837 = vpop.f32.mrf.mxu0
        %v1838 = vpop.f32.mrf.mxu0
        %1839 = vdwg.mxu0
        %v1840 = vunpack.c.l.bf16 %v1751
        %v1841 = vadd.f32 %v1840, %v1795
        %v1842 = vxor.u32 %v1841, 2147483648
        %v1843 = vmul.f32 %v1842, 1.442695
        %v1844 = vpow.pop %v1843
        %v1845 = vadd.f32 %v1844, 1.0
        %v1846 = vrcp.pop %v1845
        %v1847 = vmul.f32 1.0, %v1846
        %v1848 = vunpack.c.l.bf16 %v1753
        %v1849 = vadd.f32 %v1848, %v1835
        %v1850 = vxor.u32 %v1849, 2147483648
        %v1851 = vmul.f32 %v1850, 1.442695
        %v1852 = vpow.pop %v1851
        %v1853 = vadd.f32 %v1852, 1.0
        %v1854 = vrcp.pop %v1853
        %v1855 = vmul.f32 1.0, %v1854
        %v1856 = vunpack.c.l.bf16 %v1755
        %1857 = vmatprep.subr.bf16.mxu0 0
        %1858 = vmatpush1.bf16.msra.mxu0 0
        %1859 = vmatprep.subr.bf16.mxu0 0
        %1860 = vmatpush1.bf16.msra.mxu0 0
        %1861 = vmatprep.subr.bf16.mxu0 0
        %1862 = vmatpush1.bf16.msra.mxu0 0
        %1863 = vmatprep.subr.bf16.mxu0 0
        %1864 = vmatpush1.bf16.msra.mxu0 0
        %1865 = vmatprep.subr.bf16.mxu0 0
        %1866 = vmatpush1.bf16.msra.mxu0 0
        %1867 = vmatprep.subr.bf16.mxu0 0
        %1868 = vmatpush1.bf16.msra.mxu0 0
        %1869 = vmatprep.subr.bf16.mxu0 0
        %1870 = vmatpush1.bf16.msra.mxu0 %v858
        %1871 = vmatprep.subr.bf16.mxu0 0
        %1872 = vmatpush1.bf16.msra.mxu0 %v857
        %1873 = vmatprep.subr.bf16.mxu0 0
        %1874 = vmatpush2.bf16.msra.mxu0 0
        %1875 = vmatprep.subr.bf16.mxu0 0
        %1876 = vmatpush2.bf16.msra.mxu0 0
        %1877 = vmatprep.subr.bf16.mxu0 0
        %1878 = vmatpush2.bf16.msra.mxu0 0
        %1879 = vmatprep.subr.bf16.mxu0 0
        %1880 = vmatpush2.bf16.msra.mxu0 0
        %1881 = vmatprep.subr.bf16.mxu0 0
        %1882 = vmatpush2.bf16.msra.mxu0 0
        %1883 = vmatprep.subr.bf16.mxu0 0
        %1884 = vmatpush2.bf16.msra.mxu0 0
        %1885 = vmatprep.subr.bf16.mxu0 0
        %1886 = vmatpush2.bf16.msra.mxu0 0
        %1887 = vmatprep.subr.bf16.mxu0 0
        %1888 = vmatpush2.bf16.msra.mxu0 0
        %1889 = vmatprep.mubr.bf16.mxu0 0
        %1890 = vmatmul.mubr.bf16.gmra.mxu0 %v1758
        %v1891 = vpop.f32.mrf.mxu0
        %v1892 = vadd.f32 %v847, %v1891
        %v1893 = vpop.f32.mrf.mxu0
        %v1894 = vpop.f32.mrf.mxu0
        %v1895 = vpop.f32.mrf.mxu0
        %1896 = vdwg.mxu0
        %v1897 = vmul.f32 %v1847, %v1892
        %v1898 = vadd.f32 %v1856, %v1897
        %v1899 = vtanh.pop %v1898
        %v1900 = vsub.f32 %v1579, %v1899
        %v1901 = vmul.f32 %v1855, %v1900
        %v1902 = vadd.f32 %v1899, %v1901
        %s1903 = sadd.s32 %s502, 4
        %v1904 = vstv %s1903
        %vm1905 = vcmp.gt.s32.totalorder %v473, %v1904
        %v1906 = vsel %vm1905, 1, 0
        %1907 = vset.pattern.permute.xlu0 0
        %1908 = vperm.xlu0 %1907, %v1906
        %v1909 = vpop.permute.xlu0 %1908
        %vm1910 = vcmp.eq.s32.totalorder %v1909, 1
        %v1911 = vsel %vm1910, %v1902, %v1579
        %v1912 = vsel %vm1910, %v1902, 0.0
        %v1913 = vpack.c.bf16 %v1912, %v1912
        %s1914 = scalar_lea.vmem %s458, 4 [#allocation13]
        %1915 = vst.msk [vmem:[%s1914] sm:$0x1] %vm710, %v1913
        %s1916 = scalar_lea.vmem %s399, 4 [#allocation4]
        %v1917 = vld [vmem:[%s1916] sm:$0x1]
        %s1918 = scalar_lea.vmem %s399, 12 [#allocation4]
        %v1919 = vld [vmem:[%s1918] sm:$0x1]
        %s1920 = scalar_lea.vmem %s399, 20 [#allocation4]
        %v1921 = vld [vmem:[%s1920] sm:$0x1]
        %v1922 = vpack.c.bf16 %v1745, %v1745
        %v1924 = vsel %vm523, %v1922, 0
        %1926 = vmatprep.subr.bf16.mxu0 0
        %1927 = vmatpush1.bf16.msra.mxu0 0
        %1928 = vmatprep.subr.bf16.mxu0 0
        %1929 = vmatpush1.bf16.msra.mxu0 0
        %1930 = vmatprep.subr.bf16.mxu0 0
        %1931 = vmatpush1.bf16.msra.mxu0 0
        %1932 = vmatprep.subr.bf16.mxu0 0
        %1933 = vmatpush1.bf16.msra.mxu0 0
        %1934 = vmatprep.subr.bf16.mxu0 0
        %1935 = vmatpush1.bf16.msra.mxu0 0
        %1936 = vmatprep.subr.bf16.mxu0 0
        %1937 = vmatpush1.bf16.msra.mxu0 0
        %1938 = vmatprep.subr.bf16.mxu0 0
        %1939 = vmatpush1.bf16.msra.mxu0 %v520
        %1940 = vmatprep.subr.bf16.mxu0 0
        %1941 = vmatpush1.bf16.msra.mxu0 %v519
        %1942 = vmatprep.subr.bf16.mxu0 0
        %1943 = vmatpush2.bf16.msra.mxu0 0
        %1944 = vmatprep.subr.bf16.mxu0 0
        %1945 = vmatpush2.bf16.msra.mxu0 0
        %1946 = vmatprep.subr.bf16.mxu0 0
        %1947 = vmatpush2.bf16.msra.mxu0 0
        %1948 = vmatprep.subr.bf16.mxu0 0
        %1949 = vmatpush2.bf16.msra.mxu0 0
        %1950 = vmatprep.subr.bf16.mxu0 0
        %1951 = vmatpush2.bf16.msra.mxu0 0
        %1952 = vmatprep.subr.bf16.mxu0 0
        %1953 = vmatpush2.bf16.msra.mxu0 0
        %1954 = vmatprep.subr.bf16.mxu0 0
        %1955 = vmatpush2.bf16.msra.mxu0 0
        %1956 = vmatprep.subr.bf16.mxu0 0
        %1957 = vmatpush2.bf16.msra.mxu0 0
        %1958 = vmatprep.mubr.bf16.mxu0 0
        %1959 = vmatmul.mubr.bf16.gmra.mxu0 %v1924
        %v1960 = vpop.f32.mrf.mxu0
        %v1961 = vadd.f32 0.0, %v1960
        %v1962 = vpop.f32.mrf.mxu0
        %v1963 = vpop.f32.mrf.mxu0
        %v1964 = vpop.f32.mrf.mxu0
        %1965 = vdwg.mxu0
        %1966 = vmatprep.subr.bf16.mxu0 0
        %1967 = vmatpush1.bf16.msra.mxu0 0
        %1968 = vmatprep.subr.bf16.mxu0 0
        %1969 = vmatpush1.bf16.msra.mxu0 0
        %1970 = vmatprep.subr.bf16.mxu0 0
        %1971 = vmatpush1.bf16.msra.mxu0 0
        %1972 = vmatprep.subr.bf16.mxu0 0
        %1973 = vmatpush1.bf16.msra.mxu0 0
        %1974 = vmatprep.subr.bf16.mxu0 0
        %1975 = vmatpush1.bf16.msra.mxu0 0
        %1976 = vmatprep.subr.bf16.mxu0 0
        %1977 = vmatpush1.bf16.msra.mxu0 0
        %1978 = vmatprep.subr.bf16.mxu0 0
        %1979 = vmatpush1.bf16.msra.mxu0 %v576
        %1980 = vmatprep.subr.bf16.mxu0 0
        %1981 = vmatpush1.bf16.msra.mxu0 %v575
        %1982 = vmatprep.subr.bf16.mxu0 0
        %1983 = vmatpush2.bf16.msra.mxu0 0
        %1984 = vmatprep.subr.bf16.mxu0 0
        %1985 = vmatpush2.bf16.msra.mxu0 0
        %1986 = vmatprep.subr.bf16.mxu0 0
        %1987 = vmatpush2.bf16.msra.mxu0 0
        %1988 = vmatprep.subr.bf16.mxu0 0
        %1989 = vmatpush2.bf16.msra.mxu0 0
        %1990 = vmatprep.subr.bf16.mxu0 0
        %1991 = vmatpush2.bf16.msra.mxu0 0
        %1992 = vmatprep.subr.bf16.mxu0 0
        %1993 = vmatpush2.bf16.msra.mxu0 0
        %1994 = vmatprep.subr.bf16.mxu0 0
        %1995 = vmatpush2.bf16.msra.mxu0 0
        %1996 = vmatprep.subr.bf16.mxu0 0
        %1997 = vmatpush2.bf16.msra.mxu0 0
        %1998 = vmatprep.mubr.bf16.mxu0 0
        %1999 = vmatmul.mubr.bf16.gmra.mxu0 %v1924
        %v2000 = vpop.f32.mrf.mxu0
        %v2001 = vadd.f32 0.0, %v2000
        %v2002 = vpop.f32.mrf.mxu0
        %v2003 = vpop.f32.mrf.mxu0
        %v2004 = vpop.f32.mrf.mxu0
        %2005 = vdwg.mxu0
        %v2006 = vunpack.c.l.bf16 %v1917
        %v2007 = vadd.f32 %v2006, %v1961
        %v2008 = vxor.u32 %v2007, 2147483648
        %v2009 = vmul.f32 %v2008, 1.442695
        %v2010 = vpow.pop %v2009
        %v2011 = vadd.f32 %v2010, 1.0
        %v2012 = vrcp.pop %v2011
        %v2013 = vmul.f32 1.0, %v2012
        %v2014 = vunpack.c.l.bf16 %v1919
        %v2015 = vadd.f32 %v2014, %v2001
        %v2016 = vxor.u32 %v2015, 2147483648
        %v2017 = vmul.f32 %v2016, 1.442695
        %v2018 = vpow.pop %v2017
        %v2019 = vadd.f32 %v2018, 1.0
        %v2020 = vrcp.pop %v2019
        %v2021 = vmul.f32 1.0, %v2020
        %v2022 = vunpack.c.l.bf16 %v1921
        %2023 = vmatprep.subr.bf16.mxu0 0
        %2024 = vmatpush1.bf16.msra.mxu0 0
        %2025 = vmatprep.subr.bf16.mxu0 0
        %2026 = vmatpush1.bf16.msra.mxu0 0
        %2027 = vmatprep.subr.bf16.mxu0 0
        %2028 = vmatpush1.bf16.msra.mxu0 0
        %2029 = vmatprep.subr.bf16.mxu0 0
        %2030 = vmatpush1.bf16.msra.mxu0 0
        %2031 = vmatprep.subr.bf16.mxu0 0
        %2032 = vmatpush1.bf16.msra.mxu0 0
        %2033 = vmatprep.subr.bf16.mxu0 0
        %2034 = vmatpush1.bf16.msra.mxu0 0
        %2035 = vmatprep.subr.bf16.mxu0 0
        %2036 = vmatpush1.bf16.msra.mxu0 %v651
        %2037 = vmatprep.subr.bf16.mxu0 0
        %2038 = vmatpush1.bf16.msra.mxu0 %v650
        %2039 = vmatprep.subr.bf16.mxu0 0
        %2040 = vmatpush2.bf16.msra.mxu0 0
        %2041 = vmatprep.subr.bf16.mxu0 0
        %2042 = vmatpush2.bf16.msra.mxu0 0
        %2043 = vmatprep.subr.bf16.mxu0 0
        %2044 = vmatpush2.bf16.msra.mxu0 0
        %2045 = vmatprep.subr.bf16.mxu0 0
        %2046 = vmatpush2.bf16.msra.mxu0 0
        %2047 = vmatprep.subr.bf16.mxu0 0
        %2048 = vmatpush2.bf16.msra.mxu0 0
        %2049 = vmatprep.subr.bf16.mxu0 0
        %2050 = vmatpush2.bf16.msra.mxu0 0
        %2051 = vmatprep.subr.bf16.mxu0 0
        %2052 = vmatpush2.bf16.msra.mxu0 0
        %2053 = vmatprep.subr.bf16.mxu0 0
        %2054 = vmatpush2.bf16.msra.mxu0 0
        %2055 = vmatprep.mubr.bf16.mxu0 0
        %2056 = vmatmul.mubr.bf16.gmra.mxu0 %v1924
        %v2057 = vpop.f32.mrf.mxu0
        %v2058 = vadd.f32 %v640, %v2057
        %v2059 = vpop.f32.mrf.mxu0
        %v2060 = vpop.f32.mrf.mxu0
        %v2061 = vpop.f32.mrf.mxu0
        %2062 = vdwg.mxu0
        %v2063 = vmul.f32 %v2013, %v2058
        %v2064 = vadd.f32 %v2022, %v2063
        %v2065 = vtanh.pop %v2064
        %v2066 = vsub.f32 %v1745, %v2065
        %v2067 = vmul.f32 %v2021, %v2066
        %v2068 = vadd.f32 %v2065, %v2067
        %s2069 = sadd.s32 %s500, 4
        %v2070 = vstv %s2069
        %vm2071 = vcmp.gt.s32.totalorder %v473, %v2070
        %v2072 = vsel %vm2071, 1, 0
        %2073 = vset.pattern.permute.xlu0 0
        %2074 = vperm.xlu0 %2073, %v2072
        %v2075 = vpop.permute.xlu0 %2074
        %vm2076 = vcmp.eq.s32.totalorder %v2075, 1
        %v2077 = vsel %vm2076, %v2068, %v1745
        %v2078 = vsel %vm2076, %v2068, 0.0
        %v2079 = vpack.c.bf16 %v2078, %v2078
        %s2080 = scalar_lea.vmem %s451, 4 [#allocation12]
        %2081 = vst.msk [vmem:[%s2080] sm:$0x1] %vm710, %v2079
        %s2082 = scalar_lea.vmem %s408, 3 [#allocation7]
        %v2083 = vld [vmem:[%s2082] sm:$0x1]
        %s2084 = scalar_lea.vmem %s408, 11 [#allocation7]
        %v2085 = vld [vmem:[%s2084] sm:$0x1]
        %s2086 = scalar_lea.vmem %s408, 19 [#allocation7]
        %v2087 = vld [vmem:[%s2086] sm:$0x1]
        %v2088 = vpack.c.bf16 %v1911, %v1911
        %v2090 = vsel %vm523, %v2088, 0
        %2092 = vmatprep.subr.bf16.mxu0 0
        %2093 = vmatpush1.bf16.msra.mxu0 0
        %2094 = vmatprep.subr.bf16.mxu0 0
        %2095 = vmatpush1.bf16.msra.mxu0 0
        %2096 = vmatprep.subr.bf16.mxu0 0
        %2097 = vmatpush1.bf16.msra.mxu0 0
        %2098 = vmatprep.subr.bf16.mxu0 0
        %2099 = vmatpush1.bf16.msra.mxu0 0
        %2100 = vmatprep.subr.bf16.mxu0 0
        %2101 = vmatpush1.bf16.msra.mxu0 0
        %2102 = vmatprep.subr.bf16.mxu0 0
        %2103 = vmatpush1.bf16.msra.mxu0 0
        %2104 = vmatprep.subr.bf16.mxu0 0
        %2105 = vmatpush1.bf16.msra.mxu0 %v728
        %2106 = vmatprep.subr.bf16.mxu0 0
        %2107 = vmatpush1.bf16.msra.mxu0 %v727
        %2108 = vmatprep.subr.bf16.mxu0 0
        %2109 = vmatpush2.bf16.msra.mxu0 0
        %2110 = vmatprep.subr.bf16.mxu0 0
        %2111 = vmatpush2.bf16.msra.mxu0 0
        %2112 = vmatprep.subr.bf16.mxu0 0
        %2113 = vmatpush2.bf16.msra.mxu0 0
        %2114 = vmatprep.subr.bf16.mxu0 0
        %2115 = vmatpush2.bf16.msra.mxu0 0
        %2116 = vmatprep.subr.bf16.mxu0 0
        %2117 = vmatpush2.bf16.msra.mxu0 0
        %2118 = vmatprep.subr.bf16.mxu0 0
        %2119 = vmatpush2.bf16.msra.mxu0 0
        %2120 = vmatprep.subr.bf16.mxu0 0
        %2121 = vmatpush2.bf16.msra.mxu0 0
        %2122 = vmatprep.subr.bf16.mxu0 0
        %2123 = vmatpush2.bf16.msra.mxu0 0
        %2124 = vmatprep.mubr.bf16.mxu0 0
        %2125 = vmatmul.mubr.bf16.gmra.mxu0 %v2090
        %v2126 = vpop.f32.mrf.mxu0
        %v2127 = vadd.f32 0.0, %v2126
        %v2128 = vpop.f32.mrf.mxu0
        %v2129 = vpop.f32.mrf.mxu0
        %v2130 = vpop.f32.mrf.mxu0
        %2131 = vdwg.mxu0
        %2132 = vmatprep.subr.bf16.mxu0 0
        %2133 = vmatpush1.bf16.msra.mxu0 0
        %2134 = vmatprep.subr.bf16.mxu0 0
        %2135 = vmatpush1.bf16.msra.mxu0 0
        %2136 = vmatprep.subr.bf16.mxu0 0
        %2137 = vmatpush1.bf16.msra.mxu0 0
        %2138 = vmatprep.subr.bf16.mxu0 0
        %2139 = vmatpush1.bf16.msra.mxu0 0
        %2140 = vmatprep.subr.bf16.mxu0 0
        %2141 = vmatpush1.bf16.msra.mxu0 0
        %2142 = vmatprep.subr.bf16.mxu0 0
        %2143 = vmatpush1.bf16.msra.mxu0 0
        %2144 = vmatprep.subr.bf16.mxu0 0
        %2145 = vmatpush1.bf16.msra.mxu0 %v783
        %2146 = vmatprep.subr.bf16.mxu0 0
        %2147 = vmatpush1.bf16.msra.mxu0 %v782
        %2148 = vmatprep.subr.bf16.mxu0 0
        %2149 = vmatpush2.bf16.msra.mxu0 0
        %2150 = vmatprep.subr.bf16.mxu0 0
        %2151 = vmatpush2.bf16.msra.mxu0 0
        %2152 = vmatprep.subr.bf16.mxu0 0
        %2153 = vmatpush2.bf16.msra.mxu0 0
        %2154 = vmatprep.subr.bf16.mxu0 0
        %2155 = vmatpush2.bf16.msra.mxu0 0
        %2156 = vmatprep.subr.bf16.mxu0 0
        %2157 = vmatpush2.bf16.msra.mxu0 0
        %2158 = vmatprep.subr.bf16.mxu0 0
        %2159 = vmatpush2.bf16.msra.mxu0 0
        %2160 = vmatprep.subr.bf16.mxu0 0
        %2161 = vmatpush2.bf16.msra.mxu0 0
        %2162 = vmatprep.subr.bf16.mxu0 0
        %2163 = vmatpush2.bf16.msra.mxu0 0
        %2164 = vmatprep.mubr.bf16.mxu0 0
        %2165 = vmatmul.mubr.bf16.gmra.mxu0 %v2090
        %v2166 = vpop.f32.mrf.mxu0
        %v2167 = vadd.f32 0.0, %v2166
        %v2168 = vpop.f32.mrf.mxu0
        %v2169 = vpop.f32.mrf.mxu0
        %v2170 = vpop.f32.mrf.mxu0
        %2171 = vdwg.mxu0
        %v2172 = vunpack.c.l.bf16 %v2083
        %v2173 = vadd.f32 %v2172, %v2127
        %v2174 = vxor.u32 %v2173, 2147483648
        %v2175 = vmul.f32 %v2174, 1.442695
        %v2176 = vpow.pop %v2175
        %v2177 = vadd.f32 %v2176, 1.0
        %v2178 = vrcp.pop %v2177
        %v2179 = vmul.f32 1.0, %v2178
        %v2180 = vunpack.c.l.bf16 %v2085
        %v2181 = vadd.f32 %v2180, %v2167
        %v2182 = vxor.u32 %v2181, 2147483648
        %v2183 = vmul.f32 %v2182, 1.442695
        %v2184 = vpow.pop %v2183
        %v2185 = vadd.f32 %v2184, 1.0
        %v2186 = vrcp.pop %v2185
        %v2187 = vmul.f32 1.0, %v2186
        %v2188 = vunpack.c.l.bf16 %v2087
        %2189 = vmatprep.subr.bf16.mxu0 0
        %2190 = vmatpush1.bf16.msra.mxu0 0
        %2191 = vmatprep.subr.bf16.mxu0 0
        %2192 = vmatpush1.bf16.msra.mxu0 0
        %2193 = vmatprep.subr.bf16.mxu0 0
        %2194 = vmatpush1.bf16.msra.mxu0 0
        %2195 = vmatprep.subr.bf16.mxu0 0
        %2196 = vmatpush1.bf16.msra.mxu0 0
        %2197 = vmatprep.subr.bf16.mxu0 0
        %2198 = vmatpush1.bf16.msra.mxu0 0
        %2199 = vmatprep.subr.bf16.mxu0 0
        %2200 = vmatpush1.bf16.msra.mxu0 0
        %2201 = vmatprep.subr.bf16.mxu0 0
        %2202 = vmatpush1.bf16.msra.mxu0 %v858
        %2203 = vmatprep.subr.bf16.mxu0 0
        %2204 = vmatpush1.bf16.msra.mxu0 %v857
        %2205 = vmatprep.subr.bf16.mxu0 0
        %2206 = vmatpush2.bf16.msra.mxu0 0
        %2207 = vmatprep.subr.bf16.mxu0 0
        %2208 = vmatpush2.bf16.msra.mxu0 0
        %2209 = vmatprep.subr.bf16.mxu0 0
        %2210 = vmatpush2.bf16.msra.mxu0 0
        %2211 = vmatprep.subr.bf16.mxu0 0
        %2212 = vmatpush2.bf16.msra.mxu0 0
        %2213 = vmatprep.subr.bf16.mxu0 0
        %2214 = vmatpush2.bf16.msra.mxu0 0
        %2215 = vmatprep.subr.bf16.mxu0 0
        %2216 = vmatpush2.bf16.msra.mxu0 0
        %2217 = vmatprep.subr.bf16.mxu0 0
        %2218 = vmatpush2.bf16.msra.mxu0 0
        %2219 = vmatprep.subr.bf16.mxu0 0
        %2220 = vmatpush2.bf16.msra.mxu0 0
        %2221 = vmatprep.mubr.bf16.mxu0 0
        %2222 = vmatmul.mubr.bf16.gmra.mxu0 %v2090
        %v2223 = vpop.f32.mrf.mxu0
        %v2224 = vadd.f32 %v847, %v2223
        %v2225 = vpop.f32.mrf.mxu0
        %v2226 = vpop.f32.mrf.mxu0
        %v2227 = vpop.f32.mrf.mxu0
        %2228 = vdwg.mxu0
        %v2229 = vmul.f32 %v2179, %v2224
        %v2230 = vadd.f32 %v2188, %v2229
        %v2231 = vtanh.pop %v2230
        %v2232 = vsub.f32 %v1911, %v2231
        %v2233 = vmul.f32 %v2187, %v2232
        %v2234 = vadd.f32 %v2231, %v2233
        %s2235 = sadd.s32 %s502, 3
        %v2236 = vstv %s2235
        %vm2237 = vcmp.gt.s32.totalorder %v473, %v2236
        %v2238 = vsel %vm2237, 1, 0
        %2239 = vset.pattern.permute.xlu0 0
        %2240 = vperm.xlu0 %2239, %v2238
        %v2241 = vpop.permute.xlu0 %2240
        %vm2242 = vcmp.eq.s32.totalorder %v2241, 1
        %v2243 = vsel %vm2242, %v2234, %v1911
        %v2244 = vsel %vm2242, %v2234, 0.0
        %v2245 = vpack.c.bf16 %v2244, %v2244
        %s2246 = scalar_lea.vmem %s458, 3 [#allocation13]
        %2247 = vst.msk [vmem:[%s2246] sm:$0x1] %vm710, %v2245
        %s2248 = scalar_lea.vmem %s399, 5 [#allocation4]
        %v2249 = vld [vmem:[%s2248] sm:$0x1]
        %s2250 = scalar_lea.vmem %s399, 13 [#allocation4]
        %v2251 = vld [vmem:[%s2250] sm:$0x1]
        %s2252 = scalar_lea.vmem %s399, 21 [#allocation4]
        %v2253 = vld [vmem:[%s2252] sm:$0x1]
        %v2254 = vpack.c.bf16 %v2077, %v2077
        %v2256 = vsel %vm523, %v2254, 0
        %2258 = vmatprep.subr.bf16.mxu0 0
        %2259 = vmatpush1.bf16.msra.mxu0 0
        %2260 = vmatprep.subr.bf16.mxu0 0
        %2261 = vmatpush1.bf16.msra.mxu0 0
        %2262 = vmatprep.subr.bf16.mxu0 0
        %2263 = vmatpush1.bf16.msra.mxu0 0
        %2264 = vmatprep.subr.bf16.mxu0 0
        %2265 = vmatpush1.bf16.msra.mxu0 0
        %2266 = vmatprep.subr.bf16.mxu0 0
        %2267 = vmatpush1.bf16.msra.mxu0 0
        %2268 = vmatprep.subr.bf16.mxu0 0
        %2269 = vmatpush1.bf16.msra.mxu0 0
        %2270 = vmatprep.subr.bf16.mxu0 0
        %2271 = vmatpush1.bf16.msra.mxu0 %v520
        %2272 = vmatprep.subr.bf16.mxu0 0
        %2273 = vmatpush1.bf16.msra.mxu0 %v519
        %2274 = vmatprep.subr.bf16.mxu0 0
        %2275 = vmatpush2.bf16.msra.mxu0 0
        %2276 = vmatprep.subr.bf16.mxu0 0
        %2277 = vmatpush2.bf16.msra.mxu0 0
        %2278 = vmatprep.subr.bf16.mxu0 0
        %2279 = vmatpush2.bf16.msra.mxu0 0
        %2280 = vmatprep.subr.bf16.mxu0 0
        %2281 = vmatpush2.bf16.msra.mxu0 0
        %2282 = vmatprep.subr.bf16.mxu0 0
        %2283 = vmatpush2.bf16.msra.mxu0 0
        %2284 = vmatprep.subr.bf16.mxu0 0
        %2285 = vmatpush2.bf16.msra.mxu0 0
        %2286 = vmatprep.subr.bf16.mxu0 0
        %2287 = vmatpush2.bf16.msra.mxu0 0
        %2288 = vmatprep.subr.bf16.mxu0 0
        %2289 = vmatpush2.bf16.msra.mxu0 0
        %2290 = vmatprep.mubr.bf16.mxu0 0
        %2291 = vmatmul.mubr.bf16.gmra.mxu0 %v2256
        %v2292 = vpop.f32.mrf.mxu0
        %v2293 = vadd.f32 0.0, %v2292
        %v2294 = vpop.f32.mrf.mxu0
        %v2295 = vpop.f32.mrf.mxu0
        %v2296 = vpop.f32.mrf.mxu0
        %2297 = vdwg.mxu0
        %2298 = vmatprep.subr.bf16.mxu0 0
        %2299 = vmatpush1.bf16.msra.mxu0 0
        %2300 = vmatprep.subr.bf16.mxu0 0
        %2301 = vmatpush1.bf16.msra.mxu0 0
        %2302 = vmatprep.subr.bf16.mxu0 0
        %2303 = vmatpush1.bf16.msra.mxu0 0
        %2304 = vmatprep.subr.bf16.mxu0 0
        %2305 = vmatpush1.bf16.msra.mxu0 0
        %2306 = vmatprep.subr.bf16.mxu0 0
        %2307 = vmatpush1.bf16.msra.mxu0 0
        %2308 = vmatprep.subr.bf16.mxu0 0
        %2309 = vmatpush1.bf16.msra.mxu0 0
        %2310 = vmatprep.subr.bf16.mxu0 0
        %2311 = vmatpush1.bf16.msra.mxu0 %v576
        %2312 = vmatprep.subr.bf16.mxu0 0
        %2313 = vmatpush1.bf16.msra.mxu0 %v575
        %2314 = vmatprep.subr.bf16.mxu0 0
        %2315 = vmatpush2.bf16.msra.mxu0 0
        %2316 = vmatprep.subr.bf16.mxu0 0
        %2317 = vmatpush2.bf16.msra.mxu0 0
        %2318 = vmatprep.subr.bf16.mxu0 0
        %2319 = vmatpush2.bf16.msra.mxu0 0
        %2320 = vmatprep.subr.bf16.mxu0 0
        %2321 = vmatpush2.bf16.msra.mxu0 0
        %2322 = vmatprep.subr.bf16.mxu0 0
        %2323 = vmatpush2.bf16.msra.mxu0 0
        %2324 = vmatprep.subr.bf16.mxu0 0
        %2325 = vmatpush2.bf16.msra.mxu0 0
        %2326 = vmatprep.subr.bf16.mxu0 0
        %2327 = vmatpush2.bf16.msra.mxu0 0
        %2328 = vmatprep.subr.bf16.mxu0 0
        %2329 = vmatpush2.bf16.msra.mxu0 0
        %2330 = vmatprep.mubr.bf16.mxu0 0
        %2331 = vmatmul.mubr.bf16.gmra.mxu0 %v2256
        %v2332 = vpop.f32.mrf.mxu0
        %v2333 = vadd.f32 0.0, %v2332
        %v2334 = vpop.f32.mrf.mxu0
        %v2335 = vpop.f32.mrf.mxu0
        %v2336 = vpop.f32.mrf.mxu0
        %2337 = vdwg.mxu0
        %v2338 = vunpack.c.l.bf16 %v2249
        %v2339 = vadd.f32 %v2338, %v2293
        %v2340 = vxor.u32 %v2339, 2147483648
        %v2341 = vmul.f32 %v2340, 1.442695
        %v2342 = vpow.pop %v2341
        %v2343 = vadd.f32 %v2342, 1.0
        %v2344 = vrcp.pop %v2343
        %v2345 = vmul.f32 1.0, %v2344
        %v2346 = vunpack.c.l.bf16 %v2251
        %v2347 = vadd.f32 %v2346, %v2333
        %v2348 = vxor.u32 %v2347, 2147483648
        %v2349 = vmul.f32 %v2348, 1.442695
        %v2350 = vpow.pop %v2349
        %v2351 = vadd.f32 %v2350, 1.0
        %v2352 = vrcp.pop %v2351
        %v2353 = vmul.f32 1.0, %v2352
        %v2354 = vunpack.c.l.bf16 %v2253
        %2355 = vmatprep.subr.bf16.mxu0 0
        %2356 = vmatpush1.bf16.msra.mxu0 0
        %2357 = vmatprep.subr.bf16.mxu0 0
        %2358 = vmatpush1.bf16.msra.mxu0 0
        %2359 = vmatprep.subr.bf16.mxu0 0
        %2360 = vmatpush1.bf16.msra.mxu0 0
        %2361 = vmatprep.subr.bf16.mxu0 0
        %2362 = vmatpush1.bf16.msra.mxu0 0
        %2363 = vmatprep.subr.bf16.mxu0 0
        %2364 = vmatpush1.bf16.msra.mxu0 0
        %2365 = vmatprep.subr.bf16.mxu0 0
        %2366 = vmatpush1.bf16.msra.mxu0 0
        %2367 = vmatprep.subr.bf16.mxu0 0
        %2368 = vmatpush1.bf16.msra.mxu0 %v651
        %2369 = vmatprep.subr.bf16.mxu0 0
        %2370 = vmatpush1.bf16.msra.mxu0 %v650
        %2371 = vmatprep.subr.bf16.mxu0 0
        %2372 = vmatpush2.bf16.msra.mxu0 0
        %2373 = vmatprep.subr.bf16.mxu0 0
        %2374 = vmatpush2.bf16.msra.mxu0 0
        %2375 = vmatprep.subr.bf16.mxu0 0
        %2376 = vmatpush2.bf16.msra.mxu0 0
        %2377 = vmatprep.subr.bf16.mxu0 0
        %2378 = vmatpush2.bf16.msra.mxu0 0
        %2379 = vmatprep.subr.bf16.mxu0 0
        %2380 = vmatpush2.bf16.msra.mxu0 0
        %2381 = vmatprep.subr.bf16.mxu0 0
        %2382 = vmatpush2.bf16.msra.mxu0 0
        %2383 = vmatprep.subr.bf16.mxu0 0
        %2384 = vmatpush2.bf16.msra.mxu0 0
        %2385 = vmatprep.subr.bf16.mxu0 0
        %2386 = vmatpush2.bf16.msra.mxu0 0
        %2387 = vmatprep.mubr.bf16.mxu0 0
        %2388 = vmatmul.mubr.bf16.gmra.mxu0 %v2256
        %v2389 = vpop.f32.mrf.mxu0
        %v2390 = vadd.f32 %v640, %v2389
        %v2391 = vpop.f32.mrf.mxu0
        %v2392 = vpop.f32.mrf.mxu0
        %v2393 = vpop.f32.mrf.mxu0
        %2394 = vdwg.mxu0
        %v2395 = vmul.f32 %v2345, %v2390
        %v2396 = vadd.f32 %v2354, %v2395
        %v2397 = vtanh.pop %v2396
        %v2398 = vsub.f32 %v2077, %v2397
        %v2399 = vmul.f32 %v2353, %v2398
        %v2400 = vadd.f32 %v2397, %v2399
        %s2401 = sadd.s32 %s500, 5
        %v2402 = vstv %s2401
        %vm2403 = vcmp.gt.s32.totalorder %v473, %v2402
        %v2404 = vsel %vm2403, 1, 0
        %2405 = vset.pattern.permute.xlu0 0
        %2406 = vperm.xlu0 %2405, %v2404
        %v2407 = vpop.permute.xlu0 %2406
        %vm2408 = vcmp.eq.s32.totalorder %v2407, 1
        %v2409 = vsel %vm2408, %v2400, %v2077
        %v2410 = vsel %vm2408, %v2400, 0.0
        %v2411 = vpack.c.bf16 %v2410, %v2410
        %s2412 = scalar_lea.vmem %s451, 5 [#allocation12]
        %2413 = vst.msk [vmem:[%s2412] sm:$0x1] %vm710, %v2411
        %s2414 = scalar_lea.vmem %s408, 2 [#allocation7]
        %v2415 = vld [vmem:[%s2414] sm:$0x1]
        %s2416 = scalar_lea.vmem %s408, 10 [#allocation7]
        %v2417 = vld [vmem:[%s2416] sm:$0x1]
        %s2418 = scalar_lea.vmem %s408, 18 [#allocation7]
        %v2419 = vld [vmem:[%s2418] sm:$0x1]
        %v2420 = vpack.c.bf16 %v2243, %v2243
        %v2422 = vsel %vm523, %v2420, 0
        %2424 = vmatprep.subr.bf16.mxu0 0
        %2425 = vmatpush1.bf16.msra.mxu0 0
        %2426 = vmatprep.subr.bf16.mxu0 0
        %2427 = vmatpush1.bf16.msra.mxu0 0
        %2428 = vmatprep.subr.bf16.mxu0 0
        %2429 = vmatpush1.bf16.msra.mxu0 0
        %2430 = vmatprep.subr.bf16.mxu0 0
        %2431 = vmatpush1.bf16.msra.mxu0 0
        %2432 = vmatprep.subr.bf16.mxu0 0
        %2433 = vmatpush1.bf16.msra.mxu0 0
        %2434 = vmatprep.subr.bf16.mxu0 0
        %2435 = vmatpush1.bf16.msra.mxu0 0
        %2436 = vmatprep.subr.bf16.mxu0 0
        %2437 = vmatpush1.bf16.msra.mxu0 %v728
        %2438 = vmatprep.subr.bf16.mxu0 0
        %2439 = vmatpush1.bf16.msra.mxu0 %v727
        %2440 = vmatprep.subr.bf16.mxu0 0
        %2441 = vmatpush2.bf16.msra.mxu0 0
        %2442 = vmatprep.subr.bf16.mxu0 0
        %2443 = vmatpush2.bf16.msra.mxu0 0
        %2444 = vmatprep.subr.bf16.mxu0 0
        %2445 = vmatpush2.bf16.msra.mxu0 0
        %2446 = vmatprep.subr.bf16.mxu0 0
        %2447 = vmatpush2.bf16.msra.mxu0 0
        %2448 = vmatprep.subr.bf16.mxu0 0
        %2449 = vmatpush2.bf16.msra.mxu0 0
        %2450 = vmatprep.subr.bf16.mxu0 0
        %2451 = vmatpush2.bf16.msra.mxu0 0
        %2452 = vmatprep.subr.bf16.mxu0 0
        %2453 = vmatpush2.bf16.msra.mxu0 0
        %2454 = vmatprep.subr.bf16.mxu0 0
        %2455 = vmatpush2.bf16.msra.mxu0 0
        %2456 = vmatprep.mubr.bf16.mxu0 0
        %2457 = vmatmul.mubr.bf16.gmra.mxu0 %v2422
        %v2458 = vpop.f32.mrf.mxu0
        %v2459 = vadd.f32 0.0, %v2458
        %v2460 = vpop.f32.mrf.mxu0
        %v2461 = vpop.f32.mrf.mxu0
        %v2462 = vpop.f32.mrf.mxu0
        %2463 = vdwg.mxu0
        %2464 = vmatprep.subr.bf16.mxu0 0
        %2465 = vmatpush1.bf16.msra.mxu0 0
        %2466 = vmatprep.subr.bf16.mxu0 0
        %2467 = vmatpush1.bf16.msra.mxu0 0
        %2468 = vmatprep.subr.bf16.mxu0 0
        %2469 = vmatpush1.bf16.msra.mxu0 0
        %2470 = vmatprep.subr.bf16.mxu0 0
        %2471 = vmatpush1.bf16.msra.mxu0 0
        %2472 = vmatprep.subr.bf16.mxu0 0
        %2473 = vmatpush1.bf16.msra.mxu0 0
        %2474 = vmatprep.subr.bf16.mxu0 0
        %2475 = vmatpush1.bf16.msra.mxu0 0
        %2476 = vmatprep.subr.bf16.mxu0 0
        %2477 = vmatpush1.bf16.msra.mxu0 %v783
        %2478 = vmatprep.subr.bf16.mxu0 0
        %2479 = vmatpush1.bf16.msra.mxu0 %v782
        %2480 = vmatprep.subr.bf16.mxu0 0
        %2481 = vmatpush2.bf16.msra.mxu0 0
        %2482 = vmatprep.subr.bf16.mxu0 0
        %2483 = vmatpush2.bf16.msra.mxu0 0
        %2484 = vmatprep.subr.bf16.mxu0 0
        %2485 = vmatpush2.bf16.msra.mxu0 0
        %2486 = vmatprep.subr.bf16.mxu0 0
        %2487 = vmatpush2.bf16.msra.mxu0 0
        %2488 = vmatprep.subr.bf16.mxu0 0
        %2489 = vmatpush2.bf16.msra.mxu0 0
        %2490 = vmatprep.subr.bf16.mxu0 0
        %2491 = vmatpush2.bf16.msra.mxu0 0
        %2492 = vmatprep.subr.bf16.mxu0 0
        %2493 = vmatpush2.bf16.msra.mxu0 0
        %2494 = vmatprep.subr.bf16.mxu0 0
        %2495 = vmatpush2.bf16.msra.mxu0 0
        %2496 = vmatprep.mubr.bf16.mxu0 0
        %2497 = vmatmul.mubr.bf16.gmra.mxu0 %v2422
        %v2498 = vpop.f32.mrf.mxu0
        %v2499 = vadd.f32 0.0, %v2498
        %v2500 = vpop.f32.mrf.mxu0
        %v2501 = vpop.f32.mrf.mxu0
        %v2502 = vpop.f32.mrf.mxu0
        %2503 = vdwg.mxu0
        %v2504 = vunpack.c.l.bf16 %v2415
        %v2505 = vadd.f32 %v2504, %v2459
        %v2506 = vxor.u32 %v2505, 2147483648
        %v2507 = vmul.f32 %v2506, 1.442695
        %v2508 = vpow.pop %v2507
        %v2509 = vadd.f32 %v2508, 1.0
        %v2510 = vrcp.pop %v2509
        %v2511 = vmul.f32 1.0, %v2510
        %v2512 = vunpack.c.l.bf16 %v2417
        %v2513 = vadd.f32 %v2512, %v2499
        %v2514 = vxor.u32 %v2513, 2147483648
        %v2515 = vmul.f32 %v2514, 1.442695
        %v2516 = vpow.pop %v2515
        %v2517 = vadd.f32 %v2516, 1.0
        %v2518 = vrcp.pop %v2517
        %v2519 = vmul.f32 1.0, %v2518
        %v2520 = vunpack.c.l.bf16 %v2419
        %2521 = vmatprep.subr.bf16.mxu0 0
        %2522 = vmatpush1.bf16.msra.mxu0 0
        %2523 = vmatprep.subr.bf16.mxu0 0
        %2524 = vmatpush1.bf16.msra.mxu0 0
        %2525 = vmatprep.subr.bf16.mxu0 0
        %2526 = vmatpush1.bf16.msra.mxu0 0
        %2527 = vmatprep.subr.bf16.mxu0 0
        %2528 = vmatpush1.bf16.msra.mxu0 0
        %2529 = vmatprep.subr.bf16.mxu0 0
        %2530 = vmatpush1.bf16.msra.mxu0 0
        %2531 = vmatprep.subr.bf16.mxu0 0
        %2532 = vmatpush1.bf16.msra.mxu0 0
        %2533 = vmatprep.subr.bf16.mxu0 0
        %2534 = vmatpush1.bf16.msra.mxu0 %v858
        %2535 = vmatprep.subr.bf16.mxu0 0
        %2536 = vmatpush1.bf16.msra.mxu0 %v857
        %2537 = vmatprep.subr.bf16.mxu0 0
        %2538 = vmatpush2.bf16.msra.mxu0 0
        %2539 = vmatprep.subr.bf16.mxu0 0
        %2540 = vmatpush2.bf16.msra.mxu0 0
        %2541 = vmatprep.subr.bf16.mxu0 0
        %2542 = vmatpush2.bf16.msra.mxu0 0
        %2543 = vmatprep.subr.bf16.mxu0 0
        %2544 = vmatpush2.bf16.msra.mxu0 0
        %2545 = vmatprep.subr.bf16.mxu0 0
        %2546 = vmatpush2.bf16.msra.mxu0 0
        %2547 = vmatprep.subr.bf16.mxu0 0
        %2548 = vmatpush2.bf16.msra.mxu0 0
        %2549 = vmatprep.subr.bf16.mxu0 0
        %2550 = vmatpush2.bf16.msra.mxu0 0
        %2551 = vmatprep.subr.bf16.mxu0 0
        %2552 = vmatpush2.bf16.msra.mxu0 0
        %2553 = vmatprep.mubr.bf16.mxu0 0
        %2554 = vmatmul.mubr.bf16.gmra.mxu0 %v2422
        %v2555 = vpop.f32.mrf.mxu0
        %v2556 = vadd.f32 %v847, %v2555
        %v2557 = vpop.f32.mrf.mxu0
        %v2558 = vpop.f32.mrf.mxu0
        %v2559 = vpop.f32.mrf.mxu0
        %2560 = vdwg.mxu0
        %v2561 = vmul.f32 %v2511, %v2556
        %v2562 = vadd.f32 %v2520, %v2561
        %v2563 = vtanh.pop %v2562
        %v2564 = vsub.f32 %v2243, %v2563
        %v2565 = vmul.f32 %v2519, %v2564
        %v2566 = vadd.f32 %v2563, %v2565
        %s2567 = sadd.s32 %s502, 2
        %v2568 = vstv %s2567
        %vm2569 = vcmp.gt.s32.totalorder %v473, %v2568
        %v2570 = vsel %vm2569, 1, 0
        %2571 = vset.pattern.permute.xlu0 0
        %2572 = vperm.xlu0 %2571, %v2570
        %v2573 = vpop.permute.xlu0 %2572
        %vm2574 = vcmp.eq.s32.totalorder %v2573, 1
        %v2575 = vsel %vm2574, %v2566, %v2243
        %v2576 = vsel %vm2574, %v2566, 0.0
        %v2577 = vpack.c.bf16 %v2576, %v2576
        %s2578 = scalar_lea.vmem %s458, 2 [#allocation13]
        %2579 = vst.msk [vmem:[%s2578] sm:$0x1] %vm710, %v2577
        %s2580 = scalar_lea.vmem %s399, 6 [#allocation4]
        %v2581 = vld [vmem:[%s2580] sm:$0x1]
        %s2582 = scalar_lea.vmem %s399, 14 [#allocation4]
        %v2583 = vld [vmem:[%s2582] sm:$0x1]
        %s2584 = scalar_lea.vmem %s399, 22 [#allocation4]
        %v2585 = vld [vmem:[%s2584] sm:$0x1]
        %v2586 = vpack.c.bf16 %v2409, %v2409
        %v2588 = vsel %vm523, %v2586, 0
        %2590 = vmatprep.subr.bf16.mxu0 0
        %2591 = vmatpush1.bf16.msra.mxu0 0
        %2592 = vmatprep.subr.bf16.mxu0 0
        %2593 = vmatpush1.bf16.msra.mxu0 0
        %2594 = vmatprep.subr.bf16.mxu0 0
        %2595 = vmatpush1.bf16.msra.mxu0 0
        %2596 = vmatprep.subr.bf16.mxu0 0
        %2597 = vmatpush1.bf16.msra.mxu0 0
        %2598 = vmatprep.subr.bf16.mxu0 0
        %2599 = vmatpush1.bf16.msra.mxu0 0
        %2600 = vmatprep.subr.bf16.mxu0 0
        %2601 = vmatpush1.bf16.msra.mxu0 0
        %2602 = vmatprep.subr.bf16.mxu0 0
        %2603 = vmatpush1.bf16.msra.mxu0 %v520
        %2604 = vmatprep.subr.bf16.mxu0 0
        %2605 = vmatpush1.bf16.msra.mxu0 %v519
        %2606 = vmatprep.subr.bf16.mxu0 0
        %2607 = vmatpush2.bf16.msra.mxu0 0
        %2608 = vmatprep.subr.bf16.mxu0 0
        %2609 = vmatpush2.bf16.msra.mxu0 0
        %2610 = vmatprep.subr.bf16.mxu0 0
        %2611 = vmatpush2.bf16.msra.mxu0 0
        %2612 = vmatprep.subr.bf16.mxu0 0
        %2613 = vmatpush2.bf16.msra.mxu0 0
        %2614 = vmatprep.subr.bf16.mxu0 0
        %2615 = vmatpush2.bf16.msra.mxu0 0
        %2616 = vmatprep.subr.bf16.mxu0 0
        %2617 = vmatpush2.bf16.msra.mxu0 0
        %2618 = vmatprep.subr.bf16.mxu0 0
        %2619 = vmatpush2.bf16.msra.mxu0 0
        %2620 = vmatprep.subr.bf16.mxu0 0
        %2621 = vmatpush2.bf16.msra.mxu0 0
        %2622 = vmatprep.mubr.bf16.mxu0 0
        %2623 = vmatmul.mubr.bf16.gmra.mxu0 %v2588
        %v2624 = vpop.f32.mrf.mxu0
        %v2625 = vadd.f32 0.0, %v2624
        %v2626 = vpop.f32.mrf.mxu0
        %v2627 = vpop.f32.mrf.mxu0
        %v2628 = vpop.f32.mrf.mxu0
        %2629 = vdwg.mxu0
        %2630 = vmatprep.subr.bf16.mxu0 0
        %2631 = vmatpush1.bf16.msra.mxu0 0
        %2632 = vmatprep.subr.bf16.mxu0 0
        %2633 = vmatpush1.bf16.msra.mxu0 0
        %2634 = vmatprep.subr.bf16.mxu0 0
        %2635 = vmatpush1.bf16.msra.mxu0 0
        %2636 = vmatprep.subr.bf16.mxu0 0
        %2637 = vmatpush1.bf16.msra.mxu0 0
        %2638 = vmatprep.subr.bf16.mxu0 0
        %2639 = vmatpush1.bf16.msra.mxu0 0
        %2640 = vmatprep.subr.bf16.mxu0 0
        %2641 = vmatpush1.bf16.msra.mxu0 0
        %2642 = vmatprep.subr.bf16.mxu0 0
        %2643 = vmatpush1.bf16.msra.mxu0 %v576
        %2644 = vmatprep.subr.bf16.mxu0 0
        %2645 = vmatpush1.bf16.msra.mxu0 %v575
        %2646 = vmatprep.subr.bf16.mxu0 0
        %2647 = vmatpush2.bf16.msra.mxu0 0
        %2648 = vmatprep.subr.bf16.mxu0 0
        %2649 = vmatpush2.bf16.msra.mxu0 0
        %2650 = vmatprep.subr.bf16.mxu0 0
        %2651 = vmatpush2.bf16.msra.mxu0 0
        %2652 = vmatprep.subr.bf16.mxu0 0
        %2653 = vmatpush2.bf16.msra.mxu0 0
        %2654 = vmatprep.subr.bf16.mxu0 0
        %2655 = vmatpush2.bf16.msra.mxu0 0
        %2656 = vmatprep.subr.bf16.mxu0 0
        %2657 = vmatpush2.bf16.msra.mxu0 0
        %2658 = vmatprep.subr.bf16.mxu0 0
        %2659 = vmatpush2.bf16.msra.mxu0 0
        %2660 = vmatprep.subr.bf16.mxu0 0
        %2661 = vmatpush2.bf16.msra.mxu0 0
        %2662 = vmatprep.mubr.bf16.mxu0 0
        %2663 = vmatmul.mubr.bf16.gmra.mxu0 %v2588
        %v2664 = vpop.f32.mrf.mxu0
        %v2665 = vadd.f32 0.0, %v2664
        %v2666 = vpop.f32.mrf.mxu0
        %v2667 = vpop.f32.mrf.mxu0
        %v2668 = vpop.f32.mrf.mxu0
        %2669 = vdwg.mxu0
        %v2670 = vunpack.c.l.bf16 %v2581
        %v2671 = vadd.f32 %v2670, %v2625
        %v2672 = vxor.u32 %v2671, 2147483648
        %v2673 = vmul.f32 %v2672, 1.442695
        %v2674 = vpow.pop %v2673
        %v2675 = vadd.f32 %v2674, 1.0
        %v2676 = vrcp.pop %v2675
        %v2677 = vmul.f32 1.0, %v2676
        %v2678 = vunpack.c.l.bf16 %v2583
        %v2679 = vadd.f32 %v2678, %v2665
        %v2680 = vxor.u32 %v2679, 2147483648
        %v2681 = vmul.f32 %v2680, 1.442695
        %v2682 = vpow.pop %v2681
        %v2683 = vadd.f32 %v2682, 1.0
        %v2684 = vrcp.pop %v2683
        %v2685 = vmul.f32 1.0, %v2684
        %v2686 = vunpack.c.l.bf16 %v2585
        %2687 = vmatprep.subr.bf16.mxu0 0
        %2688 = vmatpush1.bf16.msra.mxu0 0
        %2689 = vmatprep.subr.bf16.mxu0 0
        %2690 = vmatpush1.bf16.msra.mxu0 0
        %2691 = vmatprep.subr.bf16.mxu0 0
        %2692 = vmatpush1.bf16.msra.mxu0 0
        %2693 = vmatprep.subr.bf16.mxu0 0
        %2694 = vmatpush1.bf16.msra.mxu0 0
        %2695 = vmatprep.subr.bf16.mxu0 0
        %2696 = vmatpush1.bf16.msra.mxu0 0
        %2697 = vmatprep.subr.bf16.mxu0 0
        %2698 = vmatpush1.bf16.msra.mxu0 0
        %2699 = vmatprep.subr.bf16.mxu0 0
        %2700 = vmatpush1.bf16.msra.mxu0 %v651
        %2701 = vmatprep.subr.bf16.mxu0 0
        %2702 = vmatpush1.bf16.msra.mxu0 %v650
        %2703 = vmatprep.subr.bf16.mxu0 0
        %2704 = vmatpush2.bf16.msra.mxu0 0
        %2705 = vmatprep.subr.bf16.mxu0 0
        %2706 = vmatpush2.bf16.msra.mxu0 0
        %2707 = vmatprep.subr.bf16.mxu0 0
        %2708 = vmatpush2.bf16.msra.mxu0 0
        %2709 = vmatprep.subr.bf16.mxu0 0
        %2710 = vmatpush2.bf16.msra.mxu0 0
        %2711 = vmatprep.subr.bf16.mxu0 0
        %2712 = vmatpush2.bf16.msra.mxu0 0
        %2713 = vmatprep.subr.bf16.mxu0 0
        %2714 = vmatpush2.bf16.msra.mxu0 0
        %2715 = vmatprep.subr.bf16.mxu0 0
        %2716 = vmatpush2.bf16.msra.mxu0 0
        %2717 = vmatprep.subr.bf16.mxu0 0
        %2718 = vmatpush2.bf16.msra.mxu0 0
        %2719 = vmatprep.mubr.bf16.mxu0 0
        %2720 = vmatmul.mubr.bf16.gmra.mxu0 %v2588
        %v2721 = vpop.f32.mrf.mxu0
        %v2722 = vadd.f32 %v640, %v2721
        %v2723 = vpop.f32.mrf.mxu0
        %v2724 = vpop.f32.mrf.mxu0
        %v2725 = vpop.f32.mrf.mxu0
        %2726 = vdwg.mxu0
        %v2727 = vmul.f32 %v2677, %v2722
        %v2728 = vadd.f32 %v2686, %v2727
        %v2729 = vtanh.pop %v2728
        %v2730 = vsub.f32 %v2409, %v2729
        %v2731 = vmul.f32 %v2685, %v2730
        %v2732 = vadd.f32 %v2729, %v2731
        %s2733 = sadd.s32 %s500, 6
        %v2734 = vstv %s2733
        %vm2735 = vcmp.gt.s32.totalorder %v473, %v2734
        %v2736 = vsel %vm2735, 1, 0
        %2737 = vset.pattern.permute.xlu0 0
        %2738 = vperm.xlu0 %2737, %v2736
        %v2739 = vpop.permute.xlu0 %2738
        %vm2740 = vcmp.eq.s32.totalorder %v2739, 1
        %v2741 = vsel %vm2740, %v2732, %v2409
        %v2742 = vsel %vm2740, %v2732, 0.0
        %v2743 = vpack.c.bf16 %v2742, %v2742
        %s2744 = scalar_lea.vmem %s451, 6 [#allocation12]
        %2745 = vst.msk [vmem:[%s2744] sm:$0x1] %vm710, %v2743
        %s2746 = scalar_lea.vmem %s408, 1 [#allocation7]
        %v2747 = vld [vmem:[%s2746] sm:$0x1]
        %s2748 = scalar_lea.vmem %s408, 9 [#allocation7]
        %v2749 = vld [vmem:[%s2748] sm:$0x1]
        %s2750 = scalar_lea.vmem %s408, 17 [#allocation7]
        %v2751 = vld [vmem:[%s2750] sm:$0x1]
        %v2752 = vpack.c.bf16 %v2575, %v2575
        %v2754 = vsel %vm523, %v2752, 0
        %2756 = vmatprep.subr.bf16.mxu0 0
        %2757 = vmatpush1.bf16.msra.mxu0 0
        %2758 = vmatprep.subr.bf16.mxu0 0
        %2759 = vmatpush1.bf16.msra.mxu0 0
        %2760 = vmatprep.subr.bf16.mxu0 0
        %2761 = vmatpush1.bf16.msra.mxu0 0
        %2762 = vmatprep.subr.bf16.mxu0 0
        %2763 = vmatpush1.bf16.msra.mxu0 0
        %2764 = vmatprep.subr.bf16.mxu0 0
        %2765 = vmatpush1.bf16.msra.mxu0 0
        %2766 = vmatprep.subr.bf16.mxu0 0
        %2767 = vmatpush1.bf16.msra.mxu0 0
        %2768 = vmatprep.subr.bf16.mxu0 0
        %2769 = vmatpush1.bf16.msra.mxu0 %v728
        %2770 = vmatprep.subr.bf16.mxu0 0
        %2771 = vmatpush1.bf16.msra.mxu0 %v727
        %2772 = vmatprep.subr.bf16.mxu0 0
        %2773 = vmatpush2.bf16.msra.mxu0 0
        %2774 = vmatprep.subr.bf16.mxu0 0
        %2775 = vmatpush2.bf16.msra.mxu0 0
        %2776 = vmatprep.subr.bf16.mxu0 0
        %2777 = vmatpush2.bf16.msra.mxu0 0
        %2778 = vmatprep.subr.bf16.mxu0 0
        %2779 = vmatpush2.bf16.msra.mxu0 0
        %2780 = vmatprep.subr.bf16.mxu0 0
        %2781 = vmatpush2.bf16.msra.mxu0 0
        %2782 = vmatprep.subr.bf16.mxu0 0
        %2783 = vmatpush2.bf16.msra.mxu0 0
        %2784 = vmatprep.subr.bf16.mxu0 0
        %2785 = vmatpush2.bf16.msra.mxu0 0
        %2786 = vmatprep.subr.bf16.mxu0 0
        %2787 = vmatpush2.bf16.msra.mxu0 0
        %2788 = vmatprep.mubr.bf16.mxu0 0
        %2789 = vmatmul.mubr.bf16.gmra.mxu0 %v2754
        %v2790 = vpop.f32.mrf.mxu0
        %v2791 = vadd.f32 0.0, %v2790
        %v2792 = vpop.f32.mrf.mxu0
        %v2793 = vpop.f32.mrf.mxu0
        %v2794 = vpop.f32.mrf.mxu0
        %2795 = vdwg.mxu0
        %2796 = vmatprep.subr.bf16.mxu0 0
        %2797 = vmatpush1.bf16.msra.mxu0 0
        %2798 = vmatprep.subr.bf16.mxu0 0
        %2799 = vmatpush1.bf16.msra.mxu0 0
        %2800 = vmatprep.subr.bf16.mxu0 0
        %2801 = vmatpush1.bf16.msra.mxu0 0
        %2802 = vmatprep.subr.bf16.mxu0 0
        %2803 = vmatpush1.bf16.msra.mxu0 0
        %2804 = vmatprep.subr.bf16.mxu0 0
        %2805 = vmatpush1.bf16.msra.mxu0 0
        %2806 = vmatprep.subr.bf16.mxu0 0
        %2807 = vmatpush1.bf16.msra.mxu0 0
        %2808 = vmatprep.subr.bf16.mxu0 0
        %2809 = vmatpush1.bf16.msra.mxu0 %v783
        %2810 = vmatprep.subr.bf16.mxu0 0
        %2811 = vmatpush1.bf16.msra.mxu0 %v782
        %2812 = vmatprep.subr.bf16.mxu0 0
        %2813 = vmatpush2.bf16.msra.mxu0 0
        %2814 = vmatprep.subr.bf16.mxu0 0
        %2815 = vmatpush2.bf16.msra.mxu0 0
        %2816 = vmatprep.subr.bf16.mxu0 0
        %2817 = vmatpush2.bf16.msra.mxu0 0
        %2818 = vmatprep.subr.bf16.mxu0 0
        %2819 = vmatpush2.bf16.msra.mxu0 0
        %2820 = vmatprep.subr.bf16.mxu0 0
        %2821 = vmatpush2.bf16.msra.mxu0 0
        %2822 = vmatprep.subr.bf16.mxu0 0
        %2823 = vmatpush2.bf16.msra.mxu0 0
        %2824 = vmatprep.subr.bf16.mxu0 0
        %2825 = vmatpush2.bf16.msra.mxu0 0
        %2826 = vmatprep.subr.bf16.mxu0 0
        %2827 = vmatpush2.bf16.msra.mxu0 0
        %2828 = vmatprep.mubr.bf16.mxu0 0
        %2829 = vmatmul.mubr.bf16.gmra.mxu0 %v2754
        %v2830 = vpop.f32.mrf.mxu0
        %v2831 = vadd.f32 0.0, %v2830
        %v2832 = vpop.f32.mrf.mxu0
        %v2833 = vpop.f32.mrf.mxu0
        %v2834 = vpop.f32.mrf.mxu0
        %2835 = vdwg.mxu0
        %v2836 = vunpack.c.l.bf16 %v2747
        %v2837 = vadd.f32 %v2836, %v2791
        %v2838 = vxor.u32 %v2837, 2147483648
        %v2839 = vmul.f32 %v2838, 1.442695
        %v2840 = vpow.pop %v2839
        %v2841 = vadd.f32 %v2840, 1.0
        %v2842 = vrcp.pop %v2841
        %v2843 = vmul.f32 1.0, %v2842
        %v2844 = vunpack.c.l.bf16 %v2749
        %v2845 = vadd.f32 %v2844, %v2831
        %v2846 = vxor.u32 %v2845, 2147483648
        %v2847 = vmul.f32 %v2846, 1.442695
        %v2848 = vpow.pop %v2847
        %v2849 = vadd.f32 %v2848, 1.0
        %v2850 = vrcp.pop %v2849
        %v2851 = vmul.f32 1.0, %v2850
        %v2852 = vunpack.c.l.bf16 %v2751
        %2853 = vmatprep.subr.bf16.mxu0 0
        %2854 = vmatpush1.bf16.msra.mxu0 0
        %2855 = vmatprep.subr.bf16.mxu0 0
        %2856 = vmatpush1.bf16.msra.mxu0 0
        %2857 = vmatprep.subr.bf16.mxu0 0
        %2858 = vmatpush1.bf16.msra.mxu0 0
        %2859 = vmatprep.subr.bf16.mxu0 0
        %2860 = vmatpush1.bf16.msra.mxu0 0
        %2861 = vmatprep.subr.bf16.mxu0 0
        %2862 = vmatpush1.bf16.msra.mxu0 0
        %2863 = vmatprep.subr.bf16.mxu0 0
        %2864 = vmatpush1.bf16.msra.mxu0 0
        %2865 = vmatprep.subr.bf16.mxu0 0
        %2866 = vmatpush1.bf16.msra.mxu0 %v858
        %2867 = vmatprep.subr.bf16.mxu0 0
        %2868 = vmatpush1.bf16.msra.mxu0 %v857
        %2869 = vmatprep.subr.bf16.mxu0 0
        %2870 = vmatpush2.bf16.msra.mxu0 0
        %2871 = vmatprep.subr.bf16.mxu0 0
        %2872 = vmatpush2.bf16.msra.mxu0 0
        %2873 = vmatprep.subr.bf16.mxu0 0
        %2874 = vmatpush2.bf16.msra.mxu0 0
        %2875 = vmatprep.subr.bf16.mxu0 0
        %2876 = vmatpush2.bf16.msra.mxu0 0
        %2877 = vmatprep.subr.bf16.mxu0 0
        %2878 = vmatpush2.bf16.msra.mxu0 0
        %2879 = vmatprep.subr.bf16.mxu0 0
        %2880 = vmatpush2.bf16.msra.mxu0 0
        %2881 = vmatprep.subr.bf16.mxu0 0
        %2882 = vmatpush2.bf16.msra.mxu0 0
        %2883 = vmatprep.subr.bf16.mxu0 0
        %2884 = vmatpush2.bf16.msra.mxu0 0
        %2885 = vmatprep.mubr.bf16.mxu0 0
        %2886 = vmatmul.mubr.bf16.gmra.mxu0 %v2754
        %v2887 = vpop.f32.mrf.mxu0
        %v2888 = vadd.f32 %v847, %v2887
        %v2889 = vpop.f32.mrf.mxu0
        %v2890 = vpop.f32.mrf.mxu0
        %v2891 = vpop.f32.mrf.mxu0
        %2892 = vdwg.mxu0
        %v2893 = vmul.f32 %v2843, %v2888
        %v2894 = vadd.f32 %v2852, %v2893
        %v2895 = vtanh.pop %v2894
        %v2896 = vsub.f32 %v2575, %v2895
        %v2897 = vmul.f32 %v2851, %v2896
        %v2898 = vadd.f32 %v2895, %v2897
        %s2899 = sadd.s32 %s502, 1
        %v2900 = vstv %s2899
        %vm2901 = vcmp.gt.s32.totalorder %v473, %v2900
        %v2902 = vsel %vm2901, 1, 0
        %2903 = vset.pattern.permute.xlu0 0
        %2904 = vperm.xlu0 %2903, %v2902
        %v2905 = vpop.permute.xlu0 %2904
        %vm2906 = vcmp.eq.s32.totalorder %v2905, 1
        %v2907 = vsel %vm2906, %v2898, %v2575
        %v2908 = vsel %vm2906, %v2898, 0.0
        %v2909 = vpack.c.bf16 %v2908, %v2908
        %s2910 = scalar_lea.vmem %s458, 1 [#allocation13]
        %2911 = vst.msk [vmem:[%s2910] sm:$0x1] %vm710, %v2909
        %s2912 = scalar_lea.vmem %s399, 7 [#allocation4]
        %v2913 = vld [vmem:[%s2912] sm:$0x1]
        %s2914 = scalar_lea.vmem %s399, 15 [#allocation4]
        %v2915 = vld [vmem:[%s2914] sm:$0x1]
        %s2916 = scalar_lea.vmem %s399, 23 [#allocation4]
        %v2917 = vld [vmem:[%s2916] sm:$0x1]
        %v2918 = vpack.c.bf16 %v2741, %v2741
        %v2920 = vsel %vm523, %v2918, 0
        %2922 = vmatprep.subr.bf16.mxu0 0
        %2923 = vmatpush1.bf16.msra.mxu0 0
        %2924 = vmatprep.subr.bf16.mxu0 0
        %2925 = vmatpush1.bf16.msra.mxu0 0
        %2926 = vmatprep.subr.bf16.mxu0 0
        %2927 = vmatpush1.bf16.msra.mxu0 0
        %2928 = vmatprep.subr.bf16.mxu0 0
        %2929 = vmatpush1.bf16.msra.mxu0 0
        %2930 = vmatprep.subr.bf16.mxu0 0
        %2931 = vmatpush1.bf16.msra.mxu0 0
        %2932 = vmatprep.subr.bf16.mxu0 0
        %2933 = vmatpush1.bf16.msra.mxu0 0
        %2934 = vmatprep.subr.bf16.mxu0 0
        %2935 = vmatpush1.bf16.msra.mxu0 %v520
        %2936 = vmatprep.subr.bf16.mxu0 0
        %2937 = vmatpush1.bf16.msra.mxu0 %v519
        %2938 = vmatprep.subr.bf16.mxu0 0
        %2939 = vmatpush2.bf16.msra.mxu0 0
        %2940 = vmatprep.subr.bf16.mxu0 0
        %2941 = vmatpush2.bf16.msra.mxu0 0
        %2942 = vmatprep.subr.bf16.mxu0 0
        %2943 = vmatpush2.bf16.msra.mxu0 0
        %2944 = vmatprep.subr.bf16.mxu0 0
        %2945 = vmatpush2.bf16.msra.mxu0 0
        %2946 = vmatprep.subr.bf16.mxu0 0
        %2947 = vmatpush2.bf16.msra.mxu0 0
        %2948 = vmatprep.subr.bf16.mxu0 0
        %2949 = vmatpush2.bf16.msra.mxu0 0
        %2950 = vmatprep.subr.bf16.mxu0 0
        %2951 = vmatpush2.bf16.msra.mxu0 0
        %2952 = vmatprep.subr.bf16.mxu0 0
        %2953 = vmatpush2.bf16.msra.mxu0 0
        %2954 = vmatprep.mubr.bf16.mxu0 0
        %2955 = vmatmul.mubr.bf16.gmra.mxu0 %v2920
        %v2956 = vpop.f32.mrf.mxu0
        %v2957 = vadd.f32 0.0, %v2956
        %v2958 = vpop.f32.mrf.mxu0
        %v2959 = vpop.f32.mrf.mxu0
        %v2960 = vpop.f32.mrf.mxu0
        %2961 = vdwg.mxu0
        %2962 = vmatprep.subr.bf16.mxu0 0
        %2963 = vmatpush1.bf16.msra.mxu0 0
        %2964 = vmatprep.subr.bf16.mxu0 0
        %2965 = vmatpush1.bf16.msra.mxu0 0
        %2966 = vmatprep.subr.bf16.mxu0 0
        %2967 = vmatpush1.bf16.msra.mxu0 0
        %2968 = vmatprep.subr.bf16.mxu0 0
        %2969 = vmatpush1.bf16.msra.mxu0 0
        %2970 = vmatprep.subr.bf16.mxu0 0
        %2971 = vmatpush1.bf16.msra.mxu0 0
        %2972 = vmatprep.subr.bf16.mxu0 0
        %2973 = vmatpush1.bf16.msra.mxu0 0
        %2974 = vmatprep.subr.bf16.mxu0 0
        %2975 = vmatpush1.bf16.msra.mxu0 %v576
        %2976 = vmatprep.subr.bf16.mxu0 0
        %2977 = vmatpush1.bf16.msra.mxu0 %v575
        %2978 = vmatprep.subr.bf16.mxu0 0
        %2979 = vmatpush2.bf16.msra.mxu0 0
        %2980 = vmatprep.subr.bf16.mxu0 0
        %2981 = vmatpush2.bf16.msra.mxu0 0
        %2982 = vmatprep.subr.bf16.mxu0 0
        %2983 = vmatpush2.bf16.msra.mxu0 0
        %2984 = vmatprep.subr.bf16.mxu0 0
        %2985 = vmatpush2.bf16.msra.mxu0 0
        %2986 = vmatprep.subr.bf16.mxu0 0
        %2987 = vmatpush2.bf16.msra.mxu0 0
        %2988 = vmatprep.subr.bf16.mxu0 0
        %2989 = vmatpush2.bf16.msra.mxu0 0
        %2990 = vmatprep.subr.bf16.mxu0 0
        %2991 = vmatpush2.bf16.msra.mxu0 0
        %2992 = vmatprep.subr.bf16.mxu0 0
        %2993 = vmatpush2.bf16.msra.mxu0 0
        %2994 = vmatprep.mubr.bf16.mxu0 0
        %2995 = vmatmul.mubr.bf16.gmra.mxu0 %v2920
        %v2996 = vpop.f32.mrf.mxu0
        %v2997 = vadd.f32 0.0, %v2996
        %v2998 = vpop.f32.mrf.mxu0
        %v2999 = vpop.f32.mrf.mxu0
        %v3000 = vpop.f32.mrf.mxu0
        %3001 = vdwg.mxu0
        %v3002 = vunpack.c.l.bf16 %v2913
        %v3003 = vadd.f32 %v3002, %v2957
        %v3004 = vxor.u32 %v3003, 2147483648
        %v3005 = vmul.f32 %v3004, 1.442695
        %v3006 = vpow.pop %v3005
        %v3007 = vadd.f32 %v3006, 1.0
        %v3008 = vrcp.pop %v3007
        %v3009 = vmul.f32 1.0, %v3008
        %v3010 = vunpack.c.l.bf16 %v2915
        %v3011 = vadd.f32 %v3010, %v2997
        %v3012 = vxor.u32 %v3011, 2147483648
        %v3013 = vmul.f32 %v3012, 1.442695
        %v3014 = vpow.pop %v3013
        %v3015 = vadd.f32 %v3014, 1.0
        %v3016 = vrcp.pop %v3015
        %v3017 = vmul.f32 1.0, %v3016
        %v3018 = vunpack.c.l.bf16 %v2917
        %3019 = vmatprep.subr.bf16.mxu0 0
        %3020 = vmatpush1.bf16.msra.mxu0 0
        %3021 = vmatprep.subr.bf16.mxu0 0
        %3022 = vmatpush1.bf16.msra.mxu0 0
        %3023 = vmatprep.subr.bf16.mxu0 0
        %3024 = vmatpush1.bf16.msra.mxu0 0
        %3025 = vmatprep.subr.bf16.mxu0 0
        %3026 = vmatpush1.bf16.msra.mxu0 0
        %3027 = vmatprep.subr.bf16.mxu0 0
        %3028 = vmatpush1.bf16.msra.mxu0 0
        %3029 = vmatprep.subr.bf16.mxu0 0
        %3030 = vmatpush1.bf16.msra.mxu0 0
        %3031 = vmatprep.subr.bf16.mxu0 0
        %3032 = vmatpush1.bf16.msra.mxu0 %v651
        %3033 = vmatprep.subr.bf16.mxu0 0
        %3034 = vmatpush1.bf16.msra.mxu0 %v650
        %3035 = vmatprep.subr.bf16.mxu0 0
        %3036 = vmatpush2.bf16.msra.mxu0 0
        %3037 = vmatprep.subr.bf16.mxu0 0
        %3038 = vmatpush2.bf16.msra.mxu0 0
        %3039 = vmatprep.subr.bf16.mxu0 0
        %3040 = vmatpush2.bf16.msra.mxu0 0
        %3041 = vmatprep.subr.bf16.mxu0 0
        %3042 = vmatpush2.bf16.msra.mxu0 0
        %3043 = vmatprep.subr.bf16.mxu0 0
        %3044 = vmatpush2.bf16.msra.mxu0 0
        %3045 = vmatprep.subr.bf16.mxu0 0
        %3046 = vmatpush2.bf16.msra.mxu0 0
        %3047 = vmatprep.subr.bf16.mxu0 0
        %3048 = vmatpush2.bf16.msra.mxu0 0
        %3049 = vmatprep.subr.bf16.mxu0 0
        %3050 = vmatpush2.bf16.msra.mxu0 0
        %3051 = vmatprep.mubr.bf16.mxu0 0
        %3052 = vmatmul.mubr.bf16.gmra.mxu0 %v2920
        %v3053 = vpop.f32.mrf.mxu0
        %v3054 = vadd.f32 %v640, %v3053
        %v3055 = vpop.f32.mrf.mxu0
        %v3056 = vpop.f32.mrf.mxu0
        %v3057 = vpop.f32.mrf.mxu0
        %3058 = vdwg.mxu0
        %v3059 = vmul.f32 %v3009, %v3054
        %v3060 = vadd.f32 %v3018, %v3059
        %v3061 = vtanh.pop %v3060
        %v3062 = vsub.f32 %v2741, %v3061
        %v3063 = vmul.f32 %v3017, %v3062
        %v3064 = vadd.f32 %v3061, %v3063
        %s3065 = sadd.s32 %s500, 7
        %v3066 = vstv %s3065
        %vm3067 = vcmp.gt.s32.totalorder %v473, %v3066
        %v3068 = vsel %vm3067, 1, 0
        %3069 = vset.pattern.permute.xlu0 0
        %3070 = vperm.xlu0 %3069, %v3068
        %v3071 = vpop.permute.xlu0 %3070
        %vm3072 = vcmp.eq.s32.totalorder %v3071, 1
        %v3073 = vsel %vm3072, %v3064, %v2741
        %v3074 = vsel %vm3072, %v3064, 0.0
        %v3075 = vpack.c.bf16 %v3074, %v3074
        %s3076 = scalar_lea.vmem %s451, 7 [#allocation12]
        %3077 = vst.msk [vmem:[%s3076] sm:$0x1] %vm710, %v3075
        %v3078 = vld [vmem:[%s408] sm:$0x1]
        %s3079 = scalar_lea.vmem %s408, 8 [#allocation7]
        %v3080 = vld [vmem:[%s3079] sm:$0x1]
        %s3081 = scalar_lea.vmem %s408, 16 [#allocation7]
        %v3082 = vld [vmem:[%s3081] sm:$0x1]
        %v3083 = vpack.c.bf16 %v2907, %v2907
        %v3085 = vsel %vm523, %v3083, 0
        %3087 = vmatprep.subr.bf16.mxu0 0
        %3088 = vmatpush1.bf16.msra.mxu0 0
        %3089 = vmatprep.subr.bf16.mxu0 0
        %3090 = vmatpush1.bf16.msra.mxu0 0
        %3091 = vmatprep.subr.bf16.mxu0 0
        %3092 = vmatpush1.bf16.msra.mxu0 0
        %3093 = vmatprep.subr.bf16.mxu0 0
        %3094 = vmatpush1.bf16.msra.mxu0 0
        %3095 = vmatprep.subr.bf16.mxu0 0
        %3096 = vmatpush1.bf16.msra.mxu0 0
        %3097 = vmatprep.subr.bf16.mxu0 0
        %3098 = vmatpush1.bf16.msra.mxu0 0
        %3099 = vmatprep.subr.bf16.mxu0 0
        %3100 = vmatpush1.bf16.msra.mxu0 %v728
        %3101 = vmatprep.subr.bf16.mxu0 0
        %3102 = vmatpush1.bf16.msra.mxu0 %v727
        %3103 = vmatprep.subr.bf16.mxu0 0
        %3104 = vmatpush2.bf16.msra.mxu0 0
        %3105 = vmatprep.subr.bf16.mxu0 0
        %3106 = vmatpush2.bf16.msra.mxu0 0
        %3107 = vmatprep.subr.bf16.mxu0 0
        %3108 = vmatpush2.bf16.msra.mxu0 0
        %3109 = vmatprep.subr.bf16.mxu0 0
        %3110 = vmatpush2.bf16.msra.mxu0 0
        %3111 = vmatprep.subr.bf16.mxu0 0
        %3112 = vmatpush2.bf16.msra.mxu0 0
        %3113 = vmatprep.subr.bf16.mxu0 0
        %3114 = vmatpush2.bf16.msra.mxu0 0
        %3115 = vmatprep.subr.bf16.mxu0 0
        %3116 = vmatpush2.bf16.msra.mxu0 0
        %3117 = vmatprep.subr.bf16.mxu0 0
        %3118 = vmatpush2.bf16.msra.mxu0 0
        %3119 = vmatprep.mubr.bf16.mxu0 0
        %3120 = vmatmul.mubr.bf16.gmra.mxu0 %v3085
        %v3121 = vpop.f32.mrf.mxu0
        %v3122 = vadd.f32 0.0, %v3121
        %v3123 = vpop.f32.mrf.mxu0
        %v3124 = vpop.f32.mrf.mxu0
        %v3125 = vpop.f32.mrf.mxu0
        %3126 = vdwg.mxu0
        %3127 = vmatprep.subr.bf16.mxu0 0
        %3128 = vmatpush1.bf16.msra.mxu0 0
        %3129 = vmatprep.subr.bf16.mxu0 0
        %3130 = vmatpush1.bf16.msra.mxu0 0
        %3131 = vmatprep.subr.bf16.mxu0 0
        %3132 = vmatpush1.bf16.msra.mxu0 0
        %3133 = vmatprep.subr.bf16.mxu0 0
        %3134 = vmatpush1.bf16.msra.mxu0 0
        %3135 = vmatprep.subr.bf16.mxu0 0
        %3136 = vmatpush1.bf16.msra.mxu0 0
        %3137 = vmatprep.subr.bf16.mxu0 0
        %3138 = vmatpush1.bf16.msra.mxu0 0
        %3139 = vmatprep.subr.bf16.mxu0 0
        %3140 = vmatpush1.bf16.msra.mxu0 %v783
        %3141 = vmatprep.subr.bf16.mxu0 0
        %3142 = vmatpush1.bf16.msra.mxu0 %v782
        %3143 = vmatprep.subr.bf16.mxu0 0
        %3144 = vmatpush2.bf16.msra.mxu0 0
        %3145 = vmatprep.subr.bf16.mxu0 0
        %3146 = vmatpush2.bf16.msra.mxu0 0
        %3147 = vmatprep.subr.bf16.mxu0 0
        %3148 = vmatpush2.bf16.msra.mxu0 0
        %3149 = vmatprep.subr.bf16.mxu0 0
        %3150 = vmatpush2.bf16.msra.mxu0 0
        %3151 = vmatprep.subr.bf16.mxu0 0
        %3152 = vmatpush2.bf16.msra.mxu0 0
        %3153 = vmatprep.subr.bf16.mxu0 0
        %3154 = vmatpush2.bf16.msra.mxu0 0
        %3155 = vmatprep.subr.bf16.mxu0 0
        %3156 = vmatpush2.bf16.msra.mxu0 0
        %3157 = vmatprep.subr.bf16.mxu0 0
        %3158 = vmatpush2.bf16.msra.mxu0 0
        %3159 = vmatprep.mubr.bf16.mxu0 0
        %3160 = vmatmul.mubr.bf16.gmra.mxu0 %v3085
        %v3161 = vpop.f32.mrf.mxu0
        %v3162 = vadd.f32 0.0, %v3161
        %v3163 = vpop.f32.mrf.mxu0
        %v3164 = vpop.f32.mrf.mxu0
        %v3165 = vpop.f32.mrf.mxu0
        %3166 = vdwg.mxu0
        %v3167 = vunpack.c.l.bf16 %v3078
        %v3168 = vadd.f32 %v3167, %v3122
        %v3169 = vxor.u32 %v3168, 2147483648
        %v3170 = vmul.f32 %v3169, 1.442695
        %v3171 = vpow.pop %v3170
        %v3172 = vadd.f32 %v3171, 1.0
        %v3173 = vrcp.pop %v3172
        %v3174 = vmul.f32 1.0, %v3173
        %v3175 = vunpack.c.l.bf16 %v3080
        %v3176 = vadd.f32 %v3175, %v3162
        %v3177 = vxor.u32 %v3176, 2147483648
        %v3178 = vmul.f32 %v3177, 1.442695
        %v3179 = vpow.pop %v3178
        %v3180 = vadd.f32 %v3179, 1.0
        %v3181 = vrcp.pop %v3180
        %v3182 = vmul.f32 1.0, %v3181
        %v3183 = vunpack.c.l.bf16 %v3082
        %3184 = vmatprep.subr.bf16.mxu0 0
        %3185 = vmatpush1.bf16.msra.mxu0 0
        %3186 = vmatprep.subr.bf16.mxu0 0
        %3187 = vmatpush1.bf16.msra.mxu0 0
        %3188 = vmatprep.subr.bf16.mxu0 0
        %3189 = vmatpush1.bf16.msra.mxu0 0
        %3190 = vmatprep.subr.bf16.mxu0 0
        %3191 = vmatpush1.bf16.msra.mxu0 0
        %3192 = vmatprep.subr.bf16.mxu0 0
        %3193 = vmatpush1.bf16.msra.mxu0 0
        %3194 = vmatprep.subr.bf16.mxu0 0
        %3195 = vmatpush1.bf16.msra.mxu0 0
        %3196 = vmatprep.subr.bf16.mxu0 0
        %3197 = vmatpush1.bf16.msra.mxu0 %v858
        %3198 = vmatprep.subr.bf16.mxu0 0
        %3199 = vmatpush1.bf16.msra.mxu0 %v857
        %3200 = vmatprep.subr.bf16.mxu0 0
        %3201 = vmatpush2.bf16.msra.mxu0 0
        %3202 = vmatprep.subr.bf16.mxu0 0
        %3203 = vmatpush2.bf16.msra.mxu0 0
        %3204 = vmatprep.subr.bf16.mxu0 0
        %3205 = vmatpush2.bf16.msra.mxu0 0
        %3206 = vmatprep.subr.bf16.mxu0 0
        %3207 = vmatpush2.bf16.msra.mxu0 0
        %3208 = vmatprep.subr.bf16.mxu0 0
        %3209 = vmatpush2.bf16.msra.mxu0 0
        %3210 = vmatprep.subr.bf16.mxu0 0
        %3211 = vmatpush2.bf16.msra.mxu0 0
        %3212 = vmatprep.subr.bf16.mxu0 0
        %3213 = vmatpush2.bf16.msra.mxu0 0
        %3214 = vmatprep.subr.bf16.mxu0 0
        %3215 = vmatpush2.bf16.msra.mxu0 0
        %3216 = vmatprep.mubr.bf16.mxu0 0
        %3217 = vmatmul.mubr.bf16.gmra.mxu0 %v3085
        %v3218 = vpop.f32.mrf.mxu0
        %v3219 = vadd.f32 %v847, %v3218
        %v3220 = vpop.f32.mrf.mxu0
        %v3221 = vpop.f32.mrf.mxu0
        %v3222 = vpop.f32.mrf.mxu0
        %3223 = vdwg.mxu0
        %v3224 = vmul.f32 %v3174, %v3219
        %v3225 = vadd.f32 %v3183, %v3224
        %v3226 = vtanh.pop %v3225
        %v3227 = vsub.f32 %v2907, %v3226
        %v3228 = vmul.f32 %v3182, %v3227
        %v3229 = vadd.f32 %v3226, %v3228
        %v3230 = vstv %s502
        %vm3231 = vcmp.gt.s32.totalorder %v473, %v3230
        %v3232 = vsel %vm3231, 1, 0
        %3233 = vset.pattern.permute.xlu0 0
        %3234 = vperm.xlu0 %3233, %v3232
        %v3235 = vpop.permute.xlu0 %3234
        %vm3236 = vcmp.eq.s32.totalorder %v3235, 1
        %v3237 = vsel %vm3236, %v3229, %v2907
        %v3238 = vsel %vm3236, %v3229, 0.0
        %v3239 = vpack.c.bf16 %v3238, %v3238
        %3240 = vst.msk [vmem:[%s458] sm:$0x1] %vm710, %v3239
        %vm3241 = vcmask 254976
        %3242 = vst.msk [vmem:[#allocation2] sm:$0x3] %vm3241, %v3073
        %3243 = vst.msk [vmem:[#allocation3] sm:$0x3] %vm3241, %v3237
        %s3244 = sand.u32 %s200, 1
        %s3245 = scalar_lea.sflag [#allocation6], %s3244
        %s3246 = sand.u32 %s200, 1
        %s3247 = smul.addr %s3246, 8
        %s3248 = scalar_lea.vmem [#allocation12], %s3247
        %s3249 = sand.u32 %s228, 1
        %s3250 = scalar_lea.sflag [#allocation14], %s3249
        %s3251 = sand.u32 %s228, 1
        %s3252 = smul.addr %s3251, 8
        %s3253 = scalar_lea.vmem [#allocation13], %s3252
        // Predicated region
        $region69: #{tpu_custom_call.1} parent=47 // pred_check
          %p3254 = pneg %p210
        $region70: #{tpu_custom_call.1} parent=47 // pred_check_branch
          %3256 = sbr.rel (%p3254) target = $region72
        $region71: #{tpu_custom_call.1} parent=47 // pred_region
          %s3257 = smul.u32 8, %s33
          %s3259 = ssub.s32 128, 128
          %3260 = vsyncadd %s3245, %s3259
          %s3261 = smul.addr %s3257, 16
          %s3262 = scalar_lea.hbm %s7, %s3261
          %s3263 = sshll.u32 %s3248, 4
          %s3264 = int_to_ptr.vmem [resolvable:$true] %s3263
          %3269 = dma.vmem_to_hbm [thread:$0]  %s3264, 128, %s3262, %s3245, 16, 16, 1
        $region72: #{tpu_custom_call.1} parent=47 // pred_fallthru
          _
        // Predicated region
        $region73: #{tpu_custom_call.1} parent=47 // pred_check
          %p3270 = pneg %p238
        $region74: #{tpu_custom_call.1} parent=47 // pred_check_branch
          %3272 = sbr.rel (%p3270) target = $region76
        $region75: #{tpu_custom_call.1} parent=47 // pred_region
          %s3273 = ssub.s32 1, %s33
          %s3274 = smul.u32 8, %s3273
          %s3276 = ssub.s32 128, 128
          %3277 = vsyncadd %s3250, %s3276
          %s3278 = smul.addr %s3274, 16
          %s3279 = scalar_lea.hbm %s8, %s3278
          %s3280 = sshll.u32 %s3253, 4
          %s3281 = int_to_ptr.vmem [resolvable:$true] %s3280
          %3286 = dma.vmem_to_hbm [thread:$0]  %s3281, 128, %s3279, %s3250, 16, 16, 1
        $region76: #{tpu_custom_call.1} parent=47 // pred_fallthru
          _
      $region48: #{tpu_custom_call.1} parent=5 // pred_fallthru
        _
      %p3287 = scmp.le.s32.totalorder 2, %s28
      // Predicated region
      $region77: #{tpu_custom_call.1} parent=5 // pred_check
        %p3288 = pneg %p3287
      $region78: #{tpu_custom_call.1} parent=5 // pred_check_branch
        %3290 = sbr.rel (%p3288) target = $region80
      $region79: #{tpu_custom_call.1} parent=5 // pred_region
        %s3291 = ssub.s32 %s28, 2
        // Predicated region
        $region81: #{tpu_custom_call.1} parent=79 // pred_check
          %p3292 = pneg %p216
        $region82: #{tpu_custom_call.1} parent=79 // pred_check_branch
          %3294 = sbr.rel (%p3292) target = $region84
        $region83: #{tpu_custom_call.1} parent=79 // pred_region
          %s3295 = sand.u32 %s201, 1
          %s3296 = scalar_lea.sflag [#allocation6], %s3295
          %s3297 = sand.u32 %s201, 1
          %s3298 = smul.addr %s3297, 8
          %s3299 = scalar_lea.vmem [#allocation12], %s3298
          %3300 = dma.done %s3296, 128
        $region84: #{tpu_custom_call.1} parent=79 // pred_fallthru
          _
        // Predicated region
        $region85: #{tpu_custom_call.1} parent=79 // pred_check
          %p3301 = pneg %p244
        $region86: #{tpu_custom_call.1} parent=79 // pred_check_branch
          %3303 = sbr.rel (%p3301) target = $region88
        $region87: #{tpu_custom_call.1} parent=79 // pred_region
          %s3304 = sand.u32 %s229, 1
          %s3305 = scalar_lea.sflag [#allocation14], %s3304
          %s3306 = sand.u32 %s229, 1
          %s3307 = smul.addr %s3306, 8
          %s3308 = scalar_lea.vmem [#allocation13], %s3307
          %3309 = dma.done %s3305, 128
        $region88: #{tpu_custom_call.1} parent=79 // pred_fallthru
          _
      $region80: #{tpu_custom_call.1} parent=5 // pred_fallthru
        _
    $region6: #{tpu_custom_call.1} parent=1 // loop_footer
      %s32 = sadd.s32 1, %s28
    $region7: #{tpu_custom_call.1} parent=1 // loop_footer_branch
      %27 = sbr.rel target = $region3
    $region8: #{tpu_custom_call.1} parent=1 // loop_exit
      _
    %3310 = vsyncpa [#allocation5], 1
    %s3311 = scalar_lea.sflag [#allocation5], 1
    %3312 = vsyncpa %s3311, 1
    %3313 = vsyncpa [#allocation8], 1
    %s3314 = scalar_lea.sflag [#allocation8], 1
    %3315 = vsyncpa %s3314, 1
    %3316 = vsyncpa [#allocation11], 1
    %3317 = vsyncpa [#allocation6], 1
    %s3318 = scalar_lea.sflag [#allocation6], 1
    %3319 = vsyncpa %s3318, 1
    %3320 = vsyncpa [#allocation14], 1
    %s3321 = scalar_lea.sflag [#allocation14], 1
    %3322 = vsyncpa %s3321, 1

</llo_original>
